<compile_context>
chip_gen: v5e
topology: v5e:2x2
jax: 0.10.0
libtpu: 0.0.40
codegen_flags: <defaults>
</compile_context>

<pallas_src>
import jax
import jax.numpy as jnp
from jax import lax
from jax.experimental import pallas as pl
from jax.experimental.pallas import tpu as pltpu

HIDDEN = 4
INPUT = 1
OUTPUT = 1
NUM_LAYERS = 5


# ---------------------------------------------------------------------------
# Fused Pallas kernel: whole network in one call, no scratch, no grid
# ---------------------------------------------------------------------------
def _fused_lstm_kernel(x_ref, wih_ref, whh_ref, b_ref, fcw_ref, fcb_ref, o_ref):
    """Fused bidirectional multi-layer LSTM + FC head.

    x_ref:   (B, T)         layer-0 input (input_size == 1), batch-major
    wih_ref: (L, 2H, 8H)    input->gates weights; fwd dir = lanes [0:4H], rev = [4H:8H];
                            i/f/o columns pre-scaled by 0.5; layer 0 uses row 0 only
    whh_ref: (L, H, 8H)     hidden->gates weights, same lane layout / pre-scaling
    b_ref:   (L, 1, 8H)     combined bias (b_ih + b_hh), same lane layout / pre-scaling
    fcw_ref: (2H, OUT)      final linear weight (unscaled)
    fcb_ref: (1, OUT)       final linear bias
    o_ref:   (B, OUT)       output
    """
    B, T = x_ref.shape
    H = whh_ref.shape[1]
    L = wih_ref.shape[0]
    H4 = 4 * H
    B2 = 2 * B

    x = x_ref[...]                                           # (B, T)
    cur = None                                               # (T*B, 2H) from prev layer
    last = None                                              # (B, 2H) final-timestep feats

    for layer in range(L):
        wih_l = wih_ref[layer]                               # (2H, 8H)
        whh_l = whh_ref[layer]                               # (H, 8H)
        b_l = b_ref[layer]                                   # (1, 8H)

        # ---- hoisted input projection for BOTH directions --------------------
        if layer == 0:
            # input_size == 1: broadcast-FMA per timestep, no MXU, no padding.
            w0 = wih_l[0:1, :]                               # (1, 8H)
            gx_full = [x[:, t:t + 1] * w0 + b_l for t in range(T)]      # (B, 8H) each
        else:
            gx_all = jnp.dot(cur, wih_l,
                             preferred_element_type=jnp.float32) + b_l  # (T*B, 8H)
            gx_full = [gx_all[t * B:(t + 1) * B, :] for t in range(T)]

        # Stacked per-step gate inputs: rows [0:B] = fwd @ t=s, rows [B:2B] = rev @ t=T-1-s.
        # Depends only on gx -> scheduler can issue these ahead of the recurrent chain.
        gxs = [jnp.concatenate([gx_full[s][:, 0:H4],
                                gx_full[T - 1 - s][:, H4:2 * H4]], axis=0)
               for s in range(T)]                            # each (2B, 4H)

        # Stacked recurrent weight rows (hoisted): (2B, 4H) per contraction index k.
        whh_rows = [jnp.concatenate(
            [jnp.broadcast_to(whh_l[k:k + 1, 0:H4], (B, H4)),
             jnp.broadcast_to(whh_l[k:k + 1, H4:2 * H4], (B, H4))], axis=0)
            for k in range(H)]

        # ---- fused fwd+rev recurrence, fully unrolled, state in vregs --------
        h = jnp.zeros((B2, H), jnp.float32)
        c = jnp.zeros((B2, H), jnp.float32)
        h_cols = [h[:, k:k + 1] for k in range(H)]
        hs_f = [None] * T
        hs_r = [None] * T

        for s in range(T):
            gh = h_cols[0] * whh_rows[0]
            for k in range(1, H):
                gh = gh + h_cols[k] * whh_rows[k]            # (2B, 4H) VPU FMAs
            gates = gxs[s] + gh

            # Single tanh over the whole gates tile; i/f/o recovered via 0.5*(y+1).
            y = jnp.tanh(gates)
            yp = y * 0.5 + 0.5
            i_g = yp[:, 0 * H:1 * H]
            f_g = yp[:, 1 * H:2 * H]
            g_g = y[:, 2 * H:3 * H]
            o_g = yp[:, 3 * H:4 * H]

            c = f_g * c + i_g * g_g
            h = o_g * jnp.tanh(c)
            # Extract h lane-columns right away so only tanh(c) gates the next step's gh.
            h_cols = [h[:, k:k + 1] for k in range(H)]

            hs_f[s] = h[0:B, :]                              # fwd output at time s
            hs_r[T - 1 - s] = h[B:B2, :]                     # rev output at time T-1-s

        if layer < L - 1:
            # Layer output carried as a value (no VMEM round-trip).
            cur = jnp.concatenate(
                [jnp.concatenate([hs_f[t], hs_r[t]], axis=1) for t in range(T)],
                axis=0)                                      # (T*B, 2H)
        else:
            last = jnp.concatenate([hs_f[T - 1], hs_r[T - 1]], axis=1)   # (B, 2H)

    # Final FC on the last timestep (fwd final state | rev 1-step state) == out[:, -1, :].
    o_ref[...] = (jnp.dot(last, fcw_ref[...],
                          preferred_element_type=jnp.float32) + fcb_ref[...])


# ---------------------------------------------------------------------------
# Wrapper
# ---------------------------------------------------------------------------
def simple_lstm_forward(x_btd, wih_all, whh_all, b_all, fc_w, fc_b):
    """x_btd: (B, T, input_size) -> (B, output_size).  Matches SimpleLSTM.forward (eval)."""
    B, T, Din = x_btd.shape
    assert Din == 1, "layer-0 fast path assumes input_size == 1 (as in the spec)"
    x2 = x_btd.reshape(B, T).astype(jnp.float32)   # drop trailing unit dim (bitcast-cheap)

    return pl.pallas_call(
        _fused_lstm_kernel,
        out_shape=jax.ShapeDtypeStruct((B, fc_w.shape[1]), jnp.float32),
        in_specs=[pl.BlockSpec(memory_space=pltpu.MemorySpace.VMEM)] * 6,
        out_specs=pl.BlockSpec(memory_space=pltpu.MemorySpace.VMEM),
    )(x2, wih_all, whh_all, b_all, fc_w, fc_b)
    # TODO(synk): if batch ever grows, add a batch grid with dimension_semantics=("parallel",)
    # so v7x's second TensorCore is used; at B=2 a single grid-less call is optimal.


# ---------------------------------------------------------------------------
# Deterministic parameter init (PyTorch-style U(-1/sqrt(H), 1/sqrt(H))) + packing
# ---------------------------------------------------------------------------
def init_params(key):
    bound = 1.0 / (HIDDEN ** 0.5)
    n_keys = NUM_LAYERS * 2 * 4 + 2
    keys = list(jax.random.split(key, n_keys))
    ki = iter(range(n_keys))

    lstm_params = []
    for layer in range(NUM_LAYERS):
        in_dim = INPUT if layer == 0 else 2 * HIDDEN
        dirs = []
        for _d in range(2):
            w_ih = jax.random.uniform(keys[next(ki)], (in_dim, 4 * HIDDEN),
                                      minval=-bound, maxval=bound, dtype=jnp.float32)
            w_hh = jax.random.uniform(keys[next(ki)], (HIDDEN, 4 * HIDDEN),
                                      minval=-bound, maxval=bound, dtype=jnp.float32)
            b_ih = jax.random.uniform(keys[next(ki)], (1, 4 * HIDDEN),
                                      minval=-bound, maxval=bound, dtype=jnp.float32)
            b_hh = jax.random.uniform(keys[next(ki)], (1, 4 * HIDDEN),
                                      minval=-bound, maxval=bound, dtype=jnp.float32)
            dirs.append((w_ih, w_hh, b_ih + b_hh))
        lstm_params.append(tuple(dirs))

    fc_bound = 1.0 / ((2 * HIDDEN) ** 0.5)
    fc_w = jax.random.uniform(keys[next(ki)], (2 * HIDDEN, OUTPUT),
                              minval=-fc_bound, maxval=fc_bound, dtype=jnp.float32)
    fc_b = jax.random.uniform(keys[next(ki)], (1, OUTPUT),
                              minval=-fc_bound, maxval=fc_bound, dtype=jnp.float32)
    return lstm_params, fc_w, fc_b


def pack_params(lstm_params):
    """Pack per-layer/direction weights into dense arrays with both directions stacked
    along lanes (fwd = [0:4H], rev = [4H:8H]) and the i/f/o gate columns pre-scaled by 0.5
    so the kernel computes sigmoid via a single tanh.  Gate order is PyTorch's (i,f,g,o)."""
    L, H = len(lstm_params), HIDDEN
    scale = jnp.concatenate([jnp.full((2 * H,), 0.5, jnp.float32),   # i, f
                             jnp.ones((H,), jnp.float32),            # g
                             jnp.full((H,), 0.5, jnp.float32)])      # o
    wih_all = jnp.zeros((L, 2 * H, 8 * H), jnp.float32)
    whh_all = jnp.zeros((L, H, 8 * H), jnp.float32)
    b_all = jnp.zeros((L, 1, 8 * H), jnp.float32)
    for layer in range(L):
        for d in range(2):
            w_ih, w_hh, b = lstm_params[layer][d]
            c0 = d * 4 * H
            wih_all = wih_all.at[layer, :w_ih.shape[0], c0:c0 + 4 * H].set(w_ih * scale)
            whh_all = whh_all.at[layer, :, c0:c0 + 4 * H].set(w_hh * scale)
            b_all = b_all.at[layer, :, c0:c0 + 4 * H].set(b * scale)
    return wih_all, whh_all, b_all


# ---------------------------------------------------------------------------
# Pure-JAX reference (correctness check only; uses the unscaled PyTorch-layout params)
# ---------------------------------------------------------------------------
def _ref_forward(x_btd, lstm_params, fc_w, fc_b):
    B, T, _ = x_btd.shape
    H = HIDDEN
    hp = lax.Precision.HIGHEST
    h_seq = jnp.transpose(x_btd, (1, 0, 2)).astype(jnp.float32)          # (T, B, D)

    def run(x_seq, wih, whh, b):
        def step(carry, x_t):
            h, c = carry
            g = (jnp.dot(x_t, wih, precision=hp)
                 + jnp.dot(h, whh, precision=hp) + b)
            i = jax.nn.sigmoid(g[:, 0 * H:1 * H])
            f = jax.nn.sigmoid(g[:, 1 * H:2 * H])
            gg = jnp.tanh(g[:, 2 * H:3 * H])
            o = jax.nn.sigmoid(g[:, 3 * H:4 * H])
            c = f * c + i * gg
            h = o * jnp.tanh(c)
            return (h, c), h
        init = (jnp.zeros((B, H), jnp.float32), jnp.zeros((B, H), jnp.float32))
        _, hs = lax.scan(step, init, x_seq)
        return hs

    for layer in range(NUM_LAYERS):
        (wih_f, whh_f, b_f), (wih_r, whh_r, b_r) = lstm_params[layer]
        out_f = run(h_seq, wih_f, whh_f, b_f)
        out_r = run(h_seq[::-1], wih_r, whh_r, b_r)[::-1]
        h_seq = jnp.concatenate([out_f, out_r], axis=-1)
    return jnp.dot(h_seq[-1], fc_w, precision=hp) + fc_b


if __name__ == "__main__":
    key = jax.random.PRNGKey(0)
    pk, xk = jax.random.split(key)
    lstm_params, fc_w, fc_b = init_params(pk)
    wih_all, whh_all, b_all = pack_params(lstm_params)

    B, T = 2, 8
    x = jax.random.normal(xk, (B, T, INPUT), dtype=jnp.float32)          # batch_first input

    fwd = jax.jit(simple_lstm_forward)
    out = fwd(x, wih_all, whh_all, b_all, fc_w, fc_b)
    out = jax.block_until_ready(out)
    assert out.shape == (B, OUTPUT)

    ref = jax.block_until_ready(_ref_forward(x, lstm_params, fc_w, fc_b))
    err = float(jnp.max(jnp.abs(out - ref)))
    assert err < 1e-3, f"mismatch vs pure-JAX reference: max|diff|={err}"
    print("KERNEL_OK")
</pallas_src>

<mosaic_0001>
module attributes {stable_mosaic.version = 11 : i64} {
  func.func @_fused_lstm_kernel(%arg0: memref<2x8xf32, #tpu.memory_space<vmem>>, %arg1: memref<5x8x32xf32, #tpu.memory_space<vmem>>, %arg2: memref<5x4x32xf32, #tpu.memory_space<vmem>>, %arg3: memref<5x1x32xf32, #tpu.memory_space<vmem>>, %arg4: memref<8x1xf32, #tpu.memory_space<vmem>>, %arg5: memref<1x1xf32, #tpu.memory_space<vmem>>, %arg6: memref<2x1xf32, #tpu.memory_space<vmem>>) attributes {dimension_semantics = [], scalar_prefetch = 0 : i64, scratch_operands = 0 : i64, tpu.core_type = #tpu.core_type<tc>} {
    %c0 = arith.constant 0 : index
    %c0_0 = arith.constant 0 : index
    %0 = vector.load %arg0[%c0, %c0_0] : memref<2x8xf32, #tpu.memory_space<vmem>>, vector<2x8xf32>
    %c0_1 = arith.constant 0 : index
    %c0_2 = arith.constant 0 : index
    %c0_3 = arith.constant 0 : index
    %1 = vector.load %arg1[%c0_1, %c0_2, %c0_3] : memref<5x8x32xf32, #tpu.memory_space<vmem>>, vector<1x8x32xf32>
    %2 = vector.shape_cast %1 : vector<1x8x32xf32> to vector<8x32xf32>
    %c0_4 = arith.constant 0 : index
    %c0_5 = arith.constant 0 : index
    %c0_6 = arith.constant 0 : index
    %3 = vector.load %arg2[%c0_4, %c0_5, %c0_6] : memref<5x4x32xf32, #tpu.memory_space<vmem>>, vector<1x4x32xf32>
    %4 = vector.shape_cast %3 : vector<1x4x32xf32> to vector<4x32xf32>
    %c0_7 = arith.constant 0 : index
    %c0_8 = arith.constant 0 : index
    %c0_9 = arith.constant 0 : index
    %5 = vector.load %arg3[%c0_7, %c0_8, %c0_9] : memref<5x1x32xf32, #tpu.memory_space<vmem>>, vector<1x1x32xf32>
    %6 = vector.shape_cast %5 : vector<1x1x32xf32> to vector<1x32xf32>
    %7 = vector.extract_strided_slice %2 {offsets = [0, 0], sizes = [1, 32], strides = [1, 1]} : vector<8x32xf32> to vector<1x32xf32>
    %8 = vector.extract_strided_slice %0 {offsets = [0, 0], sizes = [2, 1], strides = [1, 1]} : vector<2x8xf32> to vector<2x1xf32>
    %9 = vector.broadcast %8 : vector<2x1xf32> to vector<2x32xf32>
    %10 = vector.broadcast %7 : vector<1x32xf32> to vector<2x32xf32>
    %11 = arith.mulf %9, %10 : vector<2x32xf32>
    %12 = vector.broadcast %6 : vector<1x32xf32> to vector<2x32xf32>
    %13 = arith.addf %11, %12 : vector<2x32xf32>
    %14 = vector.extract_strided_slice %0 {offsets = [0, 1], sizes = [2, 1], strides = [1, 1]} : vector<2x8xf32> to vector<2x1xf32>
    %15 = vector.broadcast %14 : vector<2x1xf32> to vector<2x32xf32>
    %16 = vector.broadcast %7 : vector<1x32xf32> to vector<2x32xf32>
    %17 = arith.mulf %15, %16 : vector<2x32xf32>
    %18 = vector.broadcast %6 : vector<1x32xf32> to vector<2x32xf32>
    %19 = arith.addf %17, %18 : vector<2x32xf32>
    %20 = vector.extract_strided_slice %0 {offsets = [0, 2], sizes = [2, 1], strides = [1, 1]} : vector<2x8xf32> to vector<2x1xf32>
    %21 = vector.broadcast %20 : vector<2x1xf32> to vector<2x32xf32>
    %22 = vector.broadcast %7 : vector<1x32xf32> to vector<2x32xf32>
    %23 = arith.mulf %21, %22 : vector<2x32xf32>
    %24 = vector.broadcast %6 : vector<1x32xf32> to vector<2x32xf32>
    %25 = arith.addf %23, %24 : vector<2x32xf32>
    %26 = vector.extract_strided_slice %0 {offsets = [0, 3], sizes = [2, 1], strides = [1, 1]} : vector<2x8xf32> to vector<2x1xf32>
    %27 = vector.broadcast %26 : vector<2x1xf32> to vector<2x32xf32>
    %28 = vector.broadcast %7 : vector<1x32xf32> to vector<2x32xf32>
    %29 = arith.mulf %27, %28 : vector<2x32xf32>
    %30 = vector.broadcast %6 : vector<1x32xf32> to vector<2x32xf32>
    %31 = arith.addf %29, %30 : vector<2x32xf32>
    %32 = vector.extract_strided_slice %0 {offsets = [0, 4], sizes = [2, 1], strides = [1, 1]} : vector<2x8xf32> to vector<2x1xf32>
    %33 = vector.broadcast %32 : vector<2x1xf32> to vector<2x32xf32>
    %34 = vector.broadcast %7 : vector<1x32xf32> to vector<2x32xf32>
    %35 = arith.mulf %33, %34 : vector<2x32xf32>
    %36 = vector.broadcast %6 : vector<1x32xf32> to vector<2x32xf32>
    %37 = arith.addf %35, %36 : vector<2x32xf32>
    %38 = vector.extract_strided_slice %0 {offsets = [0, 5], sizes = [2, 1], strides = [1, 1]} : vector<2x8xf32> to vector<2x1xf32>
    %39 = vector.broadcast %38 : vector<2x1xf32> to vector<2x32xf32>
    %40 = vector.broadcast %7 : vector<1x32xf32> to vector<2x32xf32>
    %41 = arith.mulf %39, %40 : vector<2x32xf32>
    %42 = vector.broadcast %6 : vector<1x32xf32> to vector<2x32xf32>
    %43 = arith.addf %41, %42 : vector<2x32xf32>
    %44 = vector.extract_strided_slice %0 {offsets = [0, 6], sizes = [2, 1], strides = [1, 1]} : vector<2x8xf32> to vector<2x1xf32>
    %45 = vector.broadcast %44 : vector<2x1xf32> to vector<2x32xf32>
    %46 = vector.broadcast %7 : vector<1x32xf32> to vector<2x32xf32>
    %47 = arith.mulf %45, %46 : vector<2x32xf32>
    %48 = vector.broadcast %6 : vector<1x32xf32> to vector<2x32xf32>
    %49 = arith.addf %47, %48 : vector<2x32xf32>
    %50 = vector.extract_strided_slice %0 {offsets = [0, 7], sizes = [2, 1], strides = [1, 1]} : vector<2x8xf32> to vector<2x1xf32>
    %51 = vector.broadcast %50 : vector<2x1xf32> to vector<2x32xf32>
    %52 = vector.broadcast %7 : vector<1x32xf32> to vector<2x32xf32>
    %53 = arith.mulf %51, %52 : vector<2x32xf32>
    %54 = vector.broadcast %6 : vector<1x32xf32> to vector<2x32xf32>
    %55 = arith.addf %53, %54 : vector<2x32xf32>
    %56 = vector.extract_strided_slice %13 {offsets = [0, 0], sizes = [2, 16], strides = [1, 1]} : vector<2x32xf32> to vector<2x16xf32>
    %57 = vector.extract_strided_slice %55 {offsets = [0, 16], sizes = [2, 16], strides = [1, 1]} : vector<2x32xf32> to vector<2x16xf32>
    %58 = tpu.concatenate %56, %57 in 0 : vector<2x16xf32>, vector<2x16xf32> -> vector<4x16xf32>
    %59 = vector.extract_strided_slice %19 {offsets = [0, 0], sizes = [2, 16], strides = [1, 1]} : vector<2x32xf32> to vector<2x16xf32>
    %60 = vector.extract_strided_slice %49 {offsets = [0, 16], sizes = [2, 16], strides = [1, 1]} : vector<2x32xf32> to vector<2x16xf32>
    %61 = tpu.concatenate %59, %60 in 0 : vector<2x16xf32>, vector<2x16xf32> -> vector<4x16xf32>
    %62 = vector.extract_strided_slice %25 {offsets = [0, 0], sizes = [2, 16], strides = [1, 1]} : vector<2x32xf32> to vector<2x16xf32>
    %63 = vector.extract_strided_slice %43 {offsets = [0, 16], sizes = [2, 16], strides = [1, 1]} : vector<2x32xf32> to vector<2x16xf32>
    %64 = tpu.concatenate %62, %63 in 0 : vector<2x16xf32>, vector<2x16xf32> -> vector<4x16xf32>
    %65 = vector.extract_strided_slice %31 {offsets = [0, 0], sizes = [2, 16], strides = [1, 1]} : vector<2x32xf32> to vector<2x16xf32>
    %66 = vector.extract_strided_slice %37 {offsets = [0, 16], sizes = [2, 16], strides = [1, 1]} : vector<2x32xf32> to vector<2x16xf32>
    %67 = tpu.concatenate %65, %66 in 0 : vector<2x16xf32>, vector<2x16xf32> -> vector<4x16xf32>
    %68 = vector.extract_strided_slice %37 {offsets = [0, 0], sizes = [2, 16], strides = [1, 1]} : vector<2x32xf32> to vector<2x16xf32>
    %69 = vector.extract_strided_slice %31 {offsets = [0, 16], sizes = [2, 16], strides = [1, 1]} : vector<2x32xf32> to vector<2x16xf32>
    %70 = tpu.concatenate %68, %69 in 0 : vector<2x16xf32>, vector<2x16xf32> -> vector<4x16xf32>
    %71 = vector.extract_strided_slice %43 {offsets = [0, 0], sizes = [2, 16], strides = [1, 1]} : vector<2x32xf32> to vector<2x16xf32>
    %72 = vector.extract_strided_slice %25 {offsets = [0, 16], sizes = [2, 16], strides = [1, 1]} : vector<2x32xf32> to vector<2x16xf32>
    %73 = tpu.concatenate %71, %72 in 0 : vector<2x16xf32>, vector<2x16xf32> -> vector<4x16xf32>
    %74 = vector.extract_strided_slice %49 {offsets = [0, 0], sizes = [2, 16], strides = [1, 1]} : vector<2x32xf32> to vector<2x16xf32>
    %75 = vector.extract_strided_slice %19 {offsets = [0, 16], sizes = [2, 16], strides = [1, 1]} : vector<2x32xf32> to vector<2x16xf32>
    %76 = tpu.concatenate %74, %75 in 0 : vector<2x16xf32>, vector<2x16xf32> -> vector<4x16xf32>
    %77 = vector.extract_strided_slice %55 {offsets = [0, 0], sizes = [2, 16], strides = [1, 1]} : vector<2x32xf32> to vector<2x16xf32>
    %78 = vector.extract_strided_slice %13 {offsets = [0, 16], sizes = [2, 16], strides = [1, 1]} : vector<2x32xf32> to vector<2x16xf32>
    %79 = tpu.concatenate %77, %78 in 0 : vector<2x16xf32>, vector<2x16xf32> -> vector<4x16xf32>
    %80 = vector.extract_strided_slice %4 {offsets = [0, 0], sizes = [1, 16], strides = [1, 1]} : vector<4x32xf32> to vector<1x16xf32>
    %81 = vector.shape_cast %80 : vector<1x16xf32> to vector<1x16xf32>
    %82 = vector.broadcast %81 : vector<1x16xf32> to vector<2x16xf32>
    %83 = vector.extract_strided_slice %4 {offsets = [0, 16], sizes = [1, 16], strides = [1, 1]} : vector<4x32xf32> to vector<1x16xf32>
    %84 = vector.shape_cast %83 : vector<1x16xf32> to vector<1x16xf32>
    %85 = vector.broadcast %84 : vector<1x16xf32> to vector<2x16xf32>
    %86 = tpu.concatenate %82, %85 in 0 : vector<2x16xf32>, vector<2x16xf32> -> vector<4x16xf32>
    %87 = vector.extract_strided_slice %4 {offsets = [1, 0], sizes = [1, 16], strides = [1, 1]} : vector<4x32xf32> to vector<1x16xf32>
    %88 = vector.shape_cast %87 : vector<1x16xf32> to vector<1x16xf32>
    %89 = vector.broadcast %88 : vector<1x16xf32> to vector<2x16xf32>
    %90 = vector.extract_strided_slice %4 {offsets = [1, 16], sizes = [1, 16], strides = [1, 1]} : vector<4x32xf32> to vector<1x16xf32>
    %91 = vector.shape_cast %90 : vector<1x16xf32> to vector<1x16xf32>
    %92 = vector.broadcast %91 : vector<1x16xf32> to vector<2x16xf32>
    %93 = tpu.concatenate %89, %92 in 0 : vector<2x16xf32>, vector<2x16xf32> -> vector<4x16xf32>
    %94 = vector.extract_strided_slice %4 {offsets = [2, 0], sizes = [1, 16], strides = [1, 1]} : vector<4x32xf32> to vector<1x16xf32>
    %95 = vector.shape_cast %94 : vector<1x16xf32> to vector<1x16xf32>
    %96 = vector.broadcast %95 : vector<1x16xf32> to vector<2x16xf32>
    %97 = vector.extract_strided_slice %4 {offsets = [2, 16], sizes = [1, 16], strides = [1, 1]} : vector<4x32xf32> to vector<1x16xf32>
    %98 = vector.shape_cast %97 : vector<1x16xf32> to vector<1x16xf32>
    %99 = vector.broadcast %98 : vector<1x16xf32> to vector<2x16xf32>
    %100 = tpu.concatenate %96, %99 in 0 : vector<2x16xf32>, vector<2x16xf32> -> vector<4x16xf32>
    %101 = vector.extract_strided_slice %4 {offsets = [3, 0], sizes = [1, 16], strides = [1, 1]} : vector<4x32xf32> to vector<1x16xf32>
    %102 = vector.shape_cast %101 : vector<1x16xf32> to vector<1x16xf32>
    %103 = vector.broadcast %102 : vector<1x16xf32> to vector<2x16xf32>
    %104 = vector.extract_strided_slice %4 {offsets = [3, 16], sizes = [1, 16], strides = [1, 1]} : vector<4x32xf32> to vector<1x16xf32>
    %105 = vector.shape_cast %104 : vector<1x16xf32> to vector<1x16xf32>
    %106 = vector.broadcast %105 : vector<1x16xf32> to vector<2x16xf32>
    %107 = tpu.concatenate %103, %106 in 0 : vector<2x16xf32>, vector<2x16xf32> -> vector<4x16xf32>
    %cst = arith.constant 0.000000e+00 : f32
    %108 = vector.broadcast %cst : f32 to vector<4x4xf32>
    %cst_10 = arith.constant 0.000000e+00 : f32
    %109 = vector.broadcast %cst_10 : f32 to vector<4x4xf32>
    %110 = vector.extract_strided_slice %108 {offsets = [0, 0], sizes = [4, 1], strides = [1, 1]} : vector<4x4xf32> to vector<4x1xf32>
    %111 = vector.extract_strided_slice %108 {offsets = [0, 1], sizes = [4, 1], strides = [1, 1]} : vector<4x4xf32> to vector<4x1xf32>
    %112 = vector.extract_strided_slice %108 {offsets = [0, 2], sizes = [4, 1], strides = [1, 1]} : vector<4x4xf32> to vector<4x1xf32>
    %113 = vector.extract_strided_slice %108 {offsets = [0, 3], sizes = [4, 1], strides = [1, 1]} : vector<4x4xf32> to vector<4x1xf32>
    %114 = vector.broadcast %110 : vector<4x1xf32> to vector<4x16xf32>
    %115 = arith.mulf %114, %86 : vector<4x16xf32>
    %116 = vector.broadcast %111 : vector<4x1xf32> to vector<4x16xf32>
    %117 = arith.mulf %116, %93 : vector<4x16xf32>
    %118 = arith.addf %115, %117 : vector<4x16xf32>
    %119 = vector.broadcast %112 : vector<4x1xf32> to vector<4x16xf32>
    %120 = arith.mulf %119, %100 : vector<4x16xf32>
    %121 = arith.addf %118, %120 : vector<4x16xf32>
    %122 = vector.broadcast %113 : vector<4x1xf32> to vector<4x16xf32>
    %123 = arith.mulf %122, %107 : vector<4x16xf32>
    %124 = arith.addf %121, %123 : vector<4x16xf32>
    %125 = arith.addf %58, %124 : vector<4x16xf32>
    %126 = math.tanh %125 : vector<4x16xf32>
    %cst_11 = arith.constant 5.000000e-01 : f32
    %127 = vector.broadcast %cst_11 : f32 to vector<4x16xf32>
    %128 = arith.mulf %126, %127 : vector<4x16xf32>
    %cst_12 = arith.constant 5.000000e-01 : f32
    %129 = vector.broadcast %cst_12 : f32 to vector<4x16xf32>
    %130 = arith.addf %128, %129 : vector<4x16xf32>
    %131 = vector.extract_strided_slice %130 {offsets = [0, 0], sizes = [4, 4], strides = [1, 1]} : vector<4x16xf32> to vector<4x4xf32>
    %132 = vector.extract_strided_slice %130 {offsets = [0, 4], sizes = [4, 4], strides = [1, 1]} : vector<4x16xf32> to vector<4x4xf32>
    %133 = vector.extract_strided_slice %126 {offsets = [0, 8], sizes = [4, 4], strides = [1, 1]} : vector<4x16xf32> to vector<4x4xf32>
    %134 = vector.extract_strided_slice %130 {offsets = [0, 12], sizes = [4, 4], strides = [1, 1]} : vector<4x16xf32> to vector<4x4xf32>
    %135 = arith.mulf %132, %109 : vector<4x4xf32>
    %136 = arith.mulf %131, %133 : vector<4x4xf32>
    %137 = arith.addf %135, %136 : vector<4x4xf32>
    %138 = math.tanh %137 : vector<4x4xf32>
    %139 = arith.mulf %134, %138 : vector<4x4xf32>
    %140 = vector.extract_strided_slice %139 {offsets = [0, 0], sizes = [4, 1], strides = [1, 1]} : vector<4x4xf32> to vector<4x1xf32>
    %141 = vector.extract_strided_slice %139 {offsets = [0, 1], sizes = [4, 1], strides = [1, 1]} : vector<4x4xf32> to vector<4x1xf32>
    %142 = vector.extract_strided_slice %139 {offsets = [0, 2], sizes = [4, 1], strides = [1, 1]} : vector<4x4xf32> to vector<4x1xf32>
    %143 = vector.extract_strided_slice %139 {offsets = [0, 3], sizes = [4, 1], strides = [1, 1]} : vector<4x4xf32> to vector<4x1xf32>
    %144 = vector.extract_strided_slice %139 {offsets = [0, 0], sizes = [2, 4], strides = [1, 1]} : vector<4x4xf32> to vector<2x4xf32>
    %145 = vector.extract_strided_slice %139 {offsets = [2, 0], sizes = [2, 4], strides = [1, 1]} : vector<4x4xf32> to vector<2x4xf32>
    %146 = vector.broadcast %140 : vector<4x1xf32> to vector<4x16xf32>
    %147 = arith.mulf %146, %86 : vector<4x16xf32>
    %148 = vector.broadcast %141 : vector<4x1xf32> to vector<4x16xf32>
    %149 = arith.mulf %148, %93 : vector<4x16xf32>
    %150 = arith.addf %147, %149 : vector<4x16xf32>
    %151 = vector.broadcast %142 : vector<4x1xf32> to vector<4x16xf32>
    %152 = arith.mulf %151, %100 : vector<4x16xf32>
    %153 = arith.addf %150, %152 : vector<4x16xf32>
    %154 = vector.broadcast %143 : vector<4x1xf32> to vector<4x16xf32>
    %155 = arith.mulf %154, %107 : vector<4x16xf32>
    %156 = arith.addf %153, %155 : vector<4x16xf32>
    %157 = arith.addf %61, %156 : vector<4x16xf32>
    %158 = math.tanh %157 : vector<4x16xf32>
    %cst_13 = arith.constant 5.000000e-01 : f32
    %159 = vector.broadcast %cst_13 : f32 to vector<4x16xf32>
    %160 = arith.mulf %158, %159 : vector<4x16xf32>
    %cst_14 = arith.constant 5.000000e-01 : f32
    %161 = vector.broadcast %cst_14 : f32 to vector<4x16xf32>
    %162 = arith.addf %160, %161 : vector<4x16xf32>
    %163 = vector.extract_strided_slice %162 {offsets = [0, 0], sizes = [4, 4], strides = [1, 1]} : vector<4x16xf32> to vector<4x4xf32>
    %164 = vector.extract_strided_slice %162 {offsets = [0, 4], sizes = [4, 4], strides = [1, 1]} : vector<4x16xf32> to vector<4x4xf32>
    %165 = vector.extract_strided_slice %158 {offsets = [0, 8], sizes = [4, 4], strides = [1, 1]} : vector<4x16xf32> to vector<4x4xf32>
    %166 = vector.extract_strided_slice %162 {offsets = [0, 12], sizes = [4, 4], strides = [1, 1]} : vector<4x16xf32> to vector<4x4xf32>
    %167 = arith.mulf %164, %137 : vector<4x4xf32>
    %168 = arith.mulf %163, %165 : vector<4x4xf32>
    %169 = arith.addf %167, %168 : vector<4x4xf32>
    %170 = math.tanh %169 : vector<4x4xf32>
    %171 = arith.mulf %166, %170 : vector<4x4xf32>
    %172 = vector.extract_strided_slice %171 {offsets = [0, 0], sizes = [4, 1], strides = [1, 1]} : vector<4x4xf32> to vector<4x1xf32>
    %173 = vector.extract_strided_slice %171 {offsets = [0, 1], sizes = [4, 1], strides = [1, 1]} : vector<4x4xf32> to vector<4x1xf32>
    %174 = vector.extract_strided_slice %171 {offsets = [0, 2], sizes = [4, 1], strides = [1, 1]} : vector<4x4xf32> to vector<4x1xf32>
    %175 = vector.extract_strided_slice %171 {offsets = [0, 3], sizes = [4, 1], strides = [1, 1]} : vector<4x4xf32> to vector<4x1xf32>
    %176 = vector.extract_strided_slice %171 {offsets = [0, 0], sizes = [2, 4], strides = [1, 1]} : vector<4x4xf32> to vector<2x4xf32>
    %177 = vector.extract_strided_slice %171 {offsets = [2, 0], sizes = [2, 4], strides = [1, 1]} : vector<4x4xf32> to vector<2x4xf32>
    %178 = vector.broadcast %172 : vector<4x1xf32> to vector<4x16xf32>
    %179 = arith.mulf %178, %86 : vector<4x16xf32>
    %180 = vector.broadcast %173 : vector<4x1xf32> to vector<4x16xf32>
    %181 = arith.mulf %180, %93 : vector<4x16xf32>
    %182 = arith.addf %179, %181 : vector<4x16xf32>
    %183 = vector.broadcast %174 : vector<4x1xf32> to vector<4x16xf32>
    %184 = arith.mulf %183, %100 : vector<4x16xf32>
    %185 = arith.addf %182, %184 : vector<4x16xf32>
    %186 = vector.broadcast %175 : vector<4x1xf32> to vector<4x16xf32>
    %187 = arith.mulf %186, %107 : vector<4x16xf32>
    %188 = arith.addf %185, %187 : vector<4x16xf32>
    %189 = arith.addf %64, %188 : vector<4x16xf32>
    %190 = math.tanh %189 : vector<4x16xf32>
    %cst_15 = arith.constant 5.000000e-01 : f32
    %191 = vector.broadcast %cst_15 : f32 to vector<4x16xf32>
    %192 = arith.mulf %190, %191 : vector<4x16xf32>
    %cst_16 = arith.constant 5.000000e-01 : f32
    %193 = vector.broadcast %cst_16 : f32 to vector<4x16xf32>
    %194 = arith.addf %192, %193 : vector<4x16xf32>
    %195 = vector.extract_strided_slice %194 {offsets = [0, 0], sizes = [4, 4], strides = [1, 1]} : vector<4x16xf32> to vector<4x4xf32>
    %196 = vector.extract_strided_slice %194 {offsets = [0, 4], sizes = [4, 4], strides = [1, 1]} : vector<4x16xf32> to vector<4x4xf32>
    %197 = vector.extract_strided_slice %190 {offsets = [0, 8], sizes = [4, 4], strides = [1, 1]} : vector<4x16xf32> to vector<4x4xf32>
    %198 = vector.extract_strided_slice %194 {offsets = [0, 12], sizes = [4, 4], strides = [1, 1]} : vector<4x16xf32> to vector<4x4xf32>
    %199 = arith.mulf %196, %169 : vector<4x4xf32>
    %200 = arith.mulf %195, %197 : vector<4x4xf32>
    %201 = arith.addf %199, %200 : vector<4x4xf32>
    %202 = math.tanh %201 : vector<4x4xf32>
    %203 = arith.mulf %198, %202 : vector<4x4xf32>
    %204 = vector.extract_strided_slice %203 {offsets = [0, 0], sizes = [4, 1], strides = [1, 1]} : vector<4x4xf32> to vector<4x1xf32>
    %205 = vector.extract_strided_slice %203 {offsets = [0, 1], sizes = [4, 1], strides = [1, 1]} : vector<4x4xf32> to vector<4x1xf32>
    %206 = vector.extract_strided_slice %203 {offsets = [0, 2], sizes = [4, 1], strides = [1, 1]} : vector<4x4xf32> to vector<4x1xf32>
    %207 = vector.extract_strided_slice %203 {offsets = [0, 3], sizes = [4, 1], strides = [1, 1]} : vector<4x4xf32> to vector<4x1xf32>
    %208 = vector.extract_strided_slice %203 {offsets = [0, 0], sizes = [2, 4], strides = [1, 1]} : vector<4x4xf32> to vector<2x4xf32>
    %209 = vector.extract_strided_slice %203 {offsets = [2, 0], sizes = [2, 4], strides = [1, 1]} : vector<4x4xf32> to vector<2x4xf32>
    %210 = vector.broadcast %204 : vector<4x1xf32> to vector<4x16xf32>
    %211 = arith.mulf %210, %86 : vector<4x16xf32>
    %212 = vector.broadcast %205 : vector<4x1xf32> to vector<4x16xf32>
    %213 = arith.mulf %212, %93 : vector<4x16xf32>
    %214 = arith.addf %211, %213 : vector<4x16xf32>
    %215 = vector.broadcast %206 : vector<4x1xf32> to vector<4x16xf32>
    %216 = arith.mulf %215, %100 : vector<4x16xf32>
    %217 = arith.addf %214, %216 : vector<4x16xf32>
    %218 = vector.broadcast %207 : vector<4x1xf32> to vector<4x16xf32>
    %219 = arith.mulf %218, %107 : vector<4x16xf32>
    %220 = arith.addf %217, %219 : vector<4x16xf32>
    %221 = arith.addf %67, %220 : vector<4x16xf32>
    %222 = math.tanh %221 : vector<4x16xf32>
    %cst_17 = arith.constant 5.000000e-01 : f32
    %223 = vector.broadcast %cst_17 : f32 to vector<4x16xf32>
    %224 = arith.mulf %222, %223 : vector<4x16xf32>
    %cst_18 = arith.constant 5.000000e-01 : f32
    %225 = vector.broadcast %cst_18 : f32 to vector<4x16xf32>
    %226 = arith.addf %224, %225 : vector<4x16xf32>
    %227 = vector.extract_strided_slice %226 {offsets = [0, 0], sizes = [4, 4], strides = [1, 1]} : vector<4x16xf32> to vector<4x4xf32>
    %228 = vector.extract_strided_slice %226 {offsets = [0, 4], sizes = [4, 4], strides = [1, 1]} : vector<4x16xf32> to vector<4x4xf32>
    %229 = vector.extract_strided_slice %222 {offsets = [0, 8], sizes = [4, 4], strides = [1, 1]} : vector<4x16xf32> to vector<4x4xf32>
    %230 = vector.extract_strided_slice %226 {offsets = [0, 12], sizes = [4, 4], strides = [1, 1]} : vector<4x16xf32> to vector<4x4xf32>
    %231 = arith.mulf %228, %201 : vector<4x4xf32>
    %232 = arith.mulf %227, %229 : vector<4x4xf32>
    %233 = arith.addf %231, %232 : vector<4x4xf32>
    %234 = math.tanh %233 : vector<4x4xf32>
    %235 = arith.mulf %230, %234 : vector<4x4xf32>
    %236 = vector.extract_strided_slice %235 {offsets = [0, 0], sizes = [4, 1], strides = [1, 1]} : vector<4x4xf32> to vector<4x1xf32>
    %237 = vector.extract_strided_slice %235 {offsets = [0, 1], sizes = [4, 1], strides = [1, 1]} : vector<4x4xf32> to vector<4x1xf32>
    %238 = vector.extract_strided_slice %235 {offsets = [0, 2], sizes = [4, 1], strides = [1, 1]} : vector<4x4xf32> to vector<4x1xf32>
    %239 = vector.extract_strided_slice %235 {offsets = [0, 3], sizes = [4, 1], strides = [1, 1]} : vector<4x4xf32> to vector<4x1xf32>
    %240 = vector.extract_strided_slice %235 {offsets = [0, 0], sizes = [2, 4], strides = [1, 1]} : vector<4x4xf32> to vector<2x4xf32>
    %241 = vector.extract_strided_slice %235 {offsets = [2, 0], sizes = [2, 4], strides = [1, 1]} : vector<4x4xf32> to vector<2x4xf32>
    %242 = vector.broadcast %236 : vector<4x1xf32> to vector<4x16xf32>
    %243 = arith.mulf %242, %86 : vector<4x16xf32>
    %244 = vector.broadcast %237 : vector<4x1xf32> to vector<4x16xf32>
    %245 = arith.mulf %244, %93 : vector<4x16xf32>
    %246 = arith.addf %243, %245 : vector<4x16xf32>
    %247 = vector.broadcast %238 : vector<4x1xf32> to vector<4x16xf32>
    %248 = arith.mulf %247, %100 : vector<4x16xf32>
    %249 = arith.addf %246, %248 : vector<4x16xf32>
    %250 = vector.broadcast %239 : vector<4x1xf32> to vector<4x16xf32>
    %251 = arith.mulf %250, %107 : vector<4x16xf32>
    %252 = arith.addf %249, %251 : vector<4x16xf32>
    %253 = arith.addf %70, %252 : vector<4x16xf32>
    %254 = math.tanh %253 : vector<4x16xf32>
    %cst_19 = arith.constant 5.000000e-01 : f32
    %255 = vector.broadcast %cst_19 : f32 to vector<4x16xf32>
    %256 = arith.mulf %254, %255 : vector<4x16xf32>
    %cst_20 = arith.constant 5.000000e-01 : f32
    %257 = vector.broadcast %cst_20 : f32 to vector<4x16xf32>
    %258 = arith.addf %256, %257 : vector<4x16xf32>
    %259 = vector.extract_strided_slice %258 {offsets = [0, 0], sizes = [4, 4], strides = [1, 1]} : vector<4x16xf32> to vector<4x4xf32>
    %260 = vector.extract_strided_slice %258 {offsets = [0, 4], sizes = [4, 4], strides = [1, 1]} : vector<4x16xf32> to vector<4x4xf32>
    %261 = vector.extract_strided_slice %254 {offsets = [0, 8], sizes = [4, 4], strides = [1, 1]} : vector<4x16xf32> to vector<4x4xf32>
    %262 = vector.extract_strided_slice %258 {offsets = [0, 12], sizes = [4, 4], strides = [1, 1]} : vector<4x16xf32> to vector<4x4xf32>
    %263 = arith.mulf %260, %233 : vector<4x4xf32>
    %264 = arith.mulf %259, %261 : vector<4x4xf32>
    %265 = arith.addf %263, %264 : vector<4x4xf32>
    %266 = math.tanh %265 : vector<4x4xf32>
    %267 = arith.mulf %262, %266 : vector<4x4xf32>
    %268 = vector.extract_strided_slice %267 {offsets = [0, 0], sizes = [4, 1], strides = [1, 1]} : vector<4x4xf32> to vector<4x1xf32>
    %269 = vector.extract_strided_slice %267 {offsets = [0, 1], sizes = [4, 1], strides = [1, 1]} : vector<4x4xf32> to vector<4x1xf32>
    %270 = vector.extract_strided_slice %267 {offsets = [0, 2], sizes = [4, 1], strides = [1, 1]} : vector<4x4xf32> to vector<4x1xf32>
    %271 = vector.extract_strided_slice %267 {offsets = [0, 3], sizes = [4, 1], strides = [1, 1]} : vector<4x4xf32> to vector<4x1xf32>
    %272 = vector.extract_strided_slice %267 {offsets = [0, 0], sizes = [2, 4], strides = [1, 1]} : vector<4x4xf32> to vector<2x4xf32>
    %273 = vector.extract_strided_slice %267 {offsets = [2, 0], sizes = [2, 4], strides = [1, 1]} : vector<4x4xf32> to vector<2x4xf32>
    %274 = vector.broadcast %268 : vector<4x1xf32> to vector<4x16xf32>
    %275 = arith.mulf %274, %86 : vector<4x16xf32>
    %276 = vector.broadcast %269 : vector<4x1xf32> to vector<4x16xf32>
    %277 = arith.mulf %276, %93 : vector<4x16xf32>
    %278 = arith.addf %275, %277 : vector<4x16xf32>
    %279 = vector.broadcast %270 : vector<4x1xf32> to vector<4x16xf32>
    %280 = arith.mulf %279, %100 : vector<4x16xf32>
    %281 = arith.addf %278, %280 : vector<4x16xf32>
    %282 = vector.broadcast %271 : vector<4x1xf32> to vector<4x16xf32>
    %283 = arith.mulf %282, %107 : vector<4x16xf32>
    %284 = arith.addf %281, %283 : vector<4x16xf32>
    %285 = arith.addf %73, %284 : vector<4x16xf32>
    %286 = math.tanh %285 : vector<4x16xf32>
    %cst_21 = arith.constant 5.000000e-01 : f32
    %287 = vector.broadcast %cst_21 : f32 to vector<4x16xf32>
    %288 = arith.mulf %286, %287 : vector<4x16xf32>
    %cst_22 = arith.constant 5.000000e-01 : f32
    %289 = vector.broadcast %cst_22 : f32 to vector<4x16xf32>
    %290 = arith.addf %288, %289 : vector<4x16xf32>
    %291 = vector.extract_strided_slice %290 {offsets = [0, 0], sizes = [4, 4], strides = [1, 1]} : vector<4x16xf32> to vector<4x4xf32>
    %292 = vector.extract_strided_slice %290 {offsets = [0, 4], sizes = [4, 4], strides = [1, 1]} : vector<4x16xf32> to vector<4x4xf32>
    %293 = vector.extract_strided_slice %286 {offsets = [0, 8], sizes = [4, 4], strides = [1, 1]} : vector<4x16xf32> to vector<4x4xf32>
    %294 = vector.extract_strided_slice %290 {offsets = [0, 12], sizes = [4, 4], strides = [1, 1]} : vector<4x16xf32> to vector<4x4xf32>
    %295 = arith.mulf %292, %265 : vector<4x4xf32>
    %296 = arith.mulf %291, %293 : vector<4x4xf32>
    %297 = arith.addf %295, %296 : vector<4x4xf32>
    %298 = math.tanh %297 : vector<4x4xf32>
    %299 = arith.mulf %294, %298 : vector<4x4xf32>
    %300 = vector.extract_strided_slice %299 {offsets = [0, 0], sizes = [4, 1], strides = [1, 1]} : vector<4x4xf32> to vector<4x1xf32>
    %301 = vector.extract_strided_slice %299 {offsets = [0, 1], sizes = [4, 1], strides = [1, 1]} : vector<4x4xf32> to vector<4x1xf32>
    %302 = vector.extract_strided_slice %299 {offsets = [0, 2], sizes = [4, 1], strides = [1, 1]} : vector<4x4xf32> to vector<4x1xf32>
    %303 = vector.extract_strided_slice %299 {offsets = [0, 3], sizes = [4, 1], strides = [1, 1]} : vector<4x4xf32> to vector<4x1xf32>
    %304 = vector.extract_strided_slice %299 {offsets = [0, 0], sizes = [2, 4], strides = [1, 1]} : vector<4x4xf32> to vector<2x4xf32>
    %305 = vector.extract_strided_slice %299 {offsets = [2, 0], sizes = [2, 4], strides = [1, 1]} : vector<4x4xf32> to vector<2x4xf32>
    %306 = vector.broadcast %300 : vector<4x1xf32> to vector<4x16xf32>
    %307 = arith.mulf %306, %86 : vector<4x16xf32>
    %308 = vector.broadcast %301 : vector<4x1xf32> to vector<4x16xf32>
    %309 = arith.mulf %308, %93 : vector<4x16xf32>
    %310 = arith.addf %307, %309 : vector<4x16xf32>
    %311 = vector.broadcast %302 : vector<4x1xf32> to vector<4x16xf32>
    %312 = arith.mulf %311, %100 : vector<4x16xf32>
    %313 = arith.addf %310, %312 : vector<4x16xf32>
    %314 = vector.broadcast %303 : vector<4x1xf32> to vector<4x16xf32>
    %315 = arith.mulf %314, %107 : vector<4x16xf32>
    %316 = arith.addf %313, %315 : vector<4x16xf32>
    %317 = arith.addf %76, %316 : vector<4x16xf32>
    %318 = math.tanh %317 : vector<4x16xf32>
    %cst_23 = arith.constant 5.000000e-01 : f32
    %319 = vector.broadcast %cst_23 : f32 to vector<4x16xf32>
    %320 = arith.mulf %318, %319 : vector<4x16xf32>
    %cst_24 = arith.constant 5.000000e-01 : f32
    %321 = vector.broadcast %cst_24 : f32 to vector<4x16xf32>
    %322 = arith.addf %320, %321 : vector<4x16xf32>
    %323 = vector.extract_strided_slice %322 {offsets = [0, 0], sizes = [4, 4], strides = [1, 1]} : vector<4x16xf32> to vector<4x4xf32>
    %324 = vector.extract_strided_slice %322 {offsets = [0, 4], sizes = [4, 4], strides = [1, 1]} : vector<4x16xf32> to vector<4x4xf32>
    %325 = vector.extract_strided_slice %318 {offsets = [0, 8], sizes = [4, 4], strides = [1, 1]} : vector<4x16xf32> to vector<4x4xf32>
    %326 = vector.extract_strided_slice %322 {offsets = [0, 12], sizes = [4, 4], strides = [1, 1]} : vector<4x16xf32> to vector<4x4xf32>
    %327 = arith.mulf %324, %297 : vector<4x4xf32>
    %328 = arith.mulf %323, %325 : vector<4x4xf32>
    %329 = arith.addf %327, %328 : vector<4x4xf32>
    %330 = math.tanh %329 : vector<4x4xf32>
    %331 = arith.mulf %326, %330 : vector<4x4xf32>
    %332 = vector.extract_strided_slice %331 {offsets = [0, 0], sizes = [4, 1], strides = [1, 1]} : vector<4x4xf32> to vector<4x1xf32>
    %333 = vector.extract_strided_slice %331 {offsets = [0, 1], sizes = [4, 1], strides = [1, 1]} : vector<4x4xf32> to vector<4x1xf32>
    %334 = vector.extract_strided_slice %331 {offsets = [0, 2], sizes = [4, 1], strides = [1, 1]} : vector<4x4xf32> to vector<4x1xf32>
    %335 = vector.extract_strided_slice %331 {offsets = [0, 3], sizes = [4, 1], strides = [1, 1]} : vector<4x4xf32> to vector<4x1xf32>
    %336 = vector.extract_strided_slice %331 {offsets = [0, 0], sizes = [2, 4], strides = [1, 1]} : vector<4x4xf32> to vector<2x4xf32>
    %337 = vector.extract_strided_slice %331 {offsets = [2, 0], sizes = [2, 4], strides = [1, 1]} : vector<4x4xf32> to vector<2x4xf32>
    %338 = vector.broadcast %332 : vector<4x1xf32> to vector<4x16xf32>
    %339 = arith.mulf %338, %86 : vector<4x16xf32>
    %340 = vector.broadcast %333 : vector<4x1xf32> to vector<4x16xf32>
    %341 = arith.mulf %340, %93 : vector<4x16xf32>
    %342 = arith.addf %339, %341 : vector<4x16xf32>
    %343 = vector.broadcast %334 : vector<4x1xf32> to vector<4x16xf32>
    %344 = arith.mulf %343, %100 : vector<4x16xf32>
    %345 = arith.addf %342, %344 : vector<4x16xf32>
    %346 = vector.broadcast %335 : vector<4x1xf32> to vector<4x16xf32>
    %347 = arith.mulf %346, %107 : vector<4x16xf32>
    %348 = arith.addf %345, %347 : vector<4x16xf32>
    %349 = arith.addf %79, %348 : vector<4x16xf32>
    %350 = math.tanh %349 : vector<4x16xf32>
    %cst_25 = arith.constant 5.000000e-01 : f32
    %351 = vector.broadcast %cst_25 : f32 to vector<4x16xf32>
    %352 = arith.mulf %350, %351 : vector<4x16xf32>
    %cst_26 = arith.constant 5.000000e-01 : f32
    %353 = vector.broadcast %cst_26 : f32 to vector<4x16xf32>
    %354 = arith.addf %352, %353 : vector<4x16xf32>
    %355 = vector.extract_strided_slice %354 {offsets = [0, 0], sizes = [4, 4], strides = [1, 1]} : vector<4x16xf32> to vector<4x4xf32>
    %356 = vector.extract_strided_slice %354 {offsets = [0, 4], sizes = [4, 4], strides = [1, 1]} : vector<4x16xf32> to vector<4x4xf32>
    %357 = vector.extract_strided_slice %350 {offsets = [0, 8], sizes = [4, 4], strides = [1, 1]} : vector<4x16xf32> to vector<4x4xf32>
    %358 = vector.extract_strided_slice %354 {offsets = [0, 12], sizes = [4, 4], strides = [1, 1]} : vector<4x16xf32> to vector<4x4xf32>
    %359 = arith.mulf %356, %329 : vector<4x4xf32>
    %360 = arith.mulf %355, %357 : vector<4x4xf32>
    %361 = arith.addf %359, %360 : vector<4x4xf32>
    %362 = math.tanh %361 : vector<4x4xf32>
    %363 = arith.mulf %358, %362 : vector<4x4xf32>
    %364 = vector.extract_strided_slice %363 {offsets = [0, 0], sizes = [2, 4], strides = [1, 1]} : vector<4x4xf32> to vector<2x4xf32>
    %365 = vector.extract_strided_slice %363 {offsets = [2, 0], sizes = [2, 4], strides = [1, 1]} : vector<4x4xf32> to vector<2x4xf32>
    %366 = tpu.concatenate %144, %365 in 1 : vector<2x4xf32>, vector<2x4xf32> -> vector<2x8xf32>
    %367 = tpu.concatenate %176, %337 in 1 : vector<2x4xf32>, vector<2x4xf32> -> vector<2x8xf32>
    %368 = tpu.concatenate %208, %305 in 1 : vector<2x4xf32>, vector<2x4xf32> -> vector<2x8xf32>
    %369 = tpu.concatenate %240, %273 in 1 : vector<2x4xf32>, vector<2x4xf32> -> vector<2x8xf32>
    %370 = tpu.concatenate %272, %241 in 1 : vector<2x4xf32>, vector<2x4xf32> -> vector<2x8xf32>
    %371 = tpu.concatenate %304, %209 in 1 : vector<2x4xf32>, vector<2x4xf32> -> vector<2x8xf32>
    %372 = tpu.concatenate %336, %177 in 1 : vector<2x4xf32>, vector<2x4xf32> -> vector<2x8xf32>
    %373 = tpu.concatenate %364, %145 in 1 : vector<2x4xf32>, vector<2x4xf32> -> vector<2x8xf32>
    %374 = tpu.concatenate %366, %367, %368, %369, %370, %371, %372, %373 in 0 : vector<2x8xf32>, vector<2x8xf32>, vector<2x8xf32>, vector<2x8xf32>, vector<2x8xf32>, vector<2x8xf32>, vector<2x8xf32>, vector<2x8xf32> -> vector<16x8xf32>
    %c1 = arith.constant 1 : index
    %c0_27 = arith.constant 0 : index
    %c0_28 = arith.constant 0 : index
    %375 = vector.load %arg1[%c1, %c0_27, %c0_28] : memref<5x8x32xf32, #tpu.memory_space<vmem>>, vector<1x8x32xf32>
    %376 = vector.shape_cast %375 : vector<1x8x32xf32> to vector<8x32xf32>
    %c1_29 = arith.constant 1 : index
    %c0_30 = arith.constant 0 : index
    %c0_31 = arith.constant 0 : index
    %377 = vector.load %arg2[%c1_29, %c0_30, %c0_31] : memref<5x4x32xf32, #tpu.memory_space<vmem>>, vector<1x4x32xf32>
    %378 = vector.shape_cast %377 : vector<1x4x32xf32> to vector<4x32xf32>
    %c1_32 = arith.constant 1 : index
    %c0_33 = arith.constant 0 : index
    %c0_34 = arith.constant 0 : index
    %379 = vector.load %arg3[%c1_32, %c0_33, %c0_34] : memref<5x1x32xf32, #tpu.memory_space<vmem>>, vector<1x1x32xf32>
    %380 = vector.shape_cast %379 : vector<1x1x32xf32> to vector<1x32xf32>
    %cst_35 = arith.constant dense<0.000000e+00> : vector<16x32xf32>
    %381 = tpu.matmul %374, %376, %cst_35 {dimension_numbers = #tpu.dot_dimension_numbers<[1], [0], [0], [1], [0, 0, 1, 1], [], []>} : vector<16x8xf32>, vector<8x32xf32>, vector<16x32xf32> -> vector<16x32xf32>
    %382 = vector.broadcast %380 : vector<1x32xf32> to vector<16x32xf32>
    %383 = arith.addf %381, %382 : vector<16x32xf32>
    %384 = vector.extract_strided_slice %383 {offsets = [0, 0], sizes = [2, 32], strides = [1, 1]} : vector<16x32xf32> to vector<2x32xf32>
    %385 = vector.extract_strided_slice %383 {offsets = [2, 0], sizes = [2, 32], strides = [1, 1]} : vector<16x32xf32> to vector<2x32xf32>
    %386 = vector.extract_strided_slice %383 {offsets = [4, 0], sizes = [2, 32], strides = [1, 1]} : vector<16x32xf32> to vector<2x32xf32>
    %387 = vector.extract_strided_slice %383 {offsets = [6, 0], sizes = [2, 32], strides = [1, 1]} : vector<16x32xf32> to vector<2x32xf32>
    %388 = vector.extract_strided_slice %383 {offsets = [8, 0], sizes = [2, 32], strides = [1, 1]} : vector<16x32xf32> to vector<2x32xf32>
    %389 = vector.extract_strided_slice %383 {offsets = [10, 0], sizes = [2, 32], strides = [1, 1]} : vector<16x32xf32> to vector<2x32xf32>
    %390 = vector.extract_strided_slice %383 {offsets = [12, 0], sizes = [2, 32], strides = [1, 1]} : vector<16x32xf32> to vector<2x32xf32>
    %391 = vector.extract_strided_slice %383 {offsets = [14, 0], sizes = [2, 32], strides = [1, 1]} : vector<16x32xf32> to vector<2x32xf32>
    %392 = vector.extract_strided_slice %384 {offsets = [0, 0], sizes = [2, 16], strides = [1, 1]} : vector<2x32xf32> to vector<2x16xf32>
    %393 = vector.extract_strided_slice %391 {offsets = [0, 16], sizes = [2, 16], strides = [1, 1]} : vector<2x32xf32> to vector<2x16xf32>
    %394 = tpu.concatenate %392, %393 in 0 : vector<2x16xf32>, vector<2x16xf32> -> vector<4x16xf32>
    %395 = vector.extract_strided_slice %385 {offsets = [0, 0], sizes = [2, 16], strides = [1, 1]} : vector<2x32xf32> to vector<2x16xf32>
    %396 = vector.extract_strided_slice %390 {offsets = [0, 16], sizes = [2, 16], strides = [1, 1]} : vector<2x32xf32> to vector<2x16xf32>
    %397 = tpu.concatenate %395, %396 in 0 : vector<2x16xf32>, vector<2x16xf32> -> vector<4x16xf32>
    %398 = vector.extract_strided_slice %386 {offsets = [0, 0], sizes = [2, 16], strides = [1, 1]} : vector<2x32xf32> to vector<2x16xf32>
    %399 = vector.extract_strided_slice %389 {offsets = [0, 16], sizes = [2, 16], strides = [1, 1]} : vector<2x32xf32> to vector<2x16xf32>
    %400 = tpu.concatenate %398, %399 in 0 : vector<2x16xf32>, vector<2x16xf32> -> vector<4x16xf32>
    %401 = vector.extract_strided_slice %387 {offsets = [0, 0], sizes = [2, 16], strides = [1, 1]} : vector<2x32xf32> to vector<2x16xf32>
    %402 = vector.extract_strided_slice %388 {offsets = [0, 16], sizes = [2, 16], strides = [1, 1]} : vector<2x32xf32> to vector<2x16xf32>
    %403 = tpu.concatenate %401, %402 in 0 : vector<2x16xf32>, vector<2x16xf32> -> vector<4x16xf32>
    %404 = vector.extract_strided_slice %388 {offsets = [0, 0], sizes = [2, 16], strides = [1, 1]} : vector<2x32xf32> to vector<2x16xf32>
    %405 = vector.extract_strided_slice %387 {offsets = [0, 16], sizes = [2, 16], strides = [1, 1]} : vector<2x32xf32> to vector<2x16xf32>
    %406 = tpu.concatenate %404, %405 in 0 : vector<2x16xf32>, vector<2x16xf32> -> vector<4x16xf32>
    %407 = vector.extract_strided_slice %389 {offsets = [0, 0], sizes = [2, 16], strides = [1, 1]} : vector<2x32xf32> to vector<2x16xf32>
    %408 = vector.extract_strided_slice %386 {offsets = [0, 16], sizes = [2, 16], strides = [1, 1]} : vector<2x32xf32> to vector<2x16xf32>
    %409 = tpu.concatenate %407, %408 in 0 : vector<2x16xf32>, vector<2x16xf32> -> vector<4x16xf32>
    %410 = vector.extract_strided_slice %390 {offsets = [0, 0], sizes = [2, 16], strides = [1, 1]} : vector<2x32xf32> to vector<2x16xf32>
    %411 = vector.extract_strided_slice %385 {offsets = [0, 16], sizes = [2, 16], strides = [1, 1]} : vector<2x32xf32> to vector<2x16xf32>
    %412 = tpu.concatenate %410, %411 in 0 : vector<2x16xf32>, vector<2x16xf32> -> vector<4x16xf32>
    %413 = vector.extract_strided_slice %391 {offsets = [0, 0], sizes = [2, 16], strides = [1, 1]} : vector<2x32xf32> to vector<2x16xf32>
    %414 = vector.extract_strided_slice %384 {offsets = [0, 16], sizes = [2, 16], strides = [1, 1]} : vector<2x32xf32> to vector<2x16xf32>
    %415 = tpu.concatenate %413, %414 in 0 : vector<2x16xf32>, vector<2x16xf32> -> vector<4x16xf32>
    %416 = vector.extract_strided_slice %378 {offsets = [0, 0], sizes = [1, 16], strides = [1, 1]} : vector<4x32xf32> to vector<1x16xf32>
    %417 = vector.shape_cast %416 : vector<1x16xf32> to vector<1x16xf32>
    %418 = vector.broadcast %417 : vector<1x16xf32> to vector<2x16xf32>
    %419 = vector.extract_strided_slice %378 {offsets = [0, 16], sizes = [1, 16], strides = [1, 1]} : vector<4x32xf32> to vector<1x16xf32>
    %420 = vector.shape_cast %419 : vector<1x16xf32> to vector<1x16xf32>
    %421 = vector.broadcast %420 : vector<1x16xf32> to vector<2x16xf32>
    %422 = tpu.concatenate %418, %421 in 0 : vector<2x16xf32>, vector<2x16xf32> -> vector<4x16xf32>
    %423 = vector.extract_strided_slice %378 {offsets = [1, 0], sizes = [1, 16], strides = [1, 1]} : vector<4x32xf32> to vector<1x16xf32>
    %424 = vector.shape_cast %423 : vector<1x16xf32> to vector<1x16xf32>
    %425 = vector.broadcast %424 : vector<1x16xf32> to vector<2x16xf32>
    %426 = vector.extract_strided_slice %378 {offsets = [1, 16], sizes = [1, 16], strides = [1, 1]} : vector<4x32xf32> to vector<1x16xf32>
    %427 = vector.shape_cast %426 : vector<1x16xf32> to vector<1x16xf32>
    %428 = vector.broadcast %427 : vector<1x16xf32> to vector<2x16xf32>
    %429 = tpu.concatenate %425, %428 in 0 : vector<2x16xf32>, vector<2x16xf32> -> vector<4x16xf32>
    %430 = vector.extract_strided_slice %378 {offsets = [2, 0], sizes = [1, 16], strides = [1, 1]} : vector<4x32xf32> to vector<1x16xf32>
    %431 = vector.shape_cast %430 : vector<1x16xf32> to vector<1x16xf32>
    %432 = vector.broadcast %431 : vector<1x16xf32> to vector<2x16xf32>
    %433 = vector.extract_strided_slice %378 {offsets = [2, 16], sizes = [1, 16], strides = [1, 1]} : vector<4x32xf32> to vector<1x16xf32>
    %434 = vector.shape_cast %433 : vector<1x16xf32> to vector<1x16xf32>
    %435 = vector.broadcast %434 : vector<1x16xf32> to vector<2x16xf32>
    %436 = tpu.concatenate %432, %435 in 0 : vector<2x16xf32>, vector<2x16xf32> -> vector<4x16xf32>
    %437 = vector.extract_strided_slice %378 {offsets = [3, 0], sizes = [1, 16], strides = [1, 1]} : vector<4x32xf32> to vector<1x16xf32>
    %438 = vector.shape_cast %437 : vector<1x16xf32> to vector<1x16xf32>
    %439 = vector.broadcast %438 : vector<1x16xf32> to vector<2x16xf32>
    %440 = vector.extract_strided_slice %378 {offsets = [3, 16], sizes = [1, 16], strides = [1, 1]} : vector<4x32xf32> to vector<1x16xf32>
    %441 = vector.shape_cast %440 : vector<1x16xf32> to vector<1x16xf32>
    %442 = vector.broadcast %441 : vector<1x16xf32> to vector<2x16xf32>
    %443 = tpu.concatenate %439, %442 in 0 : vector<2x16xf32>, vector<2x16xf32> -> vector<4x16xf32>
    %cst_36 = arith.constant 0.000000e+00 : f32
    %444 = vector.broadcast %cst_36 : f32 to vector<4x4xf32>
    %cst_37 = arith.constant 0.000000e+00 : f32
    %445 = vector.broadcast %cst_37 : f32 to vector<4x4xf32>
    %446 = vector.extract_strided_slice %444 {offsets = [0, 0], sizes = [4, 1], strides = [1, 1]} : vector<4x4xf32> to vector<4x1xf32>
    %447 = vector.extract_strided_slice %444 {offsets = [0, 1], sizes = [4, 1], strides = [1, 1]} : vector<4x4xf32> to vector<4x1xf32>
    %448 = vector.extract_strided_slice %444 {offsets = [0, 2], sizes = [4, 1], strides = [1, 1]} : vector<4x4xf32> to vector<4x1xf32>
    %449 = vector.extract_strided_slice %444 {offsets = [0, 3], sizes = [4, 1], strides = [1, 1]} : vector<4x4xf32> to vector<4x1xf32>
    %450 = vector.broadcast %446 : vector<4x1xf32> to vector<4x16xf32>
    %451 = arith.mulf %450, %422 : vector<4x16xf32>
    %452 = vector.broadcast %447 : vector<4x1xf32> to vector<4x16xf32>
    %453 = arith.mulf %452, %429 : vector<4x16xf32>
    %454 = arith.addf %451, %453 : vector<4x16xf32>
    %455 = vector.broadcast %448 : vector<4x1xf32> to vector<4x16xf32>
    %456 = arith.mulf %455, %436 : vector<4x16xf32>
    %457 = arith.addf %454, %456 : vector<4x16xf32>
    %458 = vector.broadcast %449 : vector<4x1xf32> to vector<4x16xf32>
    %459 = arith.mulf %458, %443 : vector<4x16xf32>
    %460 = arith.addf %457, %459 : vector<4x16xf32>
    %461 = arith.addf %394, %460 : vector<4x16xf32>
    %462 = math.tanh %461 : vector<4x16xf32>
    %cst_38 = arith.constant 5.000000e-01 : f32
    %463 = vector.broadcast %cst_38 : f32 to vector<4x16xf32>
    %464 = arith.mulf %462, %463 : vector<4x16xf32>
    %cst_39 = arith.constant 5.000000e-01 : f32
    %465 = vector.broadcast %cst_39 : f32 to vector<4x16xf32>
    %466 = arith.addf %464, %465 : vector<4x16xf32>
    %467 = vector.extract_strided_slice %466 {offsets = [0, 0], sizes = [4, 4], strides = [1, 1]} : vector<4x16xf32> to vector<4x4xf32>
    %468 = vector.extract_strided_slice %466 {offsets = [0, 4], sizes = [4, 4], strides = [1, 1]} : vector<4x16xf32> to vector<4x4xf32>
    %469 = vector.extract_strided_slice %462 {offsets = [0, 8], sizes = [4, 4], strides = [1, 1]} : vector<4x16xf32> to vector<4x4xf32>
    %470 = vector.extract_strided_slice %466 {offsets = [0, 12], sizes = [4, 4], strides = [1, 1]} : vector<4x16xf32> to vector<4x4xf32>
    %471 = arith.mulf %468, %445 : vector<4x4xf32>
    %472 = arith.mulf %467, %469 : vector<4x4xf32>
    %473 = arith.addf %471, %472 : vector<4x4xf32>
    %474 = math.tanh %473 : vector<4x4xf32>
    %475 = arith.mulf %470, %474 : vector<4x4xf32>
    %476 = vector.extract_strided_slice %475 {offsets = [0, 0], sizes = [4, 1], strides = [1, 1]} : vector<4x4xf32> to vector<4x1xf32>
    %477 = vector.extract_strided_slice %475 {offsets = [0, 1], sizes = [4, 1], strides = [1, 1]} : vector<4x4xf32> to vector<4x1xf32>
    %478 = vector.extract_strided_slice %475 {offsets = [0, 2], sizes = [4, 1], strides = [1, 1]} : vector<4x4xf32> to vector<4x1xf32>
    %479 = vector.extract_strided_slice %475 {offsets = [0, 3], sizes = [4, 1], strides = [1, 1]} : vector<4x4xf32> to vector<4x1xf32>
    %480 = vector.extract_strided_slice %475 {offsets = [0, 0], sizes = [2, 4], strides = [1, 1]} : vector<4x4xf32> to vector<2x4xf32>
    %481 = vector.extract_strided_slice %475 {offsets = [2, 0], sizes = [2, 4], strides = [1, 1]} : vector<4x4xf32> to vector<2x4xf32>
    %482 = vector.broadcast %476 : vector<4x1xf32> to vector<4x16xf32>
    %483 = arith.mulf %482, %422 : vector<4x16xf32>
    %484 = vector.broadcast %477 : vector<4x1xf32> to vector<4x16xf32>
    %485 = arith.mulf %484, %429 : vector<4x16xf32>
    %486 = arith.addf %483, %485 : vector<4x16xf32>
    %487 = vector.broadcast %478 : vector<4x1xf32> to vector<4x16xf32>
    %488 = arith.mulf %487, %436 : vector<4x16xf32>
    %489 = arith.addf %486, %488 : vector<4x16xf32>
    %490 = vector.broadcast %479 : vector<4x1xf32> to vector<4x16xf32>
    %491 = arith.mulf %490, %443 : vector<4x16xf32>
    %492 = arith.addf %489, %491 : vector<4x16xf32>
    %493 = arith.addf %397, %492 : vector<4x16xf32>
    %494 = math.tanh %493 : vector<4x16xf32>
    %cst_40 = arith.constant 5.000000e-01 : f32
    %495 = vector.broadcast %cst_40 : f32 to vector<4x16xf32>
    %496 = arith.mulf %494, %495 : vector<4x16xf32>
    %cst_41 = arith.constant 5.000000e-01 : f32
    %497 = vector.broadcast %cst_41 : f32 to vector<4x16xf32>
    %498 = arith.addf %496, %497 : vector<4x16xf32>
    %499 = vector.extract_strided_slice %498 {offsets = [0, 0], sizes = [4, 4], strides = [1, 1]} : vector<4x16xf32> to vector<4x4xf32>
    %500 = vector.extract_strided_slice %498 {offsets = [0, 4], sizes = [4, 4], strides = [1, 1]} : vector<4x16xf32> to vector<4x4xf32>
    %501 = vector.extract_strided_slice %494 {offsets = [0, 8], sizes = [4, 4], strides = [1, 1]} : vector<4x16xf32> to vector<4x4xf32>
    %502 = vector.extract_strided_slice %498 {offsets = [0, 12], sizes = [4, 4], strides = [1, 1]} : vector<4x16xf32> to vector<4x4xf32>
    %503 = arith.mulf %500, %473 : vector<4x4xf32>
    %504 = arith.mulf %499, %501 : vector<4x4xf32>
    %505 = arith.addf %503, %504 : vector<4x4xf32>
    %506 = math.tanh %505 : vector<4x4xf32>
    %507 = arith.mulf %502, %506 : vector<4x4xf32>
    %508 = vector.extract_strided_slice %507 {offsets = [0, 0], sizes = [4, 1], strides = [1, 1]} : vector<4x4xf32> to vector<4x1xf32>
    %509 = vector.extract_strided_slice %507 {offsets = [0, 1], sizes = [4, 1], strides = [1, 1]} : vector<4x4xf32> to vector<4x1xf32>
    %510 = vector.extract_strided_slice %507 {offsets = [0, 2], sizes = [4, 1], strides = [1, 1]} : vector<4x4xf32> to vector<4x1xf32>
    %511 = vector.extract_strided_slice %507 {offsets = [0, 3], sizes = [4, 1], strides = [1, 1]} : vector<4x4xf32> to vector<4x1xf32>
    %512 = vector.extract_strided_slice %507 {offsets = [0, 0], sizes = [2, 4], strides = [1, 1]} : vector<4x4xf32> to vector<2x4xf32>
    %513 = vector.extract_strided_slice %507 {offsets = [2, 0], sizes = [2, 4], strides = [1, 1]} : vector<4x4xf32> to vector<2x4xf32>
    %514 = vector.broadcast %508 : vector<4x1xf32> to vector<4x16xf32>
    %515 = arith.mulf %514, %422 : vector<4x16xf32>
    %516 = vector.broadcast %509 : vector<4x1xf32> to vector<4x16xf32>
    %517 = arith.mulf %516, %429 : vector<4x16xf32>
    %518 = arith.addf %515, %517 : vector<4x16xf32>
    %519 = vector.broadcast %510 : vector<4x1xf32> to vector<4x16xf32>
    %520 = arith.mulf %519, %436 : vector<4x16xf32>
    %521 = arith.addf %518, %520 : vector<4x16xf32>
    %522 = vector.broadcast %511 : vector<4x1xf32> to vector<4x16xf32>
    %523 = arith.mulf %522, %443 : vector<4x16xf32>
    %524 = arith.addf %521, %523 : vector<4x16xf32>
    %525 = arith.addf %400, %524 : vector<4x16xf32>
    %526 = math.tanh %525 : vector<4x16xf32>
    %cst_42 = arith.constant 5.000000e-01 : f32
    %527 = vector.broadcast %cst_42 : f32 to vector<4x16xf32>
    %528 = arith.mulf %526, %527 : vector<4x16xf32>
    %cst_43 = arith.constant 5.000000e-01 : f32
    %529 = vector.broadcast %cst_43 : f32 to vector<4x16xf32>
    %530 = arith.addf %528, %529 : vector<4x16xf32>
    %531 = vector.extract_strided_slice %530 {offsets = [0, 0], sizes = [4, 4], strides = [1, 1]} : vector<4x16xf32> to vector<4x4xf32>
    %532 = vector.extract_strided_slice %530 {offsets = [0, 4], sizes = [4, 4], strides = [1, 1]} : vector<4x16xf32> to vector<4x4xf32>
    %533 = vector.extract_strided_slice %526 {offsets = [0, 8], sizes = [4, 4], strides = [1, 1]} : vector<4x16xf32> to vector<4x4xf32>
    %534 = vector.extract_strided_slice %530 {offsets = [0, 12], sizes = [4, 4], strides = [1, 1]} : vector<4x16xf32> to vector<4x4xf32>
    %535 = arith.mulf %532, %505 : vector<4x4xf32>
    %536 = arith.mulf %531, %533 : vector<4x4xf32>
    %537 = arith.addf %535, %536 : vector<4x4xf32>
    %538 = math.tanh %537 : vector<4x4xf32>
    %539 = arith.mulf %534, %538 : vector<4x4xf32>
    %540 = vector.extract_strided_slice %539 {offsets = [0, 0], sizes = [4, 1], strides = [1, 1]} : vector<4x4xf32> to vector<4x1xf32>
    %541 = vector.extract_strided_slice %539 {offsets = [0, 1], sizes = [4, 1], strides = [1, 1]} : vector<4x4xf32> to vector<4x1xf32>
    %542 = vector.extract_strided_slice %539 {offsets = [0, 2], sizes = [4, 1], strides = [1, 1]} : vector<4x4xf32> to vector<4x1xf32>
    %543 = vector.extract_strided_slice %539 {offsets = [0, 3], sizes = [4, 1], strides = [1, 1]} : vector<4x4xf32> to vector<4x1xf32>
    %544 = vector.extract_strided_slice %539 {offsets = [0, 0], sizes = [2, 4], strides = [1, 1]} : vector<4x4xf32> to vector<2x4xf32>
    %545 = vector.extract_strided_slice %539 {offsets = [2, 0], sizes = [2, 4], strides = [1, 1]} : vector<4x4xf32> to vector<2x4xf32>
    %546 = vector.broadcast %540 : vector<4x1xf32> to vector<4x16xf32>
    %547 = arith.mulf %546, %422 : vector<4x16xf32>
    %548 = vector.broadcast %541 : vector<4x1xf32> to vector<4x16xf32>
    %549 = arith.mulf %548, %429 : vector<4x16xf32>
    %550 = arith.addf %547, %549 : vector<4x16xf32>
    %551 = vector.broadcast %542 : vector<4x1xf32> to vector<4x16xf32>
    %552 = arith.mulf %551, %436 : vector<4x16xf32>
    %553 = arith.addf %550, %552 : vector<4x16xf32>
    %554 = vector.broadcast %543 : vector<4x1xf32> to vector<4x16xf32>
    %555 = arith.mulf %554, %443 : vector<4x16xf32>
    %556 = arith.addf %553, %555 : vector<4x16xf32>
    %557 = arith.addf %403, %556 : vector<4x16xf32>
    %558 = math.tanh %557 : vector<4x16xf32>
    %cst_44 = arith.constant 5.000000e-01 : f32
    %559 = vector.broadcast %cst_44 : f32 to vector<4x16xf32>
    %560 = arith.mulf %558, %559 : vector<4x16xf32>
    %cst_45 = arith.constant 5.000000e-01 : f32
    %561 = vector.broadcast %cst_45 : f32 to vector<4x16xf32>
    %562 = arith.addf %560, %561 : vector<4x16xf32>
    %563 = vector.extract_strided_slice %562 {offsets = [0, 0], sizes = [4, 4], strides = [1, 1]} : vector<4x16xf32> to vector<4x4xf32>
    %564 = vector.extract_strided_slice %562 {offsets = [0, 4], sizes = [4, 4], strides = [1, 1]} : vector<4x16xf32> to vector<4x4xf32>
    %565 = vector.extract_strided_slice %558 {offsets = [0, 8], sizes = [4, 4], strides = [1, 1]} : vector<4x16xf32> to vector<4x4xf32>
    %566 = vector.extract_strided_slice %562 {offsets = [0, 12], sizes = [4, 4], strides = [1, 1]} : vector<4x16xf32> to vector<4x4xf32>
    %567 = arith.mulf %564, %537 : vector<4x4xf32>
    %568 = arith.mulf %563, %565 : vector<4x4xf32>
    %569 = arith.addf %567, %568 : vector<4x4xf32>
    %570 = math.tanh %569 : vector<4x4xf32>
    %571 = arith.mulf %566, %570 : vector<4x4xf32>
    %572 = vector.extract_strided_slice %571 {offsets = [0, 0], sizes = [4, 1], strides = [1, 1]} : vector<4x4xf32> to vector<4x1xf32>
    %573 = vector.extract_strided_slice %571 {offsets = [0, 1], sizes = [4, 1], strides = [1, 1]} : vector<4x4xf32> to vector<4x1xf32>
    %574 = vector.extract_strided_slice %571 {offsets = [0, 2], sizes = [4, 1], strides = [1, 1]} : vector<4x4xf32> to vector<4x1xf32>
    %575 = vector.extract_strided_slice %571 {offsets = [0, 3], sizes = [4, 1], strides = [1, 1]} : vector<4x4xf32> to vector<4x1xf32>
    %576 = vector.extract_strided_slice %571 {offsets = [0, 0], sizes = [2, 4], strides = [1, 1]} : vector<4x4xf32> to vector<2x4xf32>
    %577 = vector.extract_strided_slice %571 {offsets = [2, 0], sizes = [2, 4], strides = [1, 1]} : vector<4x4xf32> to vector<2x4xf32>
    %578 = vector.broadcast %572 : vector<4x1xf32> to vector<4x16xf32>
    %579 = arith.mulf %578, %422 : vector<4x16xf32>
    %580 = vector.broadcast %573 : vector<4x1xf32> to vector<4x16xf32>
    %581 = arith.mulf %580, %429 : vector<4x16xf32>
    %582 = arith.addf %579, %581 : vector<4x16xf32>
    %583 = vector.broadcast %574 : vector<4x1xf32> to vector<4x16xf32>
    %584 = arith.mulf %583, %436 : vector<4x16xf32>
    %585 = arith.addf %582, %584 : vector<4x16xf32>
    %586 = vector.broadcast %575 : vector<4x1xf32> to vector<4x16xf32>
    %587 = arith.mulf %586, %443 : vector<4x16xf32>
    %588 = arith.addf %585, %587 : vector<4x16xf32>
    %589 = arith.addf %406, %588 : vector<4x16xf32>
    %590 = math.tanh %589 : vector<4x16xf32>
    %cst_46 = arith.constant 5.000000e-01 : f32
    %591 = vector.broadcast %cst_46 : f32 to vector<4x16xf32>
    %592 = arith.mulf %590, %591 : vector<4x16xf32>
    %cst_47 = arith.constant 5.000000e-01 : f32
    %593 = vector.broadcast %cst_47 : f32 to vector<4x16xf32>
    %594 = arith.addf %592, %593 : vector<4x16xf32>
    %595 = vector.extract_strided_slice %594 {offsets = [0, 0], sizes = [4, 4], strides = [1, 1]} : vector<4x16xf32> to vector<4x4xf32>
    %596 = vector.extract_strided_slice %594 {offsets = [0, 4], sizes = [4, 4], strides = [1, 1]} : vector<4x16xf32> to vector<4x4xf32>
    %597 = vector.extract_strided_slice %590 {offsets = [0, 8], sizes = [4, 4], strides = [1, 1]} : vector<4x16xf32> to vector<4x4xf32>
    %598 = vector.extract_strided_slice %594 {offsets = [0, 12], sizes = [4, 4], strides = [1, 1]} : vector<4x16xf32> to vector<4x4xf32>
    %599 = arith.mulf %596, %569 : vector<4x4xf32>
    %600 = arith.mulf %595, %597 : vector<4x4xf32>
    %601 = arith.addf %599, %600 : vector<4x4xf32>
    %602 = math.tanh %601 : vector<4x4xf32>
    %603 = arith.mulf %598, %602 : vector<4x4xf32>
    %604 = vector.extract_strided_slice %603 {offsets = [0, 0], sizes = [4, 1], strides = [1, 1]} : vector<4x4xf32> to vector<4x1xf32>
    %605 = vector.extract_strided_slice %603 {offsets = [0, 1], sizes = [4, 1], strides = [1, 1]} : vector<4x4xf32> to vector<4x1xf32>
    %606 = vector.extract_strided_slice %603 {offsets = [0, 2], sizes = [4, 1], strides = [1, 1]} : vector<4x4xf32> to vector<4x1xf32>
    %607 = vector.extract_strided_slice %603 {offsets = [0, 3], sizes = [4, 1], strides = [1, 1]} : vector<4x4xf32> to vector<4x1xf32>
    %608 = vector.extract_strided_slice %603 {offsets = [0, 0], sizes = [2, 4], strides = [1, 1]} : vector<4x4xf32> to vector<2x4xf32>
    %609 = vector.extract_strided_slice %603 {offsets = [2, 0], sizes = [2, 4], strides = [1, 1]} : vector<4x4xf32> to vector<2x4xf32>
    %610 = vector.broadcast %604 : vector<4x1xf32> to vector<4x16xf32>
    %611 = arith.mulf %610, %422 : vector<4x16xf32>
    %612 = vector.broadcast %605 : vector<4x1xf32> to vector<4x16xf32>
    %613 = arith.mulf %612, %429 : vector<4x16xf32>
    %614 = arith.addf %611, %613 : vector<4x16xf32>
    %615 = vector.broadcast %606 : vector<4x1xf32> to vector<4x16xf32>
    %616 = arith.mulf %615, %436 : vector<4x16xf32>
    %617 = arith.addf %614, %616 : vector<4x16xf32>
    %618 = vector.broadcast %607 : vector<4x1xf32> to vector<4x16xf32>
    %619 = arith.mulf %618, %443 : vector<4x16xf32>
    %620 = arith.addf %617, %619 : vector<4x16xf32>
    %621 = arith.addf %409, %620 : vector<4x16xf32>
    %622 = math.tanh %621 : vector<4x16xf32>
    %cst_48 = arith.constant 5.000000e-01 : f32
    %623 = vector.broadcast %cst_48 : f32 to vector<4x16xf32>
    %624 = arith.mulf %622, %623 : vector<4x16xf32>
    %cst_49 = arith.constant 5.000000e-01 : f32
    %625 = vector.broadcast %cst_49 : f32 to vector<4x16xf32>
    %626 = arith.addf %624, %625 : vector<4x16xf32>
    %627 = vector.extract_strided_slice %626 {offsets = [0, 0], sizes = [4, 4], strides = [1, 1]} : vector<4x16xf32> to vector<4x4xf32>
    %628 = vector.extract_strided_slice %626 {offsets = [0, 4], sizes = [4, 4], strides = [1, 1]} : vector<4x16xf32> to vector<4x4xf32>
    %629 = vector.extract_strided_slice %622 {offsets = [0, 8], sizes = [4, 4], strides = [1, 1]} : vector<4x16xf32> to vector<4x4xf32>
    %630 = vector.extract_strided_slice %626 {offsets = [0, 12], sizes = [4, 4], strides = [1, 1]} : vector<4x16xf32> to vector<4x4xf32>
    %631 = arith.mulf %628, %601 : vector<4x4xf32>
    %632 = arith.mulf %627, %629 : vector<4x4xf32>
    %633 = arith.addf %631, %632 : vector<4x4xf32>
    %634 = math.tanh %633 : vector<4x4xf32>
    %635 = arith.mulf %630, %634 : vector<4x4xf32>
    %636 = vector.extract_strided_slice %635 {offsets = [0, 0], sizes = [4, 1], strides = [1, 1]} : vector<4x4xf32> to vector<4x1xf32>
    %637 = vector.extract_strided_slice %635 {offsets = [0, 1], sizes = [4, 1], strides = [1, 1]} : vector<4x4xf32> to vector<4x1xf32>
    %638 = vector.extract_strided_slice %635 {offsets = [0, 2], sizes = [4, 1], strides = [1, 1]} : vector<4x4xf32> to vector<4x1xf32>
    %639 = vector.extract_strided_slice %635 {offsets = [0, 3], sizes = [4, 1], strides = [1, 1]} : vector<4x4xf32> to vector<4x1xf32>
    %640 = vector.extract_strided_slice %635 {offsets = [0, 0], sizes = [2, 4], strides = [1, 1]} : vector<4x4xf32> to vector<2x4xf32>
    %641 = vector.extract_strided_slice %635 {offsets = [2, 0], sizes = [2, 4], strides = [1, 1]} : vector<4x4xf32> to vector<2x4xf32>
    %642 = vector.broadcast %636 : vector<4x1xf32> to vector<4x16xf32>
    %643 = arith.mulf %642, %422 : vector<4x16xf32>
    %644 = vector.broadcast %637 : vector<4x1xf32> to vector<4x16xf32>
    %645 = arith.mulf %644, %429 : vector<4x16xf32>
    %646 = arith.addf %643, %645 : vector<4x16xf32>
    %647 = vector.broadcast %638 : vector<4x1xf32> to vector<4x16xf32>
    %648 = arith.mulf %647, %436 : vector<4x16xf32>
    %649 = arith.addf %646, %648 : vector<4x16xf32>
    %650 = vector.broadcast %639 : vector<4x1xf32> to vector<4x16xf32>
    %651 = arith.mulf %650, %443 : vector<4x16xf32>
    %652 = arith.addf %649, %651 : vector<4x16xf32>
    %653 = arith.addf %412, %652 : vector<4x16xf32>
    %654 = math.tanh %653 : vector<4x16xf32>
    %cst_50 = arith.constant 5.000000e-01 : f32
    %655 = vector.broadcast %cst_50 : f32 to vector<4x16xf32>
    %656 = arith.mulf %654, %655 : vector<4x16xf32>
    %cst_51 = arith.constant 5.000000e-01 : f32
    %657 = vector.broadcast %cst_51 : f32 to vector<4x16xf32>
    %658 = arith.addf %656, %657 : vector<4x16xf32>
    %659 = vector.extract_strided_slice %658 {offsets = [0, 0], sizes = [4, 4], strides = [1, 1]} : vector<4x16xf32> to vector<4x4xf32>
    %660 = vector.extract_strided_slice %658 {offsets = [0, 4], sizes = [4, 4], strides = [1, 1]} : vector<4x16xf32> to vector<4x4xf32>
    %661 = vector.extract_strided_slice %654 {offsets = [0, 8], sizes = [4, 4], strides = [1, 1]} : vector<4x16xf32> to vector<4x4xf32>
    %662 = vector.extract_strided_slice %658 {offsets = [0, 12], sizes = [4, 4], strides = [1, 1]} : vector<4x16xf32> to vector<4x4xf32>
    %663 = arith.mulf %660, %633 : vector<4x4xf32>
    %664 = arith.mulf %659, %661 : vector<4x4xf32>
    %665 = arith.addf %663, %664 : vector<4x4xf32>
    %666 = math.tanh %665 : vector<4x4xf32>
    %667 = arith.mulf %662, %666 : vector<4x4xf32>
    %668 = vector.extract_strided_slice %667 {offsets = [0, 0], sizes = [4, 1], strides = [1, 1]} : vector<4x4xf32> to vector<4x1xf32>
    %669 = vector.extract_strided_slice %667 {offsets = [0, 1], sizes = [4, 1], strides = [1, 1]} : vector<4x4xf32> to vector<4x1xf32>
    %670 = vector.extract_strided_slice %667 {offsets = [0, 2], sizes = [4, 1], strides = [1, 1]} : vector<4x4xf32> to vector<4x1xf32>
    %671 = vector.extract_strided_slice %667 {offsets = [0, 3], sizes = [4, 1], strides = [1, 1]} : vector<4x4xf32> to vector<4x1xf32>
    %672 = vector.extract_strided_slice %667 {offsets = [0, 0], sizes = [2, 4], strides = [1, 1]} : vector<4x4xf32> to vector<2x4xf32>
    %673 = vector.extract_strided_slice %667 {offsets = [2, 0], sizes = [2, 4], strides = [1, 1]} : vector<4x4xf32> to vector<2x4xf32>
    %674 = vector.broadcast %668 : vector<4x1xf32> to vector<4x16xf32>
    %675 = arith.mulf %674, %422 : vector<4x16xf32>
    %676 = vector.broadcast %669 : vector<4x1xf32> to vector<4x16xf32>
    %677 = arith.mulf %676, %429 : vector<4x16xf32>
    %678 = arith.addf %675, %677 : vector<4x16xf32>
    %679 = vector.broadcast %670 : vector<4x1xf32> to vector<4x16xf32>
    %680 = arith.mulf %679, %436 : vector<4x16xf32>
    %681 = arith.addf %678, %680 : vector<4x16xf32>
    %682 = vector.broadcast %671 : vector<4x1xf32> to vector<4x16xf32>
    %683 = arith.mulf %682, %443 : vector<4x16xf32>
    %684 = arith.addf %681, %683 : vector<4x16xf32>
    %685 = arith.addf %415, %684 : vector<4x16xf32>
    %686 = math.tanh %685 : vector<4x16xf32>
    %cst_52 = arith.constant 5.000000e-01 : f32
    %687 = vector.broadcast %cst_52 : f32 to vector<4x16xf32>
    %688 = arith.mulf %686, %687 : vector<4x16xf32>
    %cst_53 = arith.constant 5.000000e-01 : f32
    %689 = vector.broadcast %cst_53 : f32 to vector<4x16xf32>
    %690 = arith.addf %688, %689 : vector<4x16xf32>
    %691 = vector.extract_strided_slice %690 {offsets = [0, 0], sizes = [4, 4], strides = [1, 1]} : vector<4x16xf32> to vector<4x4xf32>
    %692 = vector.extract_strided_slice %690 {offsets = [0, 4], sizes = [4, 4], strides = [1, 1]} : vector<4x16xf32> to vector<4x4xf32>
    %693 = vector.extract_strided_slice %686 {offsets = [0, 8], sizes = [4, 4], strides = [1, 1]} : vector<4x16xf32> to vector<4x4xf32>
    %694 = vector.extract_strided_slice %690 {offsets = [0, 12], sizes = [4, 4], strides = [1, 1]} : vector<4x16xf32> to vector<4x4xf32>
    %695 = arith.mulf %692, %665 : vector<4x4xf32>
    %696 = arith.mulf %691, %693 : vector<4x4xf32>
    %697 = arith.addf %695, %696 : vector<4x4xf32>
    %698 = math.tanh %697 : vector<4x4xf32>
    %699 = arith.mulf %694, %698 : vector<4x4xf32>
    %700 = vector.extract_strided_slice %699 {offsets = [0, 0], sizes = [2, 4], strides = [1, 1]} : vector<4x4xf32> to vector<2x4xf32>
    %701 = vector.extract_strided_slice %699 {offsets = [2, 0], sizes = [2, 4], strides = [1, 1]} : vector<4x4xf32> to vector<2x4xf32>
    %702 = tpu.concatenate %480, %701 in 1 : vector<2x4xf32>, vector<2x4xf32> -> vector<2x8xf32>
    %703 = tpu.concatenate %512, %673 in 1 : vector<2x4xf32>, vector<2x4xf32> -> vector<2x8xf32>
    %704 = tpu.concatenate %544, %641 in 1 : vector<2x4xf32>, vector<2x4xf32> -> vector<2x8xf32>
    %705 = tpu.concatenate %576, %609 in 1 : vector<2x4xf32>, vector<2x4xf32> -> vector<2x8xf32>
    %706 = tpu.concatenate %608, %577 in 1 : vector<2x4xf32>, vector<2x4xf32> -> vector<2x8xf32>
    %707 = tpu.concatenate %640, %545 in 1 : vector<2x4xf32>, vector<2x4xf32> -> vector<2x8xf32>
    %708 = tpu.concatenate %672, %513 in 1 : vector<2x4xf32>, vector<2x4xf32> -> vector<2x8xf32>
    %709 = tpu.concatenate %700, %481 in 1 : vector<2x4xf32>, vector<2x4xf32> -> vector<2x8xf32>
    %710 = tpu.concatenate %702, %703, %704, %705, %706, %707, %708, %709 in 0 : vector<2x8xf32>, vector<2x8xf32>, vector<2x8xf32>, vector<2x8xf32>, vector<2x8xf32>, vector<2x8xf32>, vector<2x8xf32>, vector<2x8xf32> -> vector<16x8xf32>
    %c2 = arith.constant 2 : index
    %c0_54 = arith.constant 0 : index
    %c0_55 = arith.constant 0 : index
    %711 = vector.load %arg1[%c2, %c0_54, %c0_55] : memref<5x8x32xf32, #tpu.memory_space<vmem>>, vector<1x8x32xf32>
    %712 = vector.shape_cast %711 : vector<1x8x32xf32> to vector<8x32xf32>
    %c2_56 = arith.constant 2 : index
    %c0_57 = arith.constant 0 : index
    %c0_58 = arith.constant 0 : index
    %713 = vector.load %arg2[%c2_56, %c0_57, %c0_58] : memref<5x4x32xf32, #tpu.memory_space<vmem>>, vector<1x4x32xf32>
    %714 = vector.shape_cast %713 : vector<1x4x32xf32> to vector<4x32xf32>
    %c2_59 = arith.constant 2 : index
    %c0_60 = arith.constant 0 : index
    %c0_61 = arith.constant 0 : index
    %715 = vector.load %arg3[%c2_59, %c0_60, %c0_61] : memref<5x1x32xf32, #tpu.memory_space<vmem>>, vector<1x1x32xf32>
    %716 = vector.shape_cast %715 : vector<1x1x32xf32> to vector<1x32xf32>
    %cst_62 = arith.constant dense<0.000000e+00> : vector<16x32xf32>
    %717 = tpu.matmul %710, %712, %cst_62 {dimension_numbers = #tpu.dot_dimension_numbers<[1], [0], [0], [1], [0, 0, 1, 1], [], []>} : vector<16x8xf32>, vector<8x32xf32>, vector<16x32xf32> -> vector<16x32xf32>
    %718 = vector.broadcast %716 : vector<1x32xf32> to vector<16x32xf32>
    %719 = arith.addf %717, %718 : vector<16x32xf32>
    %720 = vector.extract_strided_slice %719 {offsets = [0, 0], sizes = [2, 32], strides = [1, 1]} : vector<16x32xf32> to vector<2x32xf32>
    %721 = vector.extract_strided_slice %719 {offsets = [2, 0], sizes = [2, 32], strides = [1, 1]} : vector<16x32xf32> to vector<2x32xf32>
    %722 = vector.extract_strided_slice %719 {offsets = [4, 0], sizes = [2, 32], strides = [1, 1]} : vector<16x32xf32> to vector<2x32xf32>
    %723 = vector.extract_strided_slice %719 {offsets = [6, 0], sizes = [2, 32], strides = [1, 1]} : vector<16x32xf32> to vector<2x32xf32>
    %724 = vector.extract_strided_slice %719 {offsets = [8, 0], sizes = [2, 32], strides = [1, 1]} : vector<16x32xf32> to vector<2x32xf32>
    %725 = vector.extract_strided_slice %719 {offsets = [10, 0], sizes = [2, 32], strides = [1, 1]} : vector<16x32xf32> to vector<2x32xf32>
    %726 = vector.extract_strided_slice %719 {offsets = [12, 0], sizes = [2, 32], strides = [1, 1]} : vector<16x32xf32> to vector<2x32xf32>
    %727 = vector.extract_strided_slice %719 {offsets = [14, 0], sizes = [2, 32], strides = [1, 1]} : vector<16x32xf32> to vector<2x32xf32>
    %728 = vector.extract_strided_slice %720 {offsets = [0, 0], sizes = [2, 16], strides = [1, 1]} : vector<2x32xf32> to vector<2x16xf32>
    %729 = vector.extract_strided_slice %727 {offsets = [0, 16], sizes = [2, 16], strides = [1, 1]} : vector<2x32xf32> to vector<2x16xf32>
    %730 = tpu.concatenate %728, %729 in 0 : vector<2x16xf32>, vector<2x16xf32> -> vector<4x16xf32>
    %731 = vector.extract_strided_slice %721 {offsets = [0, 0], sizes = [2, 16], strides = [1, 1]} : vector<2x32xf32> to vector<2x16xf32>
    %732 = vector.extract_strided_slice %726 {offsets = [0, 16], sizes = [2, 16], strides = [1, 1]} : vector<2x32xf32> to vector<2x16xf32>
    %733 = tpu.concatenate %731, %732 in 0 : vector<2x16xf32>, vector<2x16xf32> -> vector<4x16xf32>
    %734 = vector.extract_strided_slice %722 {offsets = [0, 0], sizes = [2, 16], strides = [1, 1]} : vector<2x32xf32> to vector<2x16xf32>
    %735 = vector.extract_strided_slice %725 {offsets = [0, 16], sizes = [2, 16], strides = [1, 1]} : vector<2x32xf32> to vector<2x16xf32>
    %736 = tpu.concatenate %734, %735 in 0 : vector<2x16xf32>, vector<2x16xf32> -> vector<4x16xf32>
    %737 = vector.extract_strided_slice %723 {offsets = [0, 0], sizes = [2, 16], strides = [1, 1]} : vector<2x32xf32> to vector<2x16xf32>
    %738 = vector.extract_strided_slice %724 {offsets = [0, 16], sizes = [2, 16], strides = [1, 1]} : vector<2x32xf32> to vector<2x16xf32>
    %739 = tpu.concatenate %737, %738 in 0 : vector<2x16xf32>, vector<2x16xf32> -> vector<4x16xf32>
    %740 = vector.extract_strided_slice %724 {offsets = [0, 0], sizes = [2, 16], strides = [1, 1]} : vector<2x32xf32> to vector<2x16xf32>
    %741 = vector.extract_strided_slice %723 {offsets = [0, 16], sizes = [2, 16], strides = [1, 1]} : vector<2x32xf32> to vector<2x16xf32>
    %742 = tpu.concatenate %740, %741 in 0 : vector<2x16xf32>, vector<2x16xf32> -> vector<4x16xf32>
    %743 = vector.extract_strided_slice %725 {offsets = [0, 0], sizes = [2, 16], strides = [1, 1]} : vector<2x32xf32> to vector<2x16xf32>
    %744 = vector.extract_strided_slice %722 {offsets = [0, 16], sizes = [2, 16], strides = [1, 1]} : vector<2x32xf32> to vector<2x16xf32>
    %745 = tpu.concatenate %743, %744 in 0 : vector<2x16xf32>, vector<2x16xf32> -> vector<4x16xf32>
    %746 = vector.extract_strided_slice %726 {offsets = [0, 0], sizes = [2, 16], strides = [1, 1]} : vector<2x32xf32> to vector<2x16xf32>
    %747 = vector.extract_strided_slice %721 {offsets = [0, 16], sizes = [2, 16], strides = [1, 1]} : vector<2x32xf32> to vector<2x16xf32>
    %748 = tpu.concatenate %746, %747 in 0 : vector<2x16xf32>, vector<2x16xf32> -> vector<4x16xf32>
    %749 = vector.extract_strided_slice %727 {offsets = [0, 0], sizes = [2, 16], strides = [1, 1]} : vector<2x32xf32> to vector<2x16xf32>
    %750 = vector.extract_strided_slice %720 {offsets = [0, 16], sizes = [2, 16], strides = [1, 1]} : vector<2x32xf32> to vector<2x16xf32>
    %751 = tpu.concatenate %749, %750 in 0 : vector<2x16xf32>, vector<2x16xf32> -> vector<4x16xf32>
    %752 = vector.extract_strided_slice %714 {offsets = [0, 0], sizes = [1, 16], strides = [1, 1]} : vector<4x32xf32> to vector<1x16xf32>
    %753 = vector.shape_cast %752 : vector<1x16xf32> to vector<1x16xf32>
    %754 = vector.broadcast %753 : vector<1x16xf32> to vector<2x16xf32>
    %755 = vector.extract_strided_slice %714 {offsets = [0, 16], sizes = [1, 16], strides = [1, 1]} : vector<4x32xf32> to vector<1x16xf32>
    %756 = vector.shape_cast %755 : vector<1x16xf32> to vector<1x16xf32>
    %757 = vector.broadcast %756 : vector<1x16xf32> to vector<2x16xf32>
    %758 = tpu.concatenate %754, %757 in 0 : vector<2x16xf32>, vector<2x16xf32> -> vector<4x16xf32>
    %759 = vector.extract_strided_slice %714 {offsets = [1, 0], sizes = [1, 16], strides = [1, 1]} : vector<4x32xf32> to vector<1x16xf32>
    %760 = vector.shape_cast %759 : vector<1x16xf32> to vector<1x16xf32>
    %761 = vector.broadcast %760 : vector<1x16xf32> to vector<2x16xf32>
    %762 = vector.extract_strided_slice %714 {offsets = [1, 16], sizes = [1, 16], strides = [1, 1]} : vector<4x32xf32> to vector<1x16xf32>
    %763 = vector.shape_cast %762 : vector<1x16xf32> to vector<1x16xf32>
    %764 = vector.broadcast %763 : vector<1x16xf32> to vector<2x16xf32>
    %765 = tpu.concatenate %761, %764 in 0 : vector<2x16xf32>, vector<2x16xf32> -> vector<4x16xf32>
    %766 = vector.extract_strided_slice %714 {offsets = [2, 0], sizes = [1, 16], strides = [1, 1]} : vector<4x32xf32> to vector<1x16xf32>
    %767 = vector.shape_cast %766 : vector<1x16xf32> to vector<1x16xf32>
    %768 = vector.broadcast %767 : vector<1x16xf32> to vector<2x16xf32>
    %769 = vector.extract_strided_slice %714 {offsets = [2, 16], sizes = [1, 16], strides = [1, 1]} : vector<4x32xf32> to vector<1x16xf32>
    %770 = vector.shape_cast %769 : vector<1x16xf32> to vector<1x16xf32>
    %771 = vector.broadcast %770 : vector<1x16xf32> to vector<2x16xf32>
    %772 = tpu.concatenate %768, %771 in 0 : vector<2x16xf32>, vector<2x16xf32> -> vector<4x16xf32>
    %773 = vector.extract_strided_slice %714 {offsets = [3, 0], sizes = [1, 16], strides = [1, 1]} : vector<4x32xf32> to vector<1x16xf32>
    %774 = vector.shape_cast %773 : vector<1x16xf32> to vector<1x16xf32>
    %775 = vector.broadcast %774 : vector<1x16xf32> to vector<2x16xf32>
    %776 = vector.extract_strided_slice %714 {offsets = [3, 16], sizes = [1, 16], strides = [1, 1]} : vector<4x32xf32> to vector<1x16xf32>
    %777 = vector.shape_cast %776 : vector<1x16xf32> to vector<1x16xf32>
    %778 = vector.broadcast %777 : vector<1x16xf32> to vector<2x16xf32>
    %779 = tpu.concatenate %775, %778 in 0 : vector<2x16xf32>, vector<2x16xf32> -> vector<4x16xf32>
    %cst_63 = arith.constant 0.000000e+00 : f32
    %780 = vector.broadcast %cst_63 : f32 to vector<4x4xf32>
    %cst_64 = arith.constant 0.000000e+00 : f32
    %781 = vector.broadcast %cst_64 : f32 to vector<4x4xf32>
    %782 = vector.extract_strided_slice %780 {offsets = [0, 0], sizes = [4, 1], strides = [1, 1]} : vector<4x4xf32> to vector<4x1xf32>
    %783 = vector.extract_strided_slice %780 {offsets = [0, 1], sizes = [4, 1], strides = [1, 1]} : vector<4x4xf32> to vector<4x1xf32>
    %784 = vector.extract_strided_slice %780 {offsets = [0, 2], sizes = [4, 1], strides = [1, 1]} : vector<4x4xf32> to vector<4x1xf32>
    %785 = vector.extract_strided_slice %780 {offsets = [0, 3], sizes = [4, 1], strides = [1, 1]} : vector<4x4xf32> to vector<4x1xf32>
    %786 = vector.broadcast %782 : vector<4x1xf32> to vector<4x16xf32>
    %787 = arith.mulf %786, %758 : vector<4x16xf32>
    %788 = vector.broadcast %783 : vector<4x1xf32> to vector<4x16xf32>
    %789 = arith.mulf %788, %765 : vector<4x16xf32>
    %790 = arith.addf %787, %789 : vector<4x16xf32>
    %791 = vector.broadcast %784 : vector<4x1xf32> to vector<4x16xf32>
    %792 = arith.mulf %791, %772 : vector<4x16xf32>
    %793 = arith.addf %790, %792 : vector<4x16xf32>
    %794 = vector.broadcast %785 : vector<4x1xf32> to vector<4x16xf32>
    %795 = arith.mulf %794, %779 : vector<4x16xf32>
    %796 = arith.addf %793, %795 : vector<4x16xf32>
    %797 = arith.addf %730, %796 : vector<4x16xf32>
    %798 = math.tanh %797 : vector<4x16xf32>
    %cst_65 = arith.constant 5.000000e-01 : f32
    %799 = vector.broadcast %cst_65 : f32 to vector<4x16xf32>
    %800 = arith.mulf %798, %799 : vector<4x16xf32>
    %cst_66 = arith.constant 5.000000e-01 : f32
    %801 = vector.broadcast %cst_66 : f32 to vector<4x16xf32>
    %802 = arith.addf %800, %801 : vector<4x16xf32>
    %803 = vector.extract_strided_slice %802 {offsets = [0, 0], sizes = [4, 4], strides = [1, 1]} : vector<4x16xf32> to vector<4x4xf32>
    %804 = vector.extract_strided_slice %802 {offsets = [0, 4], sizes = [4, 4], strides = [1, 1]} : vector<4x16xf32> to vector<4x4xf32>
    %805 = vector.extract_strided_slice %798 {offsets = [0, 8], sizes = [4, 4], strides = [1, 1]} : vector<4x16xf32> to vector<4x4xf32>
    %806 = vector.extract_strided_slice %802 {offsets = [0, 12], sizes = [4, 4], strides = [1, 1]} : vector<4x16xf32> to vector<4x4xf32>
    %807 = arith.mulf %804, %781 : vector<4x4xf32>
    %808 = arith.mulf %803, %805 : vector<4x4xf32>
    %809 = arith.addf %807, %808 : vector<4x4xf32>
    %810 = math.tanh %809 : vector<4x4xf32>
    %811 = arith.mulf %806, %810 : vector<4x4xf32>
    %812 = vector.extract_strided_slice %811 {offsets = [0, 0], sizes = [4, 1], strides = [1, 1]} : vector<4x4xf32> to vector<4x1xf32>
    %813 = vector.extract_strided_slice %811 {offsets = [0, 1], sizes = [4, 1], strides = [1, 1]} : vector<4x4xf32> to vector<4x1xf32>
    %814 = vector.extract_strided_slice %811 {offsets = [0, 2], sizes = [4, 1], strides = [1, 1]} : vector<4x4xf32> to vector<4x1xf32>
    %815 = vector.extract_strided_slice %811 {offsets = [0, 3], sizes = [4, 1], strides = [1, 1]} : vector<4x4xf32> to vector<4x1xf32>
    %816 = vector.extract_strided_slice %811 {offsets = [0, 0], sizes = [2, 4], strides = [1, 1]} : vector<4x4xf32> to vector<2x4xf32>
    %817 = vector.extract_strided_slice %811 {offsets = [2, 0], sizes = [2, 4], strides = [1, 1]} : vector<4x4xf32> to vector<2x4xf32>
    %818 = vector.broadcast %812 : vector<4x1xf32> to vector<4x16xf32>
    %819 = arith.mulf %818, %758 : vector<4x16xf32>
    %820 = vector.broadcast %813 : vector<4x1xf32> to vector<4x16xf32>
    %821 = arith.mulf %820, %765 : vector<4x16xf32>
    %822 = arith.addf %819, %821 : vector<4x16xf32>
    %823 = vector.broadcast %814 : vector<4x1xf32> to vector<4x16xf32>
    %824 = arith.mulf %823, %772 : vector<4x16xf32>
    %825 = arith.addf %822, %824 : vector<4x16xf32>
    %826 = vector.broadcast %815 : vector<4x1xf32> to vector<4x16xf32>
    %827 = arith.mulf %826, %779 : vector<4x16xf32>
    %828 = arith.addf %825, %827 : vector<4x16xf32>
    %829 = arith.addf %733, %828 : vector<4x16xf32>
    %830 = math.tanh %829 : vector<4x16xf32>
    %cst_67 = arith.constant 5.000000e-01 : f32
    %831 = vector.broadcast %cst_67 : f32 to vector<4x16xf32>
    %832 = arith.mulf %830, %831 : vector<4x16xf32>
    %cst_68 = arith.constant 5.000000e-01 : f32
    %833 = vector.broadcast %cst_68 : f32 to vector<4x16xf32>
    %834 = arith.addf %832, %833 : vector<4x16xf32>
    %835 = vector.extract_strided_slice %834 {offsets = [0, 0], sizes = [4, 4], strides = [1, 1]} : vector<4x16xf32> to vector<4x4xf32>
    %836 = vector.extract_strided_slice %834 {offsets = [0, 4], sizes = [4, 4], strides = [1, 1]} : vector<4x16xf32> to vector<4x4xf32>
    %837 = vector.extract_strided_slice %830 {offsets = [0, 8], sizes = [4, 4], strides = [1, 1]} : vector<4x16xf32> to vector<4x4xf32>
    %838 = vector.extract_strided_slice %834 {offsets = [0, 12], sizes = [4, 4], strides = [1, 1]} : vector<4x16xf32> to vector<4x4xf32>
    %839 = arith.mulf %836, %809 : vector<4x4xf32>
    %840 = arith.mulf %835, %837 : vector<4x4xf32>
    %841 = arith.addf %839, %840 : vector<4x4xf32>
    %842 = math.tanh %841 : vector<4x4xf32>
    %843 = arith.mulf %838, %842 : vector<4x4xf32>
    %844 = vector.extract_strided_slice %843 {offsets = [0, 0], sizes = [4, 1], strides = [1, 1]} : vector<4x4xf32> to vector<4x1xf32>
    %845 = vector.extract_strided_slice %843 {offsets = [0, 1], sizes = [4, 1], strides = [1, 1]} : vector<4x4xf32> to vector<4x1xf32>
    %846 = vector.extract_strided_slice %843 {offsets = [0, 2], sizes = [4, 1], strides = [1, 1]} : vector<4x4xf32> to vector<4x1xf32>
    %847 = vector.extract_strided_slice %843 {offsets = [0, 3], sizes = [4, 1], strides = [1, 1]} : vector<4x4xf32> to vector<4x1xf32>
    %848 = vector.extract_strided_slice %843 {offsets = [0, 0], sizes = [2, 4], strides = [1, 1]} : vector<4x4xf32> to vector<2x4xf32>
    %849 = vector.extract_strided_slice %843 {offsets = [2, 0], sizes = [2, 4], strides = [1, 1]} : vector<4x4xf32> to vector<2x4xf32>
    %850 = vector.broadcast %844 : vector<4x1xf32> to vector<4x16xf32>
    %851 = arith.mulf %850, %758 : vector<4x16xf32>
    %852 = vector.broadcast %845 : vector<4x1xf32> to vector<4x16xf32>
    %853 = arith.mulf %852, %765 : vector<4x16xf32>
    %854 = arith.addf %851, %853 : vector<4x16xf32>
    %855 = vector.broadcast %846 : vector<4x1xf32> to vector<4x16xf32>
    %856 = arith.mulf %855, %772 : vector<4x16xf32>
    %857 = arith.addf %854, %856 : vector<4x16xf32>
    %858 = vector.broadcast %847 : vector<4x1xf32> to vector<4x16xf32>
    %859 = arith.mulf %858, %779 : vector<4x16xf32>
    %860 = arith.addf %857, %859 : vector<4x16xf32>
    %861 = arith.addf %736, %860 : vector<4x16xf32>
    %862 = math.tanh %861 : vector<4x16xf32>
    %cst_69 = arith.constant 5.000000e-01 : f32
    %863 = vector.broadcast %cst_69 : f32 to vector<4x16xf32>
    %864 = arith.mulf %862, %863 : vector<4x16xf32>
    %cst_70 = arith.constant 5.000000e-01 : f32
    %865 = vector.broadcast %cst_70 : f32 to vector<4x16xf32>
    %866 = arith.addf %864, %865 : vector<4x16xf32>
    %867 = vector.extract_strided_slice %866 {offsets = [0, 0], sizes = [4, 4], strides = [1, 1]} : vector<4x16xf32> to vector<4x4xf32>
    %868 = vector.extract_strided_slice %866 {offsets = [0, 4], sizes = [4, 4], strides = [1, 1]} : vector<4x16xf32> to vector<4x4xf32>
    %869 = vector.extract_strided_slice %862 {offsets = [0, 8], sizes = [4, 4], strides = [1, 1]} : vector<4x16xf32> to vector<4x4xf32>
    %870 = vector.extract_strided_slice %866 {offsets = [0, 12], sizes = [4, 4], strides = [1, 1]} : vector<4x16xf32> to vector<4x4xf32>
    %871 = arith.mulf %868, %841 : vector<4x4xf32>
    %872 = arith.mulf %867, %869 : vector<4x4xf32>
    %873 = arith.addf %871, %872 : vector<4x4xf32>
    %874 = math.tanh %873 : vector<4x4xf32>
    %875 = arith.mulf %870, %874 : vector<4x4xf32>
    %876 = vector.extract_strided_slice %875 {offsets = [0, 0], sizes = [4, 1], strides = [1, 1]} : vector<4x4xf32> to vector<4x1xf32>
    %877 = vector.extract_strided_slice %875 {offsets = [0, 1], sizes = [4, 1], strides = [1, 1]} : vector<4x4xf32> to vector<4x1xf32>
    %878 = vector.extract_strided_slice %875 {offsets = [0, 2], sizes = [4, 1], strides = [1, 1]} : vector<4x4xf32> to vector<4x1xf32>
    %879 = vector.extract_strided_slice %875 {offsets = [0, 3], sizes = [4, 1], strides = [1, 1]} : vector<4x4xf32> to vector<4x1xf32>
    %880 = vector.extract_strided_slice %875 {offsets = [0, 0], sizes = [2, 4], strides = [1, 1]} : vector<4x4xf32> to vector<2x4xf32>
    %881 = vector.extract_strided_slice %875 {offsets = [2, 0], sizes = [2, 4], strides = [1, 1]} : vector<4x4xf32> to vector<2x4xf32>
    %882 = vector.broadcast %876 : vector<4x1xf32> to vector<4x16xf32>
    %883 = arith.mulf %882, %758 : vector<4x16xf32>
    %884 = vector.broadcast %877 : vector<4x1xf32> to vector<4x16xf32>
    %885 = arith.mulf %884, %765 : vector<4x16xf32>
    %886 = arith.addf %883, %885 : vector<4x16xf32>
    %887 = vector.broadcast %878 : vector<4x1xf32> to vector<4x16xf32>
    %888 = arith.mulf %887, %772 : vector<4x16xf32>
    %889 = arith.addf %886, %888 : vector<4x16xf32>
    %890 = vector.broadcast %879 : vector<4x1xf32> to vector<4x16xf32>
    %891 = arith.mulf %890, %779 : vector<4x16xf32>
    %892 = arith.addf %889, %891 : vector<4x16xf32>
    %893 = arith.addf %739, %892 : vector<4x16xf32>
    %894 = math.tanh %893 : vector<4x16xf32>
    %cst_71 = arith.constant 5.000000e-01 : f32
    %895 = vector.broadcast %cst_71 : f32 to vector<4x16xf32>
    %896 = arith.mulf %894, %895 : vector<4x16xf32>
    %cst_72 = arith.constant 5.000000e-01 : f32
    %897 = vector.broadcast %cst_72 : f32 to vector<4x16xf32>
    %898 = arith.addf %896, %897 : vector<4x16xf32>
    %899 = vector.extract_strided_slice %898 {offsets = [0, 0], sizes = [4, 4], strides = [1, 1]} : vector<4x16xf32> to vector<4x4xf32>
    %900 = vector.extract_strided_slice %898 {offsets = [0, 4], sizes = [4, 4], strides = [1, 1]} : vector<4x16xf32> to vector<4x4xf32>
    %901 = vector.extract_strided_slice %894 {offsets = [0, 8], sizes = [4, 4], strides = [1, 1]} : vector<4x16xf32> to vector<4x4xf32>
    %902 = vector.extract_strided_slice %898 {offsets = [0, 12], sizes = [4, 4], strides = [1, 1]} : vector<4x16xf32> to vector<4x4xf32>
    %903 = arith.mulf %900, %873 : vector<4x4xf32>
    %904 = arith.mulf %899, %901 : vector<4x4xf32>
    %905 = arith.addf %903, %904 : vector<4x4xf32>
    %906 = math.tanh %905 : vector<4x4xf32>
    %907 = arith.mulf %902, %906 : vector<4x4xf32>
    %908 = vector.extract_strided_slice %907 {offsets = [0, 0], sizes = [4, 1], strides = [1, 1]} : vector<4x4xf32> to vector<4x1xf32>
    %909 = vector.extract_strided_slice %907 {offsets = [0, 1], sizes = [4, 1], strides = [1, 1]} : vector<4x4xf32> to vector<4x1xf32>
    %910 = vector.extract_strided_slice %907 {offsets = [0, 2], sizes = [4, 1], strides = [1, 1]} : vector<4x4xf32> to vector<4x1xf32>
    %911 = vector.extract_strided_slice %907 {offsets = [0, 3], sizes = [4, 1], strides = [1, 1]} : vector<4x4xf32> to vector<4x1xf32>
    %912 = vector.extract_strided_slice %907 {offsets = [0, 0], sizes = [2, 4], strides = [1, 1]} : vector<4x4xf32> to vector<2x4xf32>
    %913 = vector.extract_strided_slice %907 {offsets = [2, 0], sizes = [2, 4], strides = [1, 1]} : vector<4x4xf32> to vector<2x4xf32>
    %914 = vector.broadcast %908 : vector<4x1xf32> to vector<4x16xf32>
    %915 = arith.mulf %914, %758 : vector<4x16xf32>
    %916 = vector.broadcast %909 : vector<4x1xf32> to vector<4x16xf32>
    %917 = arith.mulf %916, %765 : vector<4x16xf32>
    %918 = arith.addf %915, %917 : vector<4x16xf32>
    %919 = vector.broadcast %910 : vector<4x1xf32> to vector<4x16xf32>
    %920 = arith.mulf %919, %772 : vector<4x16xf32>
    %921 = arith.addf %918, %920 : vector<4x16xf32>
    %922 = vector.broadcast %911 : vector<4x1xf32> to vector<4x16xf32>
    %923 = arith.mulf %922, %779 : vector<4x16xf32>
    %924 = arith.addf %921, %923 : vector<4x16xf32>
    %925 = arith.addf %742, %924 : vector<4x16xf32>
    %926 = math.tanh %925 : vector<4x16xf32>
    %cst_73 = arith.constant 5.000000e-01 : f32
    %927 = vector.broadcast %cst_73 : f32 to vector<4x16xf32>
    %928 = arith.mulf %926, %927 : vector<4x16xf32>
    %cst_74 = arith.constant 5.000000e-01 : f32
    %929 = vector.broadcast %cst_74 : f32 to vector<4x16xf32>
    %930 = arith.addf %928, %929 : vector<4x16xf32>
    %931 = vector.extract_strided_slice %930 {offsets = [0, 0], sizes = [4, 4], strides = [1, 1]} : vector<4x16xf32> to vector<4x4xf32>
    %932 = vector.extract_strided_slice %930 {offsets = [0, 4], sizes = [4, 4], strides = [1, 1]} : vector<4x16xf32> to vector<4x4xf32>
    %933 = vector.extract_strided_slice %926 {offsets = [0, 8], sizes = [4, 4], strides = [1, 1]} : vector<4x16xf32> to vector<4x4xf32>
    %934 = vector.extract_strided_slice %930 {offsets = [0, 12], sizes = [4, 4], strides = [1, 1]} : vector<4x16xf32> to vector<4x4xf32>
    %935 = arith.mulf %932, %905 : vector<4x4xf32>
    %936 = arith.mulf %931, %933 : vector<4x4xf32>
    %937 = arith.addf %935, %936 : vector<4x4xf32>
    %938 = math.tanh %937 : vector<4x4xf32>
    %939 = arith.mulf %934, %938 : vector<4x4xf32>
    %940 = vector.extract_strided_slice %939 {offsets = [0, 0], sizes = [4, 1], strides = [1, 1]} : vector<4x4xf32> to vector<4x1xf32>
    %941 = vector.extract_strided_slice %939 {offsets = [0, 1], sizes = [4, 1], strides = [1, 1]} : vector<4x4xf32> to vector<4x1xf32>
    %942 = vector.extract_strided_slice %939 {offsets = [0, 2], sizes = [4, 1], strides = [1, 1]} : vector<4x4xf32> to vector<4x1xf32>
    %943 = vector.extract_strided_slice %939 {offsets = [0, 3], sizes = [4, 1], strides = [1, 1]} : vector<4x4xf32> to vector<4x1xf32>
    %944 = vector.extract_strided_slice %939 {offsets = [0, 0], sizes = [2, 4], strides = [1, 1]} : vector<4x4xf32> to vector<2x4xf32>
    %945 = vector.extract_strided_slice %939 {offsets = [2, 0], sizes = [2, 4], strides = [1, 1]} : vector<4x4xf32> to vector<2x4xf32>
    %946 = vector.broadcast %940 : vector<4x1xf32> to vector<4x16xf32>
    %947 = arith.mulf %946, %758 : vector<4x16xf32>
    %948 = vector.broadcast %941 : vector<4x1xf32> to vector<4x16xf32>
    %949 = arith.mulf %948, %765 : vector<4x16xf32>
    %950 = arith.addf %947, %949 : vector<4x16xf32>
    %951 = vector.broadcast %942 : vector<4x1xf32> to vector<4x16xf32>
    %952 = arith.mulf %951, %772 : vector<4x16xf32>
    %953 = arith.addf %950, %952 : vector<4x16xf32>
    %954 = vector.broadcast %943 : vector<4x1xf32> to vector<4x16xf32>
    %955 = arith.mulf %954, %779 : vector<4x16xf32>
    %956 = arith.addf %953, %955 : vector<4x16xf32>
    %957 = arith.addf %745, %956 : vector<4x16xf32>
    %958 = math.tanh %957 : vector<4x16xf32>
    %cst_75 = arith.constant 5.000000e-01 : f32
    %959 = vector.broadcast %cst_75 : f32 to vector<4x16xf32>
    %960 = arith.mulf %958, %959 : vector<4x16xf32>
    %cst_76 = arith.constant 5.000000e-01 : f32
    %961 = vector.broadcast %cst_76 : f32 to vector<4x16xf32>
    %962 = arith.addf %960, %961 : vector<4x16xf32>
    %963 = vector.extract_strided_slice %962 {offsets = [0, 0], sizes = [4, 4], strides = [1, 1]} : vector<4x16xf32> to vector<4x4xf32>
    %964 = vector.extract_strided_slice %962 {offsets = [0, 4], sizes = [4, 4], strides = [1, 1]} : vector<4x16xf32> to vector<4x4xf32>
    %965 = vector.extract_strided_slice %958 {offsets = [0, 8], sizes = [4, 4], strides = [1, 1]} : vector<4x16xf32> to vector<4x4xf32>
    %966 = vector.extract_strided_slice %962 {offsets = [0, 12], sizes = [4, 4], strides = [1, 1]} : vector<4x16xf32> to vector<4x4xf32>
    %967 = arith.mulf %964, %937 : vector<4x4xf32>
    %968 = arith.mulf %963, %965 : vector<4x4xf32>
    %969 = arith.addf %967, %968 : vector<4x4xf32>
    %970 = math.tanh %969 : vector<4x4xf32>
    %971 = arith.mulf %966, %970 : vector<4x4xf32>
    %972 = vector.extract_strided_slice %971 {offsets = [0, 0], sizes = [4, 1], strides = [1, 1]} : vector<4x4xf32> to vector<4x1xf32>
    %973 = vector.extract_strided_slice %971 {offsets = [0, 1], sizes = [4, 1], strides = [1, 1]} : vector<4x4xf32> to vector<4x1xf32>
    %974 = vector.extract_strided_slice %971 {offsets = [0, 2], sizes = [4, 1], strides = [1, 1]} : vector<4x4xf32> to vector<4x1xf32>
    %975 = vector.extract_strided_slice %971 {offsets = [0, 3], sizes = [4, 1], strides = [1, 1]} : vector<4x4xf32> to vector<4x1xf32>
    %976 = vector.extract_strided_slice %971 {offsets = [0, 0], sizes = [2, 4], strides = [1, 1]} : vector<4x4xf32> to vector<2x4xf32>
    %977 = vector.extract_strided_slice %971 {offsets = [2, 0], sizes = [2, 4], strides = [1, 1]} : vector<4x4xf32> to vector<2x4xf32>
    %978 = vector.broadcast %972 : vector<4x1xf32> to vector<4x16xf32>
    %979 = arith.mulf %978, %758 : vector<4x16xf32>
    %980 = vector.broadcast %973 : vector<4x1xf32> to vector<4x16xf32>
    %981 = arith.mulf %980, %765 : vector<4x16xf32>
    %982 = arith.addf %979, %981 : vector<4x16xf32>
    %983 = vector.broadcast %974 : vector<4x1xf32> to vector<4x16xf32>
    %984 = arith.mulf %983, %772 : vector<4x16xf32>
    %985 = arith.addf %982, %984 : vector<4x16xf32>
    %986 = vector.broadcast %975 : vector<4x1xf32> to vector<4x16xf32>
    %987 = arith.mulf %986, %779 : vector<4x16xf32>
    %988 = arith.addf %985, %987 : vector<4x16xf32>
    %989 = arith.addf %748, %988 : vector<4x16xf32>
    %990 = math.tanh %989 : vector<4x16xf32>
    %cst_77 = arith.constant 5.000000e-01 : f32
    %991 = vector.broadcast %cst_77 : f32 to vector<4x16xf32>
    %992 = arith.mulf %990, %991 : vector<4x16xf32>
    %cst_78 = arith.constant 5.000000e-01 : f32
    %993 = vector.broadcast %cst_78 : f32 to vector<4x16xf32>
    %994 = arith.addf %992, %993 : vector<4x16xf32>
    %995 = vector.extract_strided_slice %994 {offsets = [0, 0], sizes = [4, 4], strides = [1, 1]} : vector<4x16xf32> to vector<4x4xf32>
    %996 = vector.extract_strided_slice %994 {offsets = [0, 4], sizes = [4, 4], strides = [1, 1]} : vector<4x16xf32> to vector<4x4xf32>
    %997 = vector.extract_strided_slice %990 {offsets = [0, 8], sizes = [4, 4], strides = [1, 1]} : vector<4x16xf32> to vector<4x4xf32>
    %998 = vector.extract_strided_slice %994 {offsets = [0, 12], sizes = [4, 4], strides = [1, 1]} : vector<4x16xf32> to vector<4x4xf32>
    %999 = arith.mulf %996, %969 : vector<4x4xf32>
    %1000 = arith.mulf %995, %997 : vector<4x4xf32>
    %1001 = arith.addf %999, %1000 : vector<4x4xf32>
    %1002 = math.tanh %1001 : vector<4x4xf32>
    %1003 = arith.mulf %998, %1002 : vector<4x4xf32>
    %1004 = vector.extract_strided_slice %1003 {offsets = [0, 0], sizes = [4, 1], strides = [1, 1]} : vector<4x4xf32> to vector<4x1xf32>
    %1005 = vector.extract_strided_slice %1003 {offsets = [0, 1], sizes = [4, 1], strides = [1, 1]} : vector<4x4xf32> to vector<4x1xf32>
    %1006 = vector.extract_strided_slice %1003 {offsets = [0, 2], sizes = [4, 1], strides = [1, 1]} : vector<4x4xf32> to vector<4x1xf32>
    %1007 = vector.extract_strided_slice %1003 {offsets = [0, 3], sizes = [4, 1], strides = [1, 1]} : vector<4x4xf32> to vector<4x1xf32>
    %1008 = vector.extract_strided_slice %1003 {offsets = [0, 0], sizes = [2, 4], strides = [1, 1]} : vector<4x4xf32> to vector<2x4xf32>
    %1009 = vector.extract_strided_slice %1003 {offsets = [2, 0], sizes = [2, 4], strides = [1, 1]} : vector<4x4xf32> to vector<2x4xf32>
    %1010 = vector.broadcast %1004 : vector<4x1xf32> to vector<4x16xf32>
    %1011 = arith.mulf %1010, %758 : vector<4x16xf32>
    %1012 = vector.broadcast %1005 : vector<4x1xf32> to vector<4x16xf32>
    %1013 = arith.mulf %1012, %765 : vector<4x16xf32>
    %1014 = arith.addf %1011, %1013 : vector<4x16xf32>
    %1015 = vector.broadcast %1006 : vector<4x1xf32> to vector<4x16xf32>
    %1016 = arith.mulf %1015, %772 : vector<4x16xf32>
    %1017 = arith.addf %1014, %1016 : vector<4x16xf32>
    %1018 = vector.broadcast %1007 : vector<4x1xf32> to vector<4x16xf32>
    %1019 = arith.mulf %1018, %779 : vector<4x16xf32>
    %1020 = arith.addf %1017, %1019 : vector<4x16xf32>
    %1021 = arith.addf %751, %1020 : vector<4x16xf32>
    %1022 = math.tanh %1021 : vector<4x16xf32>
    %cst_79 = arith.constant 5.000000e-01 : f32
    %1023 = vector.broadcast %cst_79 : f32 to vector<4x16xf32>
    %1024 = arith.mulf %1022, %1023 : vector<4x16xf32>
    %cst_80 = arith.constant 5.000000e-01 : f32
    %1025 = vector.broadcast %cst_80 : f32 to vector<4x16xf32>
    %1026 = arith.addf %1024, %1025 : vector<4x16xf32>
    %1027 = vector.extract_strided_slice %1026 {offsets = [0, 0], sizes = [4, 4], strides = [1, 1]} : vector<4x16xf32> to vector<4x4xf32>
    %1028 = vector.extract_strided_slice %1026 {offsets = [0, 4], sizes = [4, 4], strides = [1, 1]} : vector<4x16xf32> to vector<4x4xf32>
    %1029 = vector.extract_strided_slice %1022 {offsets = [0, 8], sizes = [4, 4], strides = [1, 1]} : vector<4x16xf32> to vector<4x4xf32>
    %1030 = vector.extract_strided_slice %1026 {offsets = [0, 12], sizes = [4, 4], strides = [1, 1]} : vector<4x16xf32> to vector<4x4xf32>
    %1031 = arith.mulf %1028, %1001 : vector<4x4xf32>
    %1032 = arith.mulf %1027, %1029 : vector<4x4xf32>
    %1033 = arith.addf %1031, %1032 : vector<4x4xf32>
    %1034 = math.tanh %1033 : vector<4x4xf32>
    %1035 = arith.mulf %1030, %1034 : vector<4x4xf32>
    %1036 = vector.extract_strided_slice %1035 {offsets = [0, 0], sizes = [2, 4], strides = [1, 1]} : vector<4x4xf32> to vector<2x4xf32>
    %1037 = vector.extract_strided_slice %1035 {offsets = [2, 0], sizes = [2, 4], strides = [1, 1]} : vector<4x4xf32> to vector<2x4xf32>
    %1038 = tpu.concatenate %816, %1037 in 1 : vector<2x4xf32>, vector<2x4xf32> -> vector<2x8xf32>
    %1039 = tpu.concatenate %848, %1009 in 1 : vector<2x4xf32>, vector<2x4xf32> -> vector<2x8xf32>
    %1040 = tpu.concatenate %880, %977 in 1 : vector<2x4xf32>, vector<2x4xf32> -> vector<2x8xf32>
    %1041 = tpu.concatenate %912, %945 in 1 : vector<2x4xf32>, vector<2x4xf32> -> vector<2x8xf32>
    %1042 = tpu.concatenate %944, %913 in 1 : vector<2x4xf32>, vector<2x4xf32> -> vector<2x8xf32>
    %1043 = tpu.concatenate %976, %881 in 1 : vector<2x4xf32>, vector<2x4xf32> -> vector<2x8xf32>
    %1044 = tpu.concatenate %1008, %849 in 1 : vector<2x4xf32>, vector<2x4xf32> -> vector<2x8xf32>
    %1045 = tpu.concatenate %1036, %817 in 1 : vector<2x4xf32>, vector<2x4xf32> -> vector<2x8xf32>
    %1046 = tpu.concatenate %1038, %1039, %1040, %1041, %1042, %1043, %1044, %1045 in 0 : vector<2x8xf32>, vector<2x8xf32>, vector<2x8xf32>, vector<2x8xf32>, vector<2x8xf32>, vector<2x8xf32>, vector<2x8xf32>, vector<2x8xf32> -> vector<16x8xf32>
    %c3 = arith.constant 3 : index
    %c0_81 = arith.constant 0 : index
    %c0_82 = arith.constant 0 : index
    %1047 = vector.load %arg1[%c3, %c0_81, %c0_82] : memref<5x8x32xf32, #tpu.memory_space<vmem>>, vector<1x8x32xf32>
    %1048 = vector.shape_cast %1047 : vector<1x8x32xf32> to vector<8x32xf32>
    %c3_83 = arith.constant 3 : index
    %c0_84 = arith.constant 0 : index
    %c0_85 = arith.constant 0 : index
    %1049 = vector.load %arg2[%c3_83, %c0_84, %c0_85] : memref<5x4x32xf32, #tpu.memory_space<vmem>>, vector<1x4x32xf32>
    %1050 = vector.shape_cast %1049 : vector<1x4x32xf32> to vector<4x32xf32>
    %c3_86 = arith.constant 3 : index
    %c0_87 = arith.constant 0 : index
    %c0_88 = arith.constant 0 : index
    %1051 = vector.load %arg3[%c3_86, %c0_87, %c0_88] : memref<5x1x32xf32, #tpu.memory_space<vmem>>, vector<1x1x32xf32>
    %1052 = vector.shape_cast %1051 : vector<1x1x32xf32> to vector<1x32xf32>
    %cst_89 = arith.constant dense<0.000000e+00> : vector<16x32xf32>
    %1053 = tpu.matmul %1046, %1048, %cst_89 {dimension_numbers = #tpu.dot_dimension_numbers<[1], [0], [0], [1], [0, 0, 1, 1], [], []>} : vector<16x8xf32>, vector<8x32xf32>, vector<16x32xf32> -> vector<16x32xf32>
    %1054 = vector.broadcast %1052 : vector<1x32xf32> to vector<16x32xf32>
    %1055 = arith.addf %1053, %1054 : vector<16x32xf32>
    %1056 = vector.extract_strided_slice %1055 {offsets = [0, 0], sizes = [2, 32], strides = [1, 1]} : vector<16x32xf32> to vector<2x32xf32>
    %1057 = vector.extract_strided_slice %1055 {offsets = [2, 0], sizes = [2, 32], strides = [1, 1]} : vector<16x32xf32> to vector<2x32xf32>
    %1058 = vector.extract_strided_slice %1055 {offsets = [4, 0], sizes = [2, 32], strides = [1, 1]} : vector<16x32xf32> to vector<2x32xf32>
    %1059 = vector.extract_strided_slice %1055 {offsets = [6, 0], sizes = [2, 32], strides = [1, 1]} : vector<16x32xf32> to vector<2x32xf32>
    %1060 = vector.extract_strided_slice %1055 {offsets = [8, 0], sizes = [2, 32], strides = [1, 1]} : vector<16x32xf32> to vector<2x32xf32>
    %1061 = vector.extract_strided_slice %1055 {offsets = [10, 0], sizes = [2, 32], strides = [1, 1]} : vector<16x32xf32> to vector<2x32xf32>
    %1062 = vector.extract_strided_slice %1055 {offsets = [12, 0], sizes = [2, 32], strides = [1, 1]} : vector<16x32xf32> to vector<2x32xf32>
    %1063 = vector.extract_strided_slice %1055 {offsets = [14, 0], sizes = [2, 32], strides = [1, 1]} : vector<16x32xf32> to vector<2x32xf32>
    %1064 = vector.extract_strided_slice %1056 {offsets = [0, 0], sizes = [2, 16], strides = [1, 1]} : vector<2x32xf32> to vector<2x16xf32>
    %1065 = vector.extract_strided_slice %1063 {offsets = [0, 16], sizes = [2, 16], strides = [1, 1]} : vector<2x32xf32> to vector<2x16xf32>
    %1066 = tpu.concatenate %1064, %1065 in 0 : vector<2x16xf32>, vector<2x16xf32> -> vector<4x16xf32>
    %1067 = vector.extract_strided_slice %1057 {offsets = [0, 0], sizes = [2, 16], strides = [1, 1]} : vector<2x32xf32> to vector<2x16xf32>
    %1068 = vector.extract_strided_slice %1062 {offsets = [0, 16], sizes = [2, 16], strides = [1, 1]} : vector<2x32xf32> to vector<2x16xf32>
    %1069 = tpu.concatenate %1067, %1068 in 0 : vector<2x16xf32>, vector<2x16xf32> -> vector<4x16xf32>
    %1070 = vector.extract_strided_slice %1058 {offsets = [0, 0], sizes = [2, 16], strides = [1, 1]} : vector<2x32xf32> to vector<2x16xf32>
    %1071 = vector.extract_strided_slice %1061 {offsets = [0, 16], sizes = [2, 16], strides = [1, 1]} : vector<2x32xf32> to vector<2x16xf32>
    %1072 = tpu.concatenate %1070, %1071 in 0 : vector<2x16xf32>, vector<2x16xf32> -> vector<4x16xf32>
    %1073 = vector.extract_strided_slice %1059 {offsets = [0, 0], sizes = [2, 16], strides = [1, 1]} : vector<2x32xf32> to vector<2x16xf32>
    %1074 = vector.extract_strided_slice %1060 {offsets = [0, 16], sizes = [2, 16], strides = [1, 1]} : vector<2x32xf32> to vector<2x16xf32>
    %1075 = tpu.concatenate %1073, %1074 in 0 : vector<2x16xf32>, vector<2x16xf32> -> vector<4x16xf32>
    %1076 = vector.extract_strided_slice %1060 {offsets = [0, 0], sizes = [2, 16], strides = [1, 1]} : vector<2x32xf32> to vector<2x16xf32>
    %1077 = vector.extract_strided_slice %1059 {offsets = [0, 16], sizes = [2, 16], strides = [1, 1]} : vector<2x32xf32> to vector<2x16xf32>
    %1078 = tpu.concatenate %1076, %1077 in 0 : vector<2x16xf32>, vector<2x16xf32> -> vector<4x16xf32>
    %1079 = vector.extract_strided_slice %1061 {offsets = [0, 0], sizes = [2, 16], strides = [1, 1]} : vector<2x32xf32> to vector<2x16xf32>
    %1080 = vector.extract_strided_slice %1058 {offsets = [0, 16], sizes = [2, 16], strides = [1, 1]} : vector<2x32xf32> to vector<2x16xf32>
    %1081 = tpu.concatenate %1079, %1080 in 0 : vector<2x16xf32>, vector<2x16xf32> -> vector<4x16xf32>
    %1082 = vector.extract_strided_slice %1062 {offsets = [0, 0], sizes = [2, 16], strides = [1, 1]} : vector<2x32xf32> to vector<2x16xf32>
    %1083 = vector.extract_strided_slice %1057 {offsets = [0, 16], sizes = [2, 16], strides = [1, 1]} : vector<2x32xf32> to vector<2x16xf32>
    %1084 = tpu.concatenate %1082, %1083 in 0 : vector<2x16xf32>, vector<2x16xf32> -> vector<4x16xf32>
    %1085 = vector.extract_strided_slice %1063 {offsets = [0, 0], sizes = [2, 16], strides = [1, 1]} : vector<2x32xf32> to vector<2x16xf32>
    %1086 = vector.extract_strided_slice %1056 {offsets = [0, 16], sizes = [2, 16], strides = [1, 1]} : vector<2x32xf32> to vector<2x16xf32>
    %1087 = tpu.concatenate %1085, %1086 in 0 : vector<2x16xf32>, vector<2x16xf32> -> vector<4x16xf32>
    %1088 = vector.extract_strided_slice %1050 {offsets = [0, 0], sizes = [1, 16], strides = [1, 1]} : vector<4x32xf32> to vector<1x16xf32>
    %1089 = vector.shape_cast %1088 : vector<1x16xf32> to vector<1x16xf32>
    %1090 = vector.broadcast %1089 : vector<1x16xf32> to vector<2x16xf32>
    %1091 = vector.extract_strided_slice %1050 {offsets = [0, 16], sizes = [1, 16], strides = [1, 1]} : vector<4x32xf32> to vector<1x16xf32>
    %1092 = vector.shape_cast %1091 : vector<1x16xf32> to vector<1x16xf32>
    %1093 = vector.broadcast %1092 : vector<1x16xf32> to vector<2x16xf32>
    %1094 = tpu.concatenate %1090, %1093 in 0 : vector<2x16xf32>, vector<2x16xf32> -> vector<4x16xf32>
    %1095 = vector.extract_strided_slice %1050 {offsets = [1, 0], sizes = [1, 16], strides = [1, 1]} : vector<4x32xf32> to vector<1x16xf32>
    %1096 = vector.shape_cast %1095 : vector<1x16xf32> to vector<1x16xf32>
    %1097 = vector.broadcast %1096 : vector<1x16xf32> to vector<2x16xf32>
    %1098 = vector.extract_strided_slice %1050 {offsets = [1, 16], sizes = [1, 16], strides = [1, 1]} : vector<4x32xf32> to vector<1x16xf32>
    %1099 = vector.shape_cast %1098 : vector<1x16xf32> to vector<1x16xf32>
    %1100 = vector.broadcast %1099 : vector<1x16xf32> to vector<2x16xf32>
    %1101 = tpu.concatenate %1097, %1100 in 0 : vector<2x16xf32>, vector<2x16xf32> -> vector<4x16xf32>
    %1102 = vector.extract_strided_slice %1050 {offsets = [2, 0], sizes = [1, 16], strides = [1, 1]} : vector<4x32xf32> to vector<1x16xf32>
    %1103 = vector.shape_cast %1102 : vector<1x16xf32> to vector<1x16xf32>
    %1104 = vector.broadcast %1103 : vector<1x16xf32> to vector<2x16xf32>
    %1105 = vector.extract_strided_slice %1050 {offsets = [2, 16], sizes = [1, 16], strides = [1, 1]} : vector<4x32xf32> to vector<1x16xf32>
    %1106 = vector.shape_cast %1105 : vector<1x16xf32> to vector<1x16xf32>
    %1107 = vector.broadcast %1106 : vector<1x16xf32> to vector<2x16xf32>
    %1108 = tpu.concatenate %1104, %1107 in 0 : vector<2x16xf32>, vector<2x16xf32> -> vector<4x16xf32>
    %1109 = vector.extract_strided_slice %1050 {offsets = [3, 0], sizes = [1, 16], strides = [1, 1]} : vector<4x32xf32> to vector<1x16xf32>
    %1110 = vector.shape_cast %1109 : vector<1x16xf32> to vector<1x16xf32>
    %1111 = vector.broadcast %1110 : vector<1x16xf32> to vector<2x16xf32>
    %1112 = vector.extract_strided_slice %1050 {offsets = [3, 16], sizes = [1, 16], strides = [1, 1]} : vector<4x32xf32> to vector<1x16xf32>
    %1113 = vector.shape_cast %1112 : vector<1x16xf32> to vector<1x16xf32>
    %1114 = vector.broadcast %1113 : vector<1x16xf32> to vector<2x16xf32>
    %1115 = tpu.concatenate %1111, %1114 in 0 : vector<2x16xf32>, vector<2x16xf32> -> vector<4x16xf32>
    %cst_90 = arith.constant 0.000000e+00 : f32
    %1116 = vector.broadcast %cst_90 : f32 to vector<4x4xf32>
    %cst_91 = arith.constant 0.000000e+00 : f32
    %1117 = vector.broadcast %cst_91 : f32 to vector<4x4xf32>
    %1118 = vector.extract_strided_slice %1116 {offsets = [0, 0], sizes = [4, 1], strides = [1, 1]} : vector<4x4xf32> to vector<4x1xf32>
    %1119 = vector.extract_strided_slice %1116 {offsets = [0, 1], sizes = [4, 1], strides = [1, 1]} : vector<4x4xf32> to vector<4x1xf32>
    %1120 = vector.extract_strided_slice %1116 {offsets = [0, 2], sizes = [4, 1], strides = [1, 1]} : vector<4x4xf32> to vector<4x1xf32>
    %1121 = vector.extract_strided_slice %1116 {offsets = [0, 3], sizes = [4, 1], strides = [1, 1]} : vector<4x4xf32> to vector<4x1xf32>
    %1122 = vector.broadcast %1118 : vector<4x1xf32> to vector<4x16xf32>
    %1123 = arith.mulf %1122, %1094 : vector<4x16xf32>
    %1124 = vector.broadcast %1119 : vector<4x1xf32> to vector<4x16xf32>
    %1125 = arith.mulf %1124, %1101 : vector<4x16xf32>
    %1126 = arith.addf %1123, %1125 : vector<4x16xf32>
    %1127 = vector.broadcast %1120 : vector<4x1xf32> to vector<4x16xf32>
    %1128 = arith.mulf %1127, %1108 : vector<4x16xf32>
    %1129 = arith.addf %1126, %1128 : vector<4x16xf32>
    %1130 = vector.broadcast %1121 : vector<4x1xf32> to vector<4x16xf32>
    %1131 = arith.mulf %1130, %1115 : vector<4x16xf32>
    %1132 = arith.addf %1129, %1131 : vector<4x16xf32>
    %1133 = arith.addf %1066, %1132 : vector<4x16xf32>
    %1134 = math.tanh %1133 : vector<4x16xf32>
    %cst_92 = arith.constant 5.000000e-01 : f32
    %1135 = vector.broadcast %cst_92 : f32 to vector<4x16xf32>
    %1136 = arith.mulf %1134, %1135 : vector<4x16xf32>
    %cst_93 = arith.constant 5.000000e-01 : f32
    %1137 = vector.broadcast %cst_93 : f32 to vector<4x16xf32>
    %1138 = arith.addf %1136, %1137 : vector<4x16xf32>
    %1139 = vector.extract_strided_slice %1138 {offsets = [0, 0], sizes = [4, 4], strides = [1, 1]} : vector<4x16xf32> to vector<4x4xf32>
    %1140 = vector.extract_strided_slice %1138 {offsets = [0, 4], sizes = [4, 4], strides = [1, 1]} : vector<4x16xf32> to vector<4x4xf32>
    %1141 = vector.extract_strided_slice %1134 {offsets = [0, 8], sizes = [4, 4], strides = [1, 1]} : vector<4x16xf32> to vector<4x4xf32>
    %1142 = vector.extract_strided_slice %1138 {offsets = [0, 12], sizes = [4, 4], strides = [1, 1]} : vector<4x16xf32> to vector<4x4xf32>
    %1143 = arith.mulf %1140, %1117 : vector<4x4xf32>
    %1144 = arith.mulf %1139, %1141 : vector<4x4xf32>
    %1145 = arith.addf %1143, %1144 : vector<4x4xf32>
    %1146 = math.tanh %1145 : vector<4x4xf32>
    %1147 = arith.mulf %1142, %1146 : vector<4x4xf32>
    %1148 = vector.extract_strided_slice %1147 {offsets = [0, 0], sizes = [4, 1], strides = [1, 1]} : vector<4x4xf32> to vector<4x1xf32>
    %1149 = vector.extract_strided_slice %1147 {offsets = [0, 1], sizes = [4, 1], strides = [1, 1]} : vector<4x4xf32> to vector<4x1xf32>
    %1150 = vector.extract_strided_slice %1147 {offsets = [0, 2], sizes = [4, 1], strides = [1, 1]} : vector<4x4xf32> to vector<4x1xf32>
    %1151 = vector.extract_strided_slice %1147 {offsets = [0, 3], sizes = [4, 1], strides = [1, 1]} : vector<4x4xf32> to vector<4x1xf32>
    %1152 = vector.extract_strided_slice %1147 {offsets = [0, 0], sizes = [2, 4], strides = [1, 1]} : vector<4x4xf32> to vector<2x4xf32>
    %1153 = vector.extract_strided_slice %1147 {offsets = [2, 0], sizes = [2, 4], strides = [1, 1]} : vector<4x4xf32> to vector<2x4xf32>
    %1154 = vector.broadcast %1148 : vector<4x1xf32> to vector<4x16xf32>
    %1155 = arith.mulf %1154, %1094 : vector<4x16xf32>
    %1156 = vector.broadcast %1149 : vector<4x1xf32> to vector<4x16xf32>
    %1157 = arith.mulf %1156, %1101 : vector<4x16xf32>
    %1158 = arith.addf %1155, %1157 : vector<4x16xf32>
    %1159 = vector.broadcast %1150 : vector<4x1xf32> to vector<4x16xf32>
    %1160 = arith.mulf %1159, %1108 : vector<4x16xf32>
    %1161 = arith.addf %1158, %1160 : vector<4x16xf32>
    %1162 = vector.broadcast %1151 : vector<4x1xf32> to vector<4x16xf32>
    %1163 = arith.mulf %1162, %1115 : vector<4x16xf32>
    %1164 = arith.addf %1161, %1163 : vector<4x16xf32>
    %1165 = arith.addf %1069, %1164 : vector<4x16xf32>
    %1166 = math.tanh %1165 : vector<4x16xf32>
    %cst_94 = arith.constant 5.000000e-01 : f32
    %1167 = vector.broadcast %cst_94 : f32 to vector<4x16xf32>
    %1168 = arith.mulf %1166, %1167 : vector<4x16xf32>
    %cst_95 = arith.constant 5.000000e-01 : f32
    %1169 = vector.broadcast %cst_95 : f32 to vector<4x16xf32>
    %1170 = arith.addf %1168, %1169 : vector<4x16xf32>
    %1171 = vector.extract_strided_slice %1170 {offsets = [0, 0], sizes = [4, 4], strides = [1, 1]} : vector<4x16xf32> to vector<4x4xf32>
    %1172 = vector.extract_strided_slice %1170 {offsets = [0, 4], sizes = [4, 4], strides = [1, 1]} : vector<4x16xf32> to vector<4x4xf32>
    %1173 = vector.extract_strided_slice %1166 {offsets = [0, 8], sizes = [4, 4], strides = [1, 1]} : vector<4x16xf32> to vector<4x4xf32>
    %1174 = vector.extract_strided_slice %1170 {offsets = [0, 12], sizes = [4, 4], strides = [1, 1]} : vector<4x16xf32> to vector<4x4xf32>
    %1175 = arith.mulf %1172, %1145 : vector<4x4xf32>
    %1176 = arith.mulf %1171, %1173 : vector<4x4xf32>
    %1177 = arith.addf %1175, %1176 : vector<4x4xf32>
    %1178 = math.tanh %1177 : vector<4x4xf32>
    %1179 = arith.mulf %1174, %1178 : vector<4x4xf32>
    %1180 = vector.extract_strided_slice %1179 {offsets = [0, 0], sizes = [4, 1], strides = [1, 1]} : vector<4x4xf32> to vector<4x1xf32>
    %1181 = vector.extract_strided_slice %1179 {offsets = [0, 1], sizes = [4, 1], strides = [1, 1]} : vector<4x4xf32> to vector<4x1xf32>
    %1182 = vector.extract_strided_slice %1179 {offsets = [0, 2], sizes = [4, 1], strides = [1, 1]} : vector<4x4xf32> to vector<4x1xf32>
    %1183 = vector.extract_strided_slice %1179 {offsets = [0, 3], sizes = [4, 1], strides = [1, 1]} : vector<4x4xf32> to vector<4x1xf32>
    %1184 = vector.extract_strided_slice %1179 {offsets = [0, 0], sizes = [2, 4], strides = [1, 1]} : vector<4x4xf32> to vector<2x4xf32>
    %1185 = vector.extract_strided_slice %1179 {offsets = [2, 0], sizes = [2, 4], strides = [1, 1]} : vector<4x4xf32> to vector<2x4xf32>
    %1186 = vector.broadcast %1180 : vector<4x1xf32> to vector<4x16xf32>
    %1187 = arith.mulf %1186, %1094 : vector<4x16xf32>
    %1188 = vector.broadcast %1181 : vector<4x1xf32> to vector<4x16xf32>
    %1189 = arith.mulf %1188, %1101 : vector<4x16xf32>
    %1190 = arith.addf %1187, %1189 : vector<4x16xf32>
    %1191 = vector.broadcast %1182 : vector<4x1xf32> to vector<4x16xf32>
    %1192 = arith.mulf %1191, %1108 : vector<4x16xf32>
    %1193 = arith.addf %1190, %1192 : vector<4x16xf32>
    %1194 = vector.broadcast %1183 : vector<4x1xf32> to vector<4x16xf32>
    %1195 = arith.mulf %1194, %1115 : vector<4x16xf32>
    %1196 = arith.addf %1193, %1195 : vector<4x16xf32>
    %1197 = arith.addf %1072, %1196 : vector<4x16xf32>
    %1198 = math.tanh %1197 : vector<4x16xf32>
    %cst_96 = arith.constant 5.000000e-01 : f32
    %1199 = vector.broadcast %cst_96 : f32 to vector<4x16xf32>
    %1200 = arith.mulf %1198, %1199 : vector<4x16xf32>
    %cst_97 = arith.constant 5.000000e-01 : f32
    %1201 = vector.broadcast %cst_97 : f32 to vector<4x16xf32>
    %1202 = arith.addf %1200, %1201 : vector<4x16xf32>
    %1203 = vector.extract_strided_slice %1202 {offsets = [0, 0], sizes = [4, 4], strides = [1, 1]} : vector<4x16xf32> to vector<4x4xf32>
    %1204 = vector.extract_strided_slice %1202 {offsets = [0, 4], sizes = [4, 4], strides = [1, 1]} : vector<4x16xf32> to vector<4x4xf32>
    %1205 = vector.extract_strided_slice %1198 {offsets = [0, 8], sizes = [4, 4], strides = [1, 1]} : vector<4x16xf32> to vector<4x4xf32>
    %1206 = vector.extract_strided_slice %1202 {offsets = [0, 12], sizes = [4, 4], strides = [1, 1]} : vector<4x16xf32> to vector<4x4xf32>
    %1207 = arith.mulf %1204, %1177 : vector<4x4xf32>
    %1208 = arith.mulf %1203, %1205 : vector<4x4xf32>
    %1209 = arith.addf %1207, %1208 : vector<4x4xf32>
    %1210 = math.tanh %1209 : vector<4x4xf32>
    %1211 = arith.mulf %1206, %1210 : vector<4x4xf32>
    %1212 = vector.extract_strided_slice %1211 {offsets = [0, 0], sizes = [4, 1], strides = [1, 1]} : vector<4x4xf32> to vector<4x1xf32>
    %1213 = vector.extract_strided_slice %1211 {offsets = [0, 1], sizes = [4, 1], strides = [1, 1]} : vector<4x4xf32> to vector<4x1xf32>
    %1214 = vector.extract_strided_slice %1211 {offsets = [0, 2], sizes = [4, 1], strides = [1, 1]} : vector<4x4xf32> to vector<4x1xf32>
    %1215 = vector.extract_strided_slice %1211 {offsets = [0, 3], sizes = [4, 1], strides = [1, 1]} : vector<4x4xf32> to vector<4x1xf32>
    %1216 = vector.extract_strided_slice %1211 {offsets = [0, 0], sizes = [2, 4], strides = [1, 1]} : vector<4x4xf32> to vector<2x4xf32>
    %1217 = vector.extract_strided_slice %1211 {offsets = [2, 0], sizes = [2, 4], strides = [1, 1]} : vector<4x4xf32> to vector<2x4xf32>
    %1218 = vector.broadcast %1212 : vector<4x1xf32> to vector<4x16xf32>
    %1219 = arith.mulf %1218, %1094 : vector<4x16xf32>
    %1220 = vector.broadcast %1213 : vector<4x1xf32> to vector<4x16xf32>
    %1221 = arith.mulf %1220, %1101 : vector<4x16xf32>
    %1222 = arith.addf %1219, %1221 : vector<4x16xf32>
    %1223 = vector.broadcast %1214 : vector<4x1xf32> to vector<4x16xf32>
    %1224 = arith.mulf %1223, %1108 : vector<4x16xf32>
    %1225 = arith.addf %1222, %1224 : vector<4x16xf32>
    %1226 = vector.broadcast %1215 : vector<4x1xf32> to vector<4x16xf32>
    %1227 = arith.mulf %1226, %1115 : vector<4x16xf32>
    %1228 = arith.addf %1225, %1227 : vector<4x16xf32>
    %1229 = arith.addf %1075, %1228 : vector<4x16xf32>
    %1230 = math.tanh %1229 : vector<4x16xf32>
    %cst_98 = arith.constant 5.000000e-01 : f32
    %1231 = vector.broadcast %cst_98 : f32 to vector<4x16xf32>
    %1232 = arith.mulf %1230, %1231 : vector<4x16xf32>
    %cst_99 = arith.constant 5.000000e-01 : f32
    %1233 = vector.broadcast %cst_99 : f32 to vector<4x16xf32>
    %1234 = arith.addf %1232, %1233 : vector<4x16xf32>
    %1235 = vector.extract_strided_slice %1234 {offsets = [0, 0], sizes = [4, 4], strides = [1, 1]} : vector<4x16xf32> to vector<4x4xf32>
    %1236 = vector.extract_strided_slice %1234 {offsets = [0, 4], sizes = [4, 4], strides = [1, 1]} : vector<4x16xf32> to vector<4x4xf32>
    %1237 = vector.extract_strided_slice %1230 {offsets = [0, 8], sizes = [4, 4], strides = [1, 1]} : vector<4x16xf32> to vector<4x4xf32>
    %1238 = vector.extract_strided_slice %1234 {offsets = [0, 12], sizes = [4, 4], strides = [1, 1]} : vector<4x16xf32> to vector<4x4xf32>
    %1239 = arith.mulf %1236, %1209 : vector<4x4xf32>
    %1240 = arith.mulf %1235, %1237 : vector<4x4xf32>
    %1241 = arith.addf %1239, %1240 : vector<4x4xf32>
    %1242 = math.tanh %1241 : vector<4x4xf32>
    %1243 = arith.mulf %1238, %1242 : vector<4x4xf32>
    %1244 = vector.extract_strided_slice %1243 {offsets = [0, 0], sizes = [4, 1], strides = [1, 1]} : vector<4x4xf32> to vector<4x1xf32>
    %1245 = vector.extract_strided_slice %1243 {offsets = [0, 1], sizes = [4, 1], strides = [1, 1]} : vector<4x4xf32> to vector<4x1xf32>
    %1246 = vector.extract_strided_slice %1243 {offsets = [0, 2], sizes = [4, 1], strides = [1, 1]} : vector<4x4xf32> to vector<4x1xf32>
    %1247 = vector.extract_strided_slice %1243 {offsets = [0, 3], sizes = [4, 1], strides = [1, 1]} : vector<4x4xf32> to vector<4x1xf32>
    %1248 = vector.extract_strided_slice %1243 {offsets = [0, 0], sizes = [2, 4], strides = [1, 1]} : vector<4x4xf32> to vector<2x4xf32>
    %1249 = vector.extract_strided_slice %1243 {offsets = [2, 0], sizes = [2, 4], strides = [1, 1]} : vector<4x4xf32> to vector<2x4xf32>
    %1250 = vector.broadcast %1244 : vector<4x1xf32> to vector<4x16xf32>
    %1251 = arith.mulf %1250, %1094 : vector<4x16xf32>
    %1252 = vector.broadcast %1245 : vector<4x1xf32> to vector<4x16xf32>
    %1253 = arith.mulf %1252, %1101 : vector<4x16xf32>
    %1254 = arith.addf %1251, %1253 : vector<4x16xf32>
    %1255 = vector.broadcast %1246 : vector<4x1xf32> to vector<4x16xf32>
    %1256 = arith.mulf %1255, %1108 : vector<4x16xf32>
    %1257 = arith.addf %1254, %1256 : vector<4x16xf32>
    %1258 = vector.broadcast %1247 : vector<4x1xf32> to vector<4x16xf32>
    %1259 = arith.mulf %1258, %1115 : vector<4x16xf32>
    %1260 = arith.addf %1257, %1259 : vector<4x16xf32>
    %1261 = arith.addf %1078, %1260 : vector<4x16xf32>
    %1262 = math.tanh %1261 : vector<4x16xf32>
    %cst_100 = arith.constant 5.000000e-01 : f32
    %1263 = vector.broadcast %cst_100 : f32 to vector<4x16xf32>
    %1264 = arith.mulf %1262, %1263 : vector<4x16xf32>
    %cst_101 = arith.constant 5.000000e-01 : f32
    %1265 = vector.broadcast %cst_101 : f32 to vector<4x16xf32>
    %1266 = arith.addf %1264, %1265 : vector<4x16xf32>
    %1267 = vector.extract_strided_slice %1266 {offsets = [0, 0], sizes = [4, 4], strides = [1, 1]} : vector<4x16xf32> to vector<4x4xf32>
    %1268 = vector.extract_strided_slice %1266 {offsets = [0, 4], sizes = [4, 4], strides = [1, 1]} : vector<4x16xf32> to vector<4x4xf32>
    %1269 = vector.extract_strided_slice %1262 {offsets = [0, 8], sizes = [4, 4], strides = [1, 1]} : vector<4x16xf32> to vector<4x4xf32>
    %1270 = vector.extract_strided_slice %1266 {offsets = [0, 12], sizes = [4, 4], strides = [1, 1]} : vector<4x16xf32> to vector<4x4xf32>
    %1271 = arith.mulf %1268, %1241 : vector<4x4xf32>
    %1272 = arith.mulf %1267, %1269 : vector<4x4xf32>
    %1273 = arith.addf %1271, %1272 : vector<4x4xf32>
    %1274 = math.tanh %1273 : vector<4x4xf32>
    %1275 = arith.mulf %1270, %1274 : vector<4x4xf32>
    %1276 = vector.extract_strided_slice %1275 {offsets = [0, 0], sizes = [4, 1], strides = [1, 1]} : vector<4x4xf32> to vector<4x1xf32>
    %1277 = vector.extract_strided_slice %1275 {offsets = [0, 1], sizes = [4, 1], strides = [1, 1]} : vector<4x4xf32> to vector<4x1xf32>
    %1278 = vector.extract_strided_slice %1275 {offsets = [0, 2], sizes = [4, 1], strides = [1, 1]} : vector<4x4xf32> to vector<4x1xf32>
    %1279 = vector.extract_strided_slice %1275 {offsets = [0, 3], sizes = [4, 1], strides = [1, 1]} : vector<4x4xf32> to vector<4x1xf32>
    %1280 = vector.extract_strided_slice %1275 {offsets = [0, 0], sizes = [2, 4], strides = [1, 1]} : vector<4x4xf32> to vector<2x4xf32>
    %1281 = vector.extract_strided_slice %1275 {offsets = [2, 0], sizes = [2, 4], strides = [1, 1]} : vector<4x4xf32> to vector<2x4xf32>
    %1282 = vector.broadcast %1276 : vector<4x1xf32> to vector<4x16xf32>
    %1283 = arith.mulf %1282, %1094 : vector<4x16xf32>
    %1284 = vector.broadcast %1277 : vector<4x1xf32> to vector<4x16xf32>
    %1285 = arith.mulf %1284, %1101 : vector<4x16xf32>
    %1286 = arith.addf %1283, %1285 : vector<4x16xf32>
    %1287 = vector.broadcast %1278 : vector<4x1xf32> to vector<4x16xf32>
    %1288 = arith.mulf %1287, %1108 : vector<4x16xf32>
    %1289 = arith.addf %1286, %1288 : vector<4x16xf32>
    %1290 = vector.broadcast %1279 : vector<4x1xf32> to vector<4x16xf32>
    %1291 = arith.mulf %1290, %1115 : vector<4x16xf32>
    %1292 = arith.addf %1289, %1291 : vector<4x16xf32>
    %1293 = arith.addf %1081, %1292 : vector<4x16xf32>
    %1294 = math.tanh %1293 : vector<4x16xf32>
    %cst_102 = arith.constant 5.000000e-01 : f32
    %1295 = vector.broadcast %cst_102 : f32 to vector<4x16xf32>
    %1296 = arith.mulf %1294, %1295 : vector<4x16xf32>
    %cst_103 = arith.constant 5.000000e-01 : f32
    %1297 = vector.broadcast %cst_103 : f32 to vector<4x16xf32>
    %1298 = arith.addf %1296, %1297 : vector<4x16xf32>
    %1299 = vector.extract_strided_slice %1298 {offsets = [0, 0], sizes = [4, 4], strides = [1, 1]} : vector<4x16xf32> to vector<4x4xf32>
    %1300 = vector.extract_strided_slice %1298 {offsets = [0, 4], sizes = [4, 4], strides = [1, 1]} : vector<4x16xf32> to vector<4x4xf32>
    %1301 = vector.extract_strided_slice %1294 {offsets = [0, 8], sizes = [4, 4], strides = [1, 1]} : vector<4x16xf32> to vector<4x4xf32>
    %1302 = vector.extract_strided_slice %1298 {offsets = [0, 12], sizes = [4, 4], strides = [1, 1]} : vector<4x16xf32> to vector<4x4xf32>
    %1303 = arith.mulf %1300, %1273 : vector<4x4xf32>
    %1304 = arith.mulf %1299, %1301 : vector<4x4xf32>
    %1305 = arith.addf %1303, %1304 : vector<4x4xf32>
    %1306 = math.tanh %1305 : vector<4x4xf32>
    %1307 = arith.mulf %1302, %1306 : vector<4x4xf32>
    %1308 = vector.extract_strided_slice %1307 {offsets = [0, 0], sizes = [4, 1], strides = [1, 1]} : vector<4x4xf32> to vector<4x1xf32>
    %1309 = vector.extract_strided_slice %1307 {offsets = [0, 1], sizes = [4, 1], strides = [1, 1]} : vector<4x4xf32> to vector<4x1xf32>
    %1310 = vector.extract_strided_slice %1307 {offsets = [0, 2], sizes = [4, 1], strides = [1, 1]} : vector<4x4xf32> to vector<4x1xf32>
    %1311 = vector.extract_strided_slice %1307 {offsets = [0, 3], sizes = [4, 1], strides = [1, 1]} : vector<4x4xf32> to vector<4x1xf32>
    %1312 = vector.extract_strided_slice %1307 {offsets = [0, 0], sizes = [2, 4], strides = [1, 1]} : vector<4x4xf32> to vector<2x4xf32>
    %1313 = vector.extract_strided_slice %1307 {offsets = [2, 0], sizes = [2, 4], strides = [1, 1]} : vector<4x4xf32> to vector<2x4xf32>
    %1314 = vector.broadcast %1308 : vector<4x1xf32> to vector<4x16xf32>
    %1315 = arith.mulf %1314, %1094 : vector<4x16xf32>
    %1316 = vector.broadcast %1309 : vector<4x1xf32> to vector<4x16xf32>
    %1317 = arith.mulf %1316, %1101 : vector<4x16xf32>
    %1318 = arith.addf %1315, %1317 : vector<4x16xf32>
    %1319 = vector.broadcast %1310 : vector<4x1xf32> to vector<4x16xf32>
    %1320 = arith.mulf %1319, %1108 : vector<4x16xf32>
    %1321 = arith.addf %1318, %1320 : vector<4x16xf32>
    %1322 = vector.broadcast %1311 : vector<4x1xf32> to vector<4x16xf32>
    %1323 = arith.mulf %1322, %1115 : vector<4x16xf32>
    %1324 = arith.addf %1321, %1323 : vector<4x16xf32>
    %1325 = arith.addf %1084, %1324 : vector<4x16xf32>
    %1326 = math.tanh %1325 : vector<4x16xf32>
    %cst_104 = arith.constant 5.000000e-01 : f32
    %1327 = vector.broadcast %cst_104 : f32 to vector<4x16xf32>
    %1328 = arith.mulf %1326, %1327 : vector<4x16xf32>
    %cst_105 = arith.constant 5.000000e-01 : f32
    %1329 = vector.broadcast %cst_105 : f32 to vector<4x16xf32>
    %1330 = arith.addf %1328, %1329 : vector<4x16xf32>
    %1331 = vector.extract_strided_slice %1330 {offsets = [0, 0], sizes = [4, 4], strides = [1, 1]} : vector<4x16xf32> to vector<4x4xf32>
    %1332 = vector.extract_strided_slice %1330 {offsets = [0, 4], sizes = [4, 4], strides = [1, 1]} : vector<4x16xf32> to vector<4x4xf32>
    %1333 = vector.extract_strided_slice %1326 {offsets = [0, 8], sizes = [4, 4], strides = [1, 1]} : vector<4x16xf32> to vector<4x4xf32>
    %1334 = vector.extract_strided_slice %1330 {offsets = [0, 12], sizes = [4, 4], strides = [1, 1]} : vector<4x16xf32> to vector<4x4xf32>
    %1335 = arith.mulf %1332, %1305 : vector<4x4xf32>
    %1336 = arith.mulf %1331, %1333 : vector<4x4xf32>
    %1337 = arith.addf %1335, %1336 : vector<4x4xf32>
    %1338 = math.tanh %1337 : vector<4x4xf32>
    %1339 = arith.mulf %1334, %1338 : vector<4x4xf32>
    %1340 = vector.extract_strided_slice %1339 {offsets = [0, 0], sizes = [4, 1], strides = [1, 1]} : vector<4x4xf32> to vector<4x1xf32>
    %1341 = vector.extract_strided_slice %1339 {offsets = [0, 1], sizes = [4, 1], strides = [1, 1]} : vector<4x4xf32> to vector<4x1xf32>
    %1342 = vector.extract_strided_slice %1339 {offsets = [0, 2], sizes = [4, 1], strides = [1, 1]} : vector<4x4xf32> to vector<4x1xf32>
    %1343 = vector.extract_strided_slice %1339 {offsets = [0, 3], sizes = [4, 1], strides = [1, 1]} : vector<4x4xf32> to vector<4x1xf32>
    %1344 = vector.extract_strided_slice %1339 {offsets = [0, 0], sizes = [2, 4], strides = [1, 1]} : vector<4x4xf32> to vector<2x4xf32>
    %1345 = vector.extract_strided_slice %1339 {offsets = [2, 0], sizes = [2, 4], strides = [1, 1]} : vector<4x4xf32> to vector<2x4xf32>
    %1346 = vector.broadcast %1340 : vector<4x1xf32> to vector<4x16xf32>
    %1347 = arith.mulf %1346, %1094 : vector<4x16xf32>
    %1348 = vector.broadcast %1341 : vector<4x1xf32> to vector<4x16xf32>
    %1349 = arith.mulf %1348, %1101 : vector<4x16xf32>
    %1350 = arith.addf %1347, %1349 : vector<4x16xf32>
    %1351 = vector.broadcast %1342 : vector<4x1xf32> to vector<4x16xf32>
    %1352 = arith.mulf %1351, %1108 : vector<4x16xf32>
    %1353 = arith.addf %1350, %1352 : vector<4x16xf32>
    %1354 = vector.broadcast %1343 : vector<4x1xf32> to vector<4x16xf32>
    %1355 = arith.mulf %1354, %1115 : vector<4x16xf32>
    %1356 = arith.addf %1353, %1355 : vector<4x16xf32>
    %1357 = arith.addf %1087, %1356 : vector<4x16xf32>
    %1358 = math.tanh %1357 : vector<4x16xf32>
    %cst_106 = arith.constant 5.000000e-01 : f32
    %1359 = vector.broadcast %cst_106 : f32 to vector<4x16xf32>
    %1360 = arith.mulf %1358, %1359 : vector<4x16xf32>
    %cst_107 = arith.constant 5.000000e-01 : f32
    %1361 = vector.broadcast %cst_107 : f32 to vector<4x16xf32>
    %1362 = arith.addf %1360, %1361 : vector<4x16xf32>
    %1363 = vector.extract_strided_slice %1362 {offsets = [0, 0], sizes = [4, 4], strides = [1, 1]} : vector<4x16xf32> to vector<4x4xf32>
    %1364 = vector.extract_strided_slice %1362 {offsets = [0, 4], sizes = [4, 4], strides = [1, 1]} : vector<4x16xf32> to vector<4x4xf32>
    %1365 = vector.extract_strided_slice %1358 {offsets = [0, 8], sizes = [4, 4], strides = [1, 1]} : vector<4x16xf32> to vector<4x4xf32>
    %1366 = vector.extract_strided_slice %1362 {offsets = [0, 12], sizes = [4, 4], strides = [1, 1]} : vector<4x16xf32> to vector<4x4xf32>
    %1367 = arith.mulf %1364, %1337 : vector<4x4xf32>
    %1368 = arith.mulf %1363, %1365 : vector<4x4xf32>
    %1369 = arith.addf %1367, %1368 : vector<4x4xf32>
    %1370 = math.tanh %1369 : vector<4x4xf32>
    %1371 = arith.mulf %1366, %1370 : vector<4x4xf32>
    %1372 = vector.extract_strided_slice %1371 {offsets = [0, 0], sizes = [2, 4], strides = [1, 1]} : vector<4x4xf32> to vector<2x4xf32>
    %1373 = vector.extract_strided_slice %1371 {offsets = [2, 0], sizes = [2, 4], strides = [1, 1]} : vector<4x4xf32> to vector<2x4xf32>
    %1374 = tpu.concatenate %1152, %1373 in 1 : vector<2x4xf32>, vector<2x4xf32> -> vector<2x8xf32>
    %1375 = tpu.concatenate %1184, %1345 in 1 : vector<2x4xf32>, vector<2x4xf32> -> vector<2x8xf32>
    %1376 = tpu.concatenate %1216, %1313 in 1 : vector<2x4xf32>, vector<2x4xf32> -> vector<2x8xf32>
    %1377 = tpu.concatenate %1248, %1281 in 1 : vector<2x4xf32>, vector<2x4xf32> -> vector<2x8xf32>
    %1378 = tpu.concatenate %1280, %1249 in 1 : vector<2x4xf32>, vector<2x4xf32> -> vector<2x8xf32>
    %1379 = tpu.concatenate %1312, %1217 in 1 : vector<2x4xf32>, vector<2x4xf32> -> vector<2x8xf32>
    %1380 = tpu.concatenate %1344, %1185 in 1 : vector<2x4xf32>, vector<2x4xf32> -> vector<2x8xf32>
    %1381 = tpu.concatenate %1372, %1153 in 1 : vector<2x4xf32>, vector<2x4xf32> -> vector<2x8xf32>
    %1382 = tpu.concatenate %1374, %1375, %1376, %1377, %1378, %1379, %1380, %1381 in 0 : vector<2x8xf32>, vector<2x8xf32>, vector<2x8xf32>, vector<2x8xf32>, vector<2x8xf32>, vector<2x8xf32>, vector<2x8xf32>, vector<2x8xf32> -> vector<16x8xf32>
    %c4 = arith.constant 4 : index
    %c0_108 = arith.constant 0 : index
    %c0_109 = arith.constant 0 : index
    %1383 = vector.load %arg1[%c4, %c0_108, %c0_109] : memref<5x8x32xf32, #tpu.memory_space<vmem>>, vector<1x8x32xf32>
    %1384 = vector.shape_cast %1383 : vector<1x8x32xf32> to vector<8x32xf32>
    %c4_110 = arith.constant 4 : index
    %c0_111 = arith.constant 0 : index
    %c0_112 = arith.constant 0 : index
    %1385 = vector.load %arg2[%c4_110, %c0_111, %c0_112] : memref<5x4x32xf32, #tpu.memory_space<vmem>>, vector<1x4x32xf32>
    %1386 = vector.shape_cast %1385 : vector<1x4x32xf32> to vector<4x32xf32>
    %c4_113 = arith.constant 4 : index
    %c0_114 = arith.constant 0 : index
    %c0_115 = arith.constant 0 : index
    %1387 = vector.load %arg3[%c4_113, %c0_114, %c0_115] : memref<5x1x32xf32, #tpu.memory_space<vmem>>, vector<1x1x32xf32>
    %1388 = vector.shape_cast %1387 : vector<1x1x32xf32> to vector<1x32xf32>
    %cst_116 = arith.constant dense<0.000000e+00> : vector<16x32xf32>
    %1389 = tpu.matmul %1382, %1384, %cst_116 {dimension_numbers = #tpu.dot_dimension_numbers<[1], [0], [0], [1], [0, 0, 1, 1], [], []>} : vector<16x8xf32>, vector<8x32xf32>, vector<16x32xf32> -> vector<16x32xf32>
    %1390 = vector.broadcast %1388 : vector<1x32xf32> to vector<16x32xf32>
    %1391 = arith.addf %1389, %1390 : vector<16x32xf32>
    %1392 = vector.extract_strided_slice %1391 {offsets = [0, 0], sizes = [2, 32], strides = [1, 1]} : vector<16x32xf32> to vector<2x32xf32>
    %1393 = vector.extract_strided_slice %1391 {offsets = [2, 0], sizes = [2, 32], strides = [1, 1]} : vector<16x32xf32> to vector<2x32xf32>
    %1394 = vector.extract_strided_slice %1391 {offsets = [4, 0], sizes = [2, 32], strides = [1, 1]} : vector<16x32xf32> to vector<2x32xf32>
    %1395 = vector.extract_strided_slice %1391 {offsets = [6, 0], sizes = [2, 32], strides = [1, 1]} : vector<16x32xf32> to vector<2x32xf32>
    %1396 = vector.extract_strided_slice %1391 {offsets = [8, 0], sizes = [2, 32], strides = [1, 1]} : vector<16x32xf32> to vector<2x32xf32>
    %1397 = vector.extract_strided_slice %1391 {offsets = [10, 0], sizes = [2, 32], strides = [1, 1]} : vector<16x32xf32> to vector<2x32xf32>
    %1398 = vector.extract_strided_slice %1391 {offsets = [12, 0], sizes = [2, 32], strides = [1, 1]} : vector<16x32xf32> to vector<2x32xf32>
    %1399 = vector.extract_strided_slice %1391 {offsets = [14, 0], sizes = [2, 32], strides = [1, 1]} : vector<16x32xf32> to vector<2x32xf32>
    %1400 = vector.extract_strided_slice %1392 {offsets = [0, 0], sizes = [2, 16], strides = [1, 1]} : vector<2x32xf32> to vector<2x16xf32>
    %1401 = vector.extract_strided_slice %1399 {offsets = [0, 16], sizes = [2, 16], strides = [1, 1]} : vector<2x32xf32> to vector<2x16xf32>
    %1402 = tpu.concatenate %1400, %1401 in 0 : vector<2x16xf32>, vector<2x16xf32> -> vector<4x16xf32>
    %1403 = vector.extract_strided_slice %1393 {offsets = [0, 0], sizes = [2, 16], strides = [1, 1]} : vector<2x32xf32> to vector<2x16xf32>
    %1404 = vector.extract_strided_slice %1398 {offsets = [0, 16], sizes = [2, 16], strides = [1, 1]} : vector<2x32xf32> to vector<2x16xf32>
    %1405 = tpu.concatenate %1403, %1404 in 0 : vector<2x16xf32>, vector<2x16xf32> -> vector<4x16xf32>
    %1406 = vector.extract_strided_slice %1394 {offsets = [0, 0], sizes = [2, 16], strides = [1, 1]} : vector<2x32xf32> to vector<2x16xf32>
    %1407 = vector.extract_strided_slice %1397 {offsets = [0, 16], sizes = [2, 16], strides = [1, 1]} : vector<2x32xf32> to vector<2x16xf32>
    %1408 = tpu.concatenate %1406, %1407 in 0 : vector<2x16xf32>, vector<2x16xf32> -> vector<4x16xf32>
    %1409 = vector.extract_strided_slice %1395 {offsets = [0, 0], sizes = [2, 16], strides = [1, 1]} : vector<2x32xf32> to vector<2x16xf32>
    %1410 = vector.extract_strided_slice %1396 {offsets = [0, 16], sizes = [2, 16], strides = [1, 1]} : vector<2x32xf32> to vector<2x16xf32>
    %1411 = tpu.concatenate %1409, %1410 in 0 : vector<2x16xf32>, vector<2x16xf32> -> vector<4x16xf32>
    %1412 = vector.extract_strided_slice %1396 {offsets = [0, 0], sizes = [2, 16], strides = [1, 1]} : vector<2x32xf32> to vector<2x16xf32>
    %1413 = vector.extract_strided_slice %1395 {offsets = [0, 16], sizes = [2, 16], strides = [1, 1]} : vector<2x32xf32> to vector<2x16xf32>
    %1414 = tpu.concatenate %1412, %1413 in 0 : vector<2x16xf32>, vector<2x16xf32> -> vector<4x16xf32>
    %1415 = vector.extract_strided_slice %1397 {offsets = [0, 0], sizes = [2, 16], strides = [1, 1]} : vector<2x32xf32> to vector<2x16xf32>
    %1416 = vector.extract_strided_slice %1394 {offsets = [0, 16], sizes = [2, 16], strides = [1, 1]} : vector<2x32xf32> to vector<2x16xf32>
    %1417 = tpu.concatenate %1415, %1416 in 0 : vector<2x16xf32>, vector<2x16xf32> -> vector<4x16xf32>
    %1418 = vector.extract_strided_slice %1398 {offsets = [0, 0], sizes = [2, 16], strides = [1, 1]} : vector<2x32xf32> to vector<2x16xf32>
    %1419 = vector.extract_strided_slice %1393 {offsets = [0, 16], sizes = [2, 16], strides = [1, 1]} : vector<2x32xf32> to vector<2x16xf32>
    %1420 = tpu.concatenate %1418, %1419 in 0 : vector<2x16xf32>, vector<2x16xf32> -> vector<4x16xf32>
    %1421 = vector.extract_strided_slice %1399 {offsets = [0, 0], sizes = [2, 16], strides = [1, 1]} : vector<2x32xf32> to vector<2x16xf32>
    %1422 = vector.extract_strided_slice %1392 {offsets = [0, 16], sizes = [2, 16], strides = [1, 1]} : vector<2x32xf32> to vector<2x16xf32>
    %1423 = tpu.concatenate %1421, %1422 in 0 : vector<2x16xf32>, vector<2x16xf32> -> vector<4x16xf32>
    %1424 = vector.extract_strided_slice %1386 {offsets = [0, 0], sizes = [1, 16], strides = [1, 1]} : vector<4x32xf32> to vector<1x16xf32>
    %1425 = vector.shape_cast %1424 : vector<1x16xf32> to vector<1x16xf32>
    %1426 = vector.broadcast %1425 : vector<1x16xf32> to vector<2x16xf32>
    %1427 = vector.extract_strided_slice %1386 {offsets = [0, 16], sizes = [1, 16], strides = [1, 1]} : vector<4x32xf32> to vector<1x16xf32>
    %1428 = vector.shape_cast %1427 : vector<1x16xf32> to vector<1x16xf32>
    %1429 = vector.broadcast %1428 : vector<1x16xf32> to vector<2x16xf32>
    %1430 = tpu.concatenate %1426, %1429 in 0 : vector<2x16xf32>, vector<2x16xf32> -> vector<4x16xf32>
    %1431 = vector.extract_strided_slice %1386 {offsets = [1, 0], sizes = [1, 16], strides = [1, 1]} : vector<4x32xf32> to vector<1x16xf32>
    %1432 = vector.shape_cast %1431 : vector<1x16xf32> to vector<1x16xf32>
    %1433 = vector.broadcast %1432 : vector<1x16xf32> to vector<2x16xf32>
    %1434 = vector.extract_strided_slice %1386 {offsets = [1, 16], sizes = [1, 16], strides = [1, 1]} : vector<4x32xf32> to vector<1x16xf32>
    %1435 = vector.shape_cast %1434 : vector<1x16xf32> to vector<1x16xf32>
    %1436 = vector.broadcast %1435 : vector<1x16xf32> to vector<2x16xf32>
    %1437 = tpu.concatenate %1433, %1436 in 0 : vector<2x16xf32>, vector<2x16xf32> -> vector<4x16xf32>
    %1438 = vector.extract_strided_slice %1386 {offsets = [2, 0], sizes = [1, 16], strides = [1, 1]} : vector<4x32xf32> to vector<1x16xf32>
    %1439 = vector.shape_cast %1438 : vector<1x16xf32> to vector<1x16xf32>
    %1440 = vector.broadcast %1439 : vector<1x16xf32> to vector<2x16xf32>
    %1441 = vector.extract_strided_slice %1386 {offsets = [2, 16], sizes = [1, 16], strides = [1, 1]} : vector<4x32xf32> to vector<1x16xf32>
    %1442 = vector.shape_cast %1441 : vector<1x16xf32> to vector<1x16xf32>
    %1443 = vector.broadcast %1442 : vector<1x16xf32> to vector<2x16xf32>
    %1444 = tpu.concatenate %1440, %1443 in 0 : vector<2x16xf32>, vector<2x16xf32> -> vector<4x16xf32>
    %1445 = vector.extract_strided_slice %1386 {offsets = [3, 0], sizes = [1, 16], strides = [1, 1]} : vector<4x32xf32> to vector<1x16xf32>
    %1446 = vector.shape_cast %1445 : vector<1x16xf32> to vector<1x16xf32>
    %1447 = vector.broadcast %1446 : vector<1x16xf32> to vector<2x16xf32>
    %1448 = vector.extract_strided_slice %1386 {offsets = [3, 16], sizes = [1, 16], strides = [1, 1]} : vector<4x32xf32> to vector<1x16xf32>
    %1449 = vector.shape_cast %1448 : vector<1x16xf32> to vector<1x16xf32>
    %1450 = vector.broadcast %1449 : vector<1x16xf32> to vector<2x16xf32>
    %1451 = tpu.concatenate %1447, %1450 in 0 : vector<2x16xf32>, vector<2x16xf32> -> vector<4x16xf32>
    %cst_117 = arith.constant 0.000000e+00 : f32
    %1452 = vector.broadcast %cst_117 : f32 to vector<4x4xf32>
    %cst_118 = arith.constant 0.000000e+00 : f32
    %1453 = vector.broadcast %cst_118 : f32 to vector<4x4xf32>
    %1454 = vector.extract_strided_slice %1452 {offsets = [0, 0], sizes = [4, 1], strides = [1, 1]} : vector<4x4xf32> to vector<4x1xf32>
    %1455 = vector.extract_strided_slice %1452 {offsets = [0, 1], sizes = [4, 1], strides = [1, 1]} : vector<4x4xf32> to vector<4x1xf32>
    %1456 = vector.extract_strided_slice %1452 {offsets = [0, 2], sizes = [4, 1], strides = [1, 1]} : vector<4x4xf32> to vector<4x1xf32>
    %1457 = vector.extract_strided_slice %1452 {offsets = [0, 3], sizes = [4, 1], strides = [1, 1]} : vector<4x4xf32> to vector<4x1xf32>
    %1458 = vector.broadcast %1454 : vector<4x1xf32> to vector<4x16xf32>
    %1459 = arith.mulf %1458, %1430 : vector<4x16xf32>
    %1460 = vector.broadcast %1455 : vector<4x1xf32> to vector<4x16xf32>
    %1461 = arith.mulf %1460, %1437 : vector<4x16xf32>
    %1462 = arith.addf %1459, %1461 : vector<4x16xf32>
    %1463 = vector.broadcast %1456 : vector<4x1xf32> to vector<4x16xf32>
    %1464 = arith.mulf %1463, %1444 : vector<4x16xf32>
    %1465 = arith.addf %1462, %1464 : vector<4x16xf32>
    %1466 = vector.broadcast %1457 : vector<4x1xf32> to vector<4x16xf32>
    %1467 = arith.mulf %1466, %1451 : vector<4x16xf32>
    %1468 = arith.addf %1465, %1467 : vector<4x16xf32>
    %1469 = arith.addf %1402, %1468 : vector<4x16xf32>
    %1470 = math.tanh %1469 : vector<4x16xf32>
    %cst_119 = arith.constant 5.000000e-01 : f32
    %1471 = vector.broadcast %cst_119 : f32 to vector<4x16xf32>
    %1472 = arith.mulf %1470, %1471 : vector<4x16xf32>
    %cst_120 = arith.constant 5.000000e-01 : f32
    %1473 = vector.broadcast %cst_120 : f32 to vector<4x16xf32>
    %1474 = arith.addf %1472, %1473 : vector<4x16xf32>
    %1475 = vector.extract_strided_slice %1474 {offsets = [0, 0], sizes = [4, 4], strides = [1, 1]} : vector<4x16xf32> to vector<4x4xf32>
    %1476 = vector.extract_strided_slice %1474 {offsets = [0, 4], sizes = [4, 4], strides = [1, 1]} : vector<4x16xf32> to vector<4x4xf32>
    %1477 = vector.extract_strided_slice %1470 {offsets = [0, 8], sizes = [4, 4], strides = [1, 1]} : vector<4x16xf32> to vector<4x4xf32>
    %1478 = vector.extract_strided_slice %1474 {offsets = [0, 12], sizes = [4, 4], strides = [1, 1]} : vector<4x16xf32> to vector<4x4xf32>
    %1479 = arith.mulf %1476, %1453 : vector<4x4xf32>
    %1480 = arith.mulf %1475, %1477 : vector<4x4xf32>
    %1481 = arith.addf %1479, %1480 : vector<4x4xf32>
    %1482 = math.tanh %1481 : vector<4x4xf32>
    %1483 = arith.mulf %1478, %1482 : vector<4x4xf32>
    %1484 = vector.extract_strided_slice %1483 {offsets = [0, 0], sizes = [4, 1], strides = [1, 1]} : vector<4x4xf32> to vector<4x1xf32>
    %1485 = vector.extract_strided_slice %1483 {offsets = [0, 1], sizes = [4, 1], strides = [1, 1]} : vector<4x4xf32> to vector<4x1xf32>
    %1486 = vector.extract_strided_slice %1483 {offsets = [0, 2], sizes = [4, 1], strides = [1, 1]} : vector<4x4xf32> to vector<4x1xf32>
    %1487 = vector.extract_strided_slice %1483 {offsets = [0, 3], sizes = [4, 1], strides = [1, 1]} : vector<4x4xf32> to vector<4x1xf32>
    %1488 = vector.extract_strided_slice %1483 {offsets = [2, 0], sizes = [2, 4], strides = [1, 1]} : vector<4x4xf32> to vector<2x4xf32>
    %1489 = vector.broadcast %1484 : vector<4x1xf32> to vector<4x16xf32>
    %1490 = arith.mulf %1489, %1430 : vector<4x16xf32>
    %1491 = vector.broadcast %1485 : vector<4x1xf32> to vector<4x16xf32>
    %1492 = arith.mulf %1491, %1437 : vector<4x16xf32>
    %1493 = arith.addf %1490, %1492 : vector<4x16xf32>
    %1494 = vector.broadcast %1486 : vector<4x1xf32> to vector<4x16xf32>
    %1495 = arith.mulf %1494, %1444 : vector<4x16xf32>
    %1496 = arith.addf %1493, %1495 : vector<4x16xf32>
    %1497 = vector.broadcast %1487 : vector<4x1xf32> to vector<4x16xf32>
    %1498 = arith.mulf %1497, %1451 : vector<4x16xf32>
    %1499 = arith.addf %1496, %1498 : vector<4x16xf32>
    %1500 = arith.addf %1405, %1499 : vector<4x16xf32>
    %1501 = math.tanh %1500 : vector<4x16xf32>
    %cst_121 = arith.constant 5.000000e-01 : f32
    %1502 = vector.broadcast %cst_121 : f32 to vector<4x16xf32>
    %1503 = arith.mulf %1501, %1502 : vector<4x16xf32>
    %cst_122 = arith.constant 5.000000e-01 : f32
    %1504 = vector.broadcast %cst_122 : f32 to vector<4x16xf32>
    %1505 = arith.addf %1503, %1504 : vector<4x16xf32>
    %1506 = vector.extract_strided_slice %1505 {offsets = [0, 0], sizes = [4, 4], strides = [1, 1]} : vector<4x16xf32> to vector<4x4xf32>
    %1507 = vector.extract_strided_slice %1505 {offsets = [0, 4], sizes = [4, 4], strides = [1, 1]} : vector<4x16xf32> to vector<4x4xf32>
    %1508 = vector.extract_strided_slice %1501 {offsets = [0, 8], sizes = [4, 4], strides = [1, 1]} : vector<4x16xf32> to vector<4x4xf32>
    %1509 = vector.extract_strided_slice %1505 {offsets = [0, 12], sizes = [4, 4], strides = [1, 1]} : vector<4x16xf32> to vector<4x4xf32>
    %1510 = arith.mulf %1507, %1481 : vector<4x4xf32>
    %1511 = arith.mulf %1506, %1508 : vector<4x4xf32>
    %1512 = arith.addf %1510, %1511 : vector<4x4xf32>
    %1513 = math.tanh %1512 : vector<4x4xf32>
    %1514 = arith.mulf %1509, %1513 : vector<4x4xf32>
    %1515 = vector.extract_strided_slice %1514 {offsets = [0, 0], sizes = [4, 1], strides = [1, 1]} : vector<4x4xf32> to vector<4x1xf32>
    %1516 = vector.extract_strided_slice %1514 {offsets = [0, 1], sizes = [4, 1], strides = [1, 1]} : vector<4x4xf32> to vector<4x1xf32>
    %1517 = vector.extract_strided_slice %1514 {offsets = [0, 2], sizes = [4, 1], strides = [1, 1]} : vector<4x4xf32> to vector<4x1xf32>
    %1518 = vector.extract_strided_slice %1514 {offsets = [0, 3], sizes = [4, 1], strides = [1, 1]} : vector<4x4xf32> to vector<4x1xf32>
    %1519 = vector.broadcast %1515 : vector<4x1xf32> to vector<4x16xf32>
    %1520 = arith.mulf %1519, %1430 : vector<4x16xf32>
    %1521 = vector.broadcast %1516 : vector<4x1xf32> to vector<4x16xf32>
    %1522 = arith.mulf %1521, %1437 : vector<4x16xf32>
    %1523 = arith.addf %1520, %1522 : vector<4x16xf32>
    %1524 = vector.broadcast %1517 : vector<4x1xf32> to vector<4x16xf32>
    %1525 = arith.mulf %1524, %1444 : vector<4x16xf32>
    %1526 = arith.addf %1523, %1525 : vector<4x16xf32>
    %1527 = vector.broadcast %1518 : vector<4x1xf32> to vector<4x16xf32>
    %1528 = arith.mulf %1527, %1451 : vector<4x16xf32>
    %1529 = arith.addf %1526, %1528 : vector<4x16xf32>
    %1530 = arith.addf %1408, %1529 : vector<4x16xf32>
    %1531 = math.tanh %1530 : vector<4x16xf32>
    %cst_123 = arith.constant 5.000000e-01 : f32
    %1532 = vector.broadcast %cst_123 : f32 to vector<4x16xf32>
    %1533 = arith.mulf %1531, %1532 : vector<4x16xf32>
    %cst_124 = arith.constant 5.000000e-01 : f32
    %1534 = vector.broadcast %cst_124 : f32 to vector<4x16xf32>
    %1535 = arith.addf %1533, %1534 : vector<4x16xf32>
    %1536 = vector.extract_strided_slice %1535 {offsets = [0, 0], sizes = [4, 4], strides = [1, 1]} : vector<4x16xf32> to vector<4x4xf32>
    %1537 = vector.extract_strided_slice %1535 {offsets = [0, 4], sizes = [4, 4], strides = [1, 1]} : vector<4x16xf32> to vector<4x4xf32>
    %1538 = vector.extract_strided_slice %1531 {offsets = [0, 8], sizes = [4, 4], strides = [1, 1]} : vector<4x16xf32> to vector<4x4xf32>
    %1539 = vector.extract_strided_slice %1535 {offsets = [0, 12], sizes = [4, 4], strides = [1, 1]} : vector<4x16xf32> to vector<4x4xf32>
    %1540 = arith.mulf %1537, %1512 : vector<4x4xf32>
    %1541 = arith.mulf %1536, %1538 : vector<4x4xf32>
    %1542 = arith.addf %1540, %1541 : vector<4x4xf32>
    %1543 = math.tanh %1542 : vector<4x4xf32>
    %1544 = arith.mulf %1539, %1543 : vector<4x4xf32>
    %1545 = vector.extract_strided_slice %1544 {offsets = [0, 0], sizes = [4, 1], strides = [1, 1]} : vector<4x4xf32> to vector<4x1xf32>
    %1546 = vector.extract_strided_slice %1544 {offsets = [0, 1], sizes = [4, 1], strides = [1, 1]} : vector<4x4xf32> to vector<4x1xf32>
    %1547 = vector.extract_strided_slice %1544 {offsets = [0, 2], sizes = [4, 1], strides = [1, 1]} : vector<4x4xf32> to vector<4x1xf32>
    %1548 = vector.extract_strided_slice %1544 {offsets = [0, 3], sizes = [4, 1], strides = [1, 1]} : vector<4x4xf32> to vector<4x1xf32>
    %1549 = vector.broadcast %1545 : vector<4x1xf32> to vector<4x16xf32>
    %1550 = arith.mulf %1549, %1430 : vector<4x16xf32>
    %1551 = vector.broadcast %1546 : vector<4x1xf32> to vector<4x16xf32>
    %1552 = arith.mulf %1551, %1437 : vector<4x16xf32>
    %1553 = arith.addf %1550, %1552 : vector<4x16xf32>
    %1554 = vector.broadcast %1547 : vector<4x1xf32> to vector<4x16xf32>
    %1555 = arith.mulf %1554, %1444 : vector<4x16xf32>
    %1556 = arith.addf %1553, %1555 : vector<4x16xf32>
    %1557 = vector.broadcast %1548 : vector<4x1xf32> to vector<4x16xf32>
    %1558 = arith.mulf %1557, %1451 : vector<4x16xf32>
    %1559 = arith.addf %1556, %1558 : vector<4x16xf32>
    %1560 = arith.addf %1411, %1559 : vector<4x16xf32>
    %1561 = math.tanh %1560 : vector<4x16xf32>
    %cst_125 = arith.constant 5.000000e-01 : f32
    %1562 = vector.broadcast %cst_125 : f32 to vector<4x16xf32>
    %1563 = arith.mulf %1561, %1562 : vector<4x16xf32>
    %cst_126 = arith.constant 5.000000e-01 : f32
    %1564 = vector.broadcast %cst_126 : f32 to vector<4x16xf32>
    %1565 = arith.addf %1563, %1564 : vector<4x16xf32>
    %1566 = vector.extract_strided_slice %1565 {offsets = [0, 0], sizes = [4, 4], strides = [1, 1]} : vector<4x16xf32> to vector<4x4xf32>
    %1567 = vector.extract_strided_slice %1565 {offsets = [0, 4], sizes = [4, 4], strides = [1, 1]} : vector<4x16xf32> to vector<4x4xf32>
    %1568 = vector.extract_strided_slice %1561 {offsets = [0, 8], sizes = [4, 4], strides = [1, 1]} : vector<4x16xf32> to vector<4x4xf32>
    %1569 = vector.extract_strided_slice %1565 {offsets = [0, 12], sizes = [4, 4], strides = [1, 1]} : vector<4x16xf32> to vector<4x4xf32>
    %1570 = arith.mulf %1567, %1542 : vector<4x4xf32>
    %1571 = arith.mulf %1566, %1568 : vector<4x4xf32>
    %1572 = arith.addf %1570, %1571 : vector<4x4xf32>
    %1573 = math.tanh %1572 : vector<4x4xf32>
    %1574 = arith.mulf %1569, %1573 : vector<4x4xf32>
    %1575 = vector.extract_strided_slice %1574 {offsets = [0, 0], sizes = [4, 1], strides = [1, 1]} : vector<4x4xf32> to vector<4x1xf32>
    %1576 = vector.extract_strided_slice %1574 {offsets = [0, 1], sizes = [4, 1], strides = [1, 1]} : vector<4x4xf32> to vector<4x1xf32>
    %1577 = vector.extract_strided_slice %1574 {offsets = [0, 2], sizes = [4, 1], strides = [1, 1]} : vector<4x4xf32> to vector<4x1xf32>
    %1578 = vector.extract_strided_slice %1574 {offsets = [0, 3], sizes = [4, 1], strides = [1, 1]} : vector<4x4xf32> to vector<4x1xf32>
    %1579 = vector.broadcast %1575 : vector<4x1xf32> to vector<4x16xf32>
    %1580 = arith.mulf %1579, %1430 : vector<4x16xf32>
    %1581 = vector.broadcast %1576 : vector<4x1xf32> to vector<4x16xf32>
    %1582 = arith.mulf %1581, %1437 : vector<4x16xf32>
    %1583 = arith.addf %1580, %1582 : vector<4x16xf32>
    %1584 = vector.broadcast %1577 : vector<4x1xf32> to vector<4x16xf32>
    %1585 = arith.mulf %1584, %1444 : vector<4x16xf32>
    %1586 = arith.addf %1583, %1585 : vector<4x16xf32>
    %1587 = vector.broadcast %1578 : vector<4x1xf32> to vector<4x16xf32>
    %1588 = arith.mulf %1587, %1451 : vector<4x16xf32>
    %1589 = arith.addf %1586, %1588 : vector<4x16xf32>
    %1590 = arith.addf %1414, %1589 : vector<4x16xf32>
    %1591 = math.tanh %1590 : vector<4x16xf32>
    %cst_127 = arith.constant 5.000000e-01 : f32
    %1592 = vector.broadcast %cst_127 : f32 to vector<4x16xf32>
    %1593 = arith.mulf %1591, %1592 : vector<4x16xf32>
    %cst_128 = arith.constant 5.000000e-01 : f32
    %1594 = vector.broadcast %cst_128 : f32 to vector<4x16xf32>
    %1595 = arith.addf %1593, %1594 : vector<4x16xf32>
    %1596 = vector.extract_strided_slice %1595 {offsets = [0, 0], sizes = [4, 4], strides = [1, 1]} : vector<4x16xf32> to vector<4x4xf32>
    %1597 = vector.extract_strided_slice %1595 {offsets = [0, 4], sizes = [4, 4], strides = [1, 1]} : vector<4x16xf32> to vector<4x4xf32>
    %1598 = vector.extract_strided_slice %1591 {offsets = [0, 8], sizes = [4, 4], strides = [1, 1]} : vector<4x16xf32> to vector<4x4xf32>
    %1599 = vector.extract_strided_slice %1595 {offsets = [0, 12], sizes = [4, 4], strides = [1, 1]} : vector<4x16xf32> to vector<4x4xf32>
    %1600 = arith.mulf %1597, %1572 : vector<4x4xf32>
    %1601 = arith.mulf %1596, %1598 : vector<4x4xf32>
    %1602 = arith.addf %1600, %1601 : vector<4x4xf32>
    %1603 = math.tanh %1602 : vector<4x4xf32>
    %1604 = arith.mulf %1599, %1603 : vector<4x4xf32>
    %1605 = vector.extract_strided_slice %1604 {offsets = [0, 0], sizes = [4, 1], strides = [1, 1]} : vector<4x4xf32> to vector<4x1xf32>
    %1606 = vector.extract_strided_slice %1604 {offsets = [0, 1], sizes = [4, 1], strides = [1, 1]} : vector<4x4xf32> to vector<4x1xf32>
    %1607 = vector.extract_strided_slice %1604 {offsets = [0, 2], sizes = [4, 1], strides = [1, 1]} : vector<4x4xf32> to vector<4x1xf32>
    %1608 = vector.extract_strided_slice %1604 {offsets = [0, 3], sizes = [4, 1], strides = [1, 1]} : vector<4x4xf32> to vector<4x1xf32>
    %1609 = vector.broadcast %1605 : vector<4x1xf32> to vector<4x16xf32>
    %1610 = arith.mulf %1609, %1430 : vector<4x16xf32>
    %1611 = vector.broadcast %1606 : vector<4x1xf32> to vector<4x16xf32>
    %1612 = arith.mulf %1611, %1437 : vector<4x16xf32>
    %1613 = arith.addf %1610, %1612 : vector<4x16xf32>
    %1614 = vector.broadcast %1607 : vector<4x1xf32> to vector<4x16xf32>
    %1615 = arith.mulf %1614, %1444 : vector<4x16xf32>
    %1616 = arith.addf %1613, %1615 : vector<4x16xf32>
    %1617 = vector.broadcast %1608 : vector<4x1xf32> to vector<4x16xf32>
    %1618 = arith.mulf %1617, %1451 : vector<4x16xf32>
    %1619 = arith.addf %1616, %1618 : vector<4x16xf32>
    %1620 = arith.addf %1417, %1619 : vector<4x16xf32>
    %1621 = math.tanh %1620 : vector<4x16xf32>
    %cst_129 = arith.constant 5.000000e-01 : f32
    %1622 = vector.broadcast %cst_129 : f32 to vector<4x16xf32>
    %1623 = arith.mulf %1621, %1622 : vector<4x16xf32>
    %cst_130 = arith.constant 5.000000e-01 : f32
    %1624 = vector.broadcast %cst_130 : f32 to vector<4x16xf32>
    %1625 = arith.addf %1623, %1624 : vector<4x16xf32>
    %1626 = vector.extract_strided_slice %1625 {offsets = [0, 0], sizes = [4, 4], strides = [1, 1]} : vector<4x16xf32> to vector<4x4xf32>
    %1627 = vector.extract_strided_slice %1625 {offsets = [0, 4], sizes = [4, 4], strides = [1, 1]} : vector<4x16xf32> to vector<4x4xf32>
    %1628 = vector.extract_strided_slice %1621 {offsets = [0, 8], sizes = [4, 4], strides = [1, 1]} : vector<4x16xf32> to vector<4x4xf32>
    %1629 = vector.extract_strided_slice %1625 {offsets = [0, 12], sizes = [4, 4], strides = [1, 1]} : vector<4x16xf32> to vector<4x4xf32>
    %1630 = arith.mulf %1627, %1602 : vector<4x4xf32>
    %1631 = arith.mulf %1626, %1628 : vector<4x4xf32>
    %1632 = arith.addf %1630, %1631 : vector<4x4xf32>
    %1633 = math.tanh %1632 : vector<4x4xf32>
    %1634 = arith.mulf %1629, %1633 : vector<4x4xf32>
    %1635 = vector.extract_strided_slice %1634 {offsets = [0, 0], sizes = [4, 1], strides = [1, 1]} : vector<4x4xf32> to vector<4x1xf32>
    %1636 = vector.extract_strided_slice %1634 {offsets = [0, 1], sizes = [4, 1], strides = [1, 1]} : vector<4x4xf32> to vector<4x1xf32>
    %1637 = vector.extract_strided_slice %1634 {offsets = [0, 2], sizes = [4, 1], strides = [1, 1]} : vector<4x4xf32> to vector<4x1xf32>
    %1638 = vector.extract_strided_slice %1634 {offsets = [0, 3], sizes = [4, 1], strides = [1, 1]} : vector<4x4xf32> to vector<4x1xf32>
    %1639 = vector.broadcast %1635 : vector<4x1xf32> to vector<4x16xf32>
    %1640 = arith.mulf %1639, %1430 : vector<4x16xf32>
    %1641 = vector.broadcast %1636 : vector<4x1xf32> to vector<4x16xf32>
    %1642 = arith.mulf %1641, %1437 : vector<4x16xf32>
    %1643 = arith.addf %1640, %1642 : vector<4x16xf32>
    %1644 = vector.broadcast %1637 : vector<4x1xf32> to vector<4x16xf32>
    %1645 = arith.mulf %1644, %1444 : vector<4x16xf32>
    %1646 = arith.addf %1643, %1645 : vector<4x16xf32>
    %1647 = vector.broadcast %1638 : vector<4x1xf32> to vector<4x16xf32>
    %1648 = arith.mulf %1647, %1451 : vector<4x16xf32>
    %1649 = arith.addf %1646, %1648 : vector<4x16xf32>
    %1650 = arith.addf %1420, %1649 : vector<4x16xf32>
    %1651 = math.tanh %1650 : vector<4x16xf32>
    %cst_131 = arith.constant 5.000000e-01 : f32
    %1652 = vector.broadcast %cst_131 : f32 to vector<4x16xf32>
    %1653 = arith.mulf %1651, %1652 : vector<4x16xf32>
    %cst_132 = arith.constant 5.000000e-01 : f32
    %1654 = vector.broadcast %cst_132 : f32 to vector<4x16xf32>
    %1655 = arith.addf %1653, %1654 : vector<4x16xf32>
    %1656 = vector.extract_strided_slice %1655 {offsets = [0, 0], sizes = [4, 4], strides = [1, 1]} : vector<4x16xf32> to vector<4x4xf32>
    %1657 = vector.extract_strided_slice %1655 {offsets = [0, 4], sizes = [4, 4], strides = [1, 1]} : vector<4x16xf32> to vector<4x4xf32>
    %1658 = vector.extract_strided_slice %1651 {offsets = [0, 8], sizes = [4, 4], strides = [1, 1]} : vector<4x16xf32> to vector<4x4xf32>
    %1659 = vector.extract_strided_slice %1655 {offsets = [0, 12], sizes = [4, 4], strides = [1, 1]} : vector<4x16xf32> to vector<4x4xf32>
    %1660 = arith.mulf %1657, %1632 : vector<4x4xf32>
    %1661 = arith.mulf %1656, %1658 : vector<4x4xf32>
    %1662 = arith.addf %1660, %1661 : vector<4x4xf32>
    %1663 = math.tanh %1662 : vector<4x4xf32>
    %1664 = arith.mulf %1659, %1663 : vector<4x4xf32>
    %1665 = vector.extract_strided_slice %1664 {offsets = [0, 0], sizes = [4, 1], strides = [1, 1]} : vector<4x4xf32> to vector<4x1xf32>
    %1666 = vector.extract_strided_slice %1664 {offsets = [0, 1], sizes = [4, 1], strides = [1, 1]} : vector<4x4xf32> to vector<4x1xf32>
    %1667 = vector.extract_strided_slice %1664 {offsets = [0, 2], sizes = [4, 1], strides = [1, 1]} : vector<4x4xf32> to vector<4x1xf32>
    %1668 = vector.extract_strided_slice %1664 {offsets = [0, 3], sizes = [4, 1], strides = [1, 1]} : vector<4x4xf32> to vector<4x1xf32>
    %1669 = vector.broadcast %1665 : vector<4x1xf32> to vector<4x16xf32>
    %1670 = arith.mulf %1669, %1430 : vector<4x16xf32>
    %1671 = vector.broadcast %1666 : vector<4x1xf32> to vector<4x16xf32>
    %1672 = arith.mulf %1671, %1437 : vector<4x16xf32>
    %1673 = arith.addf %1670, %1672 : vector<4x16xf32>
    %1674 = vector.broadcast %1667 : vector<4x1xf32> to vector<4x16xf32>
    %1675 = arith.mulf %1674, %1444 : vector<4x16xf32>
    %1676 = arith.addf %1673, %1675 : vector<4x16xf32>
    %1677 = vector.broadcast %1668 : vector<4x1xf32> to vector<4x16xf32>
    %1678 = arith.mulf %1677, %1451 : vector<4x16xf32>
    %1679 = arith.addf %1676, %1678 : vector<4x16xf32>
    %1680 = arith.addf %1423, %1679 : vector<4x16xf32>
    %1681 = math.tanh %1680 : vector<4x16xf32>
    %cst_133 = arith.constant 5.000000e-01 : f32
    %1682 = vector.broadcast %cst_133 : f32 to vector<4x16xf32>
    %1683 = arith.mulf %1681, %1682 : vector<4x16xf32>
    %cst_134 = arith.constant 5.000000e-01 : f32
    %1684 = vector.broadcast %cst_134 : f32 to vector<4x16xf32>
    %1685 = arith.addf %1683, %1684 : vector<4x16xf32>
    %1686 = vector.extract_strided_slice %1685 {offsets = [0, 0], sizes = [4, 4], strides = [1, 1]} : vector<4x16xf32> to vector<4x4xf32>
    %1687 = vector.extract_strided_slice %1685 {offsets = [0, 4], sizes = [4, 4], strides = [1, 1]} : vector<4x16xf32> to vector<4x4xf32>
    %1688 = vector.extract_strided_slice %1681 {offsets = [0, 8], sizes = [4, 4], strides = [1, 1]} : vector<4x16xf32> to vector<4x4xf32>
    %1689 = vector.extract_strided_slice %1685 {offsets = [0, 12], sizes = [4, 4], strides = [1, 1]} : vector<4x16xf32> to vector<4x4xf32>
    %1690 = arith.mulf %1687, %1662 : vector<4x4xf32>
    %1691 = arith.mulf %1686, %1688 : vector<4x4xf32>
    %1692 = arith.addf %1690, %1691 : vector<4x4xf32>
    %1693 = math.tanh %1692 : vector<4x4xf32>
    %1694 = arith.mulf %1689, %1693 : vector<4x4xf32>
    %1695 = vector.extract_strided_slice %1694 {offsets = [0, 0], sizes = [2, 4], strides = [1, 1]} : vector<4x4xf32> to vector<2x4xf32>
    %1696 = tpu.concatenate %1695, %1488 in 1 : vector<2x4xf32>, vector<2x4xf32> -> vector<2x8xf32>
    %c0_135 = arith.constant 0 : index
    %c0_136 = arith.constant 0 : index
    %1697 = vector.load %arg4[%c0_135, %c0_136] : memref<8x1xf32, #tpu.memory_space<vmem>>, vector<8x1xf32>
    %cst_137 = arith.constant dense<0.000000e+00> : vector<2x1xf32>
    %1698 = tpu.matmul %1696, %1697, %cst_137 {dimension_numbers = #tpu.dot_dimension_numbers<[1], [0], [0], [1], [0, 0, 1, 1], [], []>} : vector<2x8xf32>, vector<8x1xf32>, vector<2x1xf32> -> vector<2x1xf32>
    %c0_138 = arith.constant 0 : index
    %c0_139 = arith.constant 0 : index
    %1699 = vector.load %arg5[%c0_138, %c0_139] : memref<1x1xf32, #tpu.memory_space<vmem>>, vector<1x1xf32>
    %1700 = vector.broadcast %1699 : vector<1x1xf32> to vector<2x1xf32>
    %1701 = arith.addf %1698, %1700 : vector<2x1xf32>
    %c0_140 = arith.constant 0 : index
    %c0_141 = arith.constant 0 : index
    %1702 = vector.load %arg6[%c0_140, %c0_141] : memref<2x1xf32, #tpu.memory_space<vmem>>, vector<2x1xf32>
    tpu.vector_store %arg6[%c0_140, %c0_141], %1701 {strides = array<i32>} : memref<2x1xf32, #tpu.memory_space<vmem>>, vector<2x1xf32>,
    return
  }
}

</mosaic_0001>

<llo_original>
// kernel: simple_lstm_forward.1
$region0: #{simple_lstm_forward.1}
  #allocation0 [shape = 'u32[]', space=smem, size = 0x4, offset = 0x4, fixed_abs, tag = 'smem constant byte address 0x4 - core index']
  #allocation1 [shape = 'u32[72,128]{1,0:T(1,128)}', space=vmem, size = 0x9000, scoped, tag = 'internal scratch']
  #allocation2 [shape = 'f32[1,1]{1,0:T(1,128)S(1)}', space=vmem, size = 0x200, scoped, tag = 'scoped memory for simple_lstm_forward.1']
  %s0 = inlined_call_operand.vmem [shape: f32[2,8], index: 0, kind: input, shape index: {}]
  %s1 = inlined_call_operand.hbm [shape: f32[5,8,32], index: 1, kind: input, shape index: {}]
  %s2 = inlined_call_operand.hbm [shape: f32[5,4,32], index: 2, kind: input, shape index: {}]
  %s3 = inlined_call_operand.vmem [shape: f32[5,1,32], index: 3, kind: input, shape index: {}]
  %s4 = inlined_call_operand.vmem [shape: f32[8,1], index: 4, kind: input, shape index: {}]
  %s5 = inlined_call_operand.<no memory space> [shape: f32[1,1], index: 5, kind: input, shape index: {}]
  %s6 = inlined_call_operand.vmem [shape: f32[2,1], index: 6, kind: output, shape index: {}]
  %s7 = sld [smem:[#allocation0]]
  $region42: #{simple_lstm_forward.1} parent=0
    _
  %s9 = ssub.s32 1, %s7
  %s10 = scalar_select 0, %s9, %s7
  %v11 = vstv %s5
  %12 = vst [vmem:[#allocation2] sm:$0x1] %v11
  $region1: #{simple_lstm_forward.1} parent=0
    #allocation3 [shape = 'u8[20480]{0}', space=vmem, size = 0x5000, scoped, tag = 'input window, operand 1, single buffered']
    #allocation4 [shape = 's32[1]{0}', space=sflag, size = 0x4, scoped, tag = 'scoped memory for simple_lstm_forward.1']
    #allocation5 [shape = 'u8[10240]{0}', space=vmem, size = 0x2800, scoped, tag = 'input window, operand 2, single buffered']
    #allocation6 [shape = 's32[1]{0}', space=sflag, size = 0x4, scoped, tag = 'scoped memory for simple_lstm_forward.1']
    %13 = vsyncpa [#allocation4], 0
    %14 = vsyncpa [#allocation6], 0
    // Predicated region
    $region2: #{simple_lstm_forward.1} parent=1 // pred_check
      _
    $region3: #{simple_lstm_forward.1} parent=1 // pred_check_branch
      %16 = sbr.rel (0) target = $region5
    $region4: #{simple_lstm_forward.1} parent=1 // pred_region
      _
    $region5: #{simple_lstm_forward.1} parent=1 // pred_fallthru
      _
    // Predicated region
    $region6: #{simple_lstm_forward.1} parent=1 // pred_check
      _
    $region7: #{simple_lstm_forward.1} parent=1 // pred_check_branch
      %18 = sbr.rel (0) target = $region9
    $region8: #{simple_lstm_forward.1} parent=1 // pred_region
      %20 = vsyncadd [#allocation4], 0
      %s21 = sshll.u32 %s1, 4
      %s22 = int_to_ptr.hbm [resolvable:$true] %s21
      %s23 = sshll.u32 [#allocation3], 4
      %s24 = int_to_ptr.vmem [resolvable:$true] %s23
      %29 = dma.hbm_to_vmem [thread:$0]  %s22, 640, %s24, [#allocation4], 128, 128, 8
    $region9: #{simple_lstm_forward.1} parent=1 // pred_fallthru
      _
    // Predicated region
    $region10: #{simple_lstm_forward.1} parent=1 // pred_check
      _
    $region11: #{simple_lstm_forward.1} parent=1 // pred_check_branch
      %31 = sbr.rel (0) target = $region13
    $region12: #{simple_lstm_forward.1} parent=1 // pred_region
      %33 = vsyncadd [#allocation6], 0
      %s34 = sshll.u32 %s2, 4
      %s35 = int_to_ptr.hbm [resolvable:$true] %s34
      %s36 = sshll.u32 [#allocation5], 4
      %s37 = int_to_ptr.vmem [resolvable:$true] %s36
      %42 = dma.hbm_to_vmem [thread:$0]  %s35, 320, %s37, [#allocation6], 64, 64, 4
    $region13: #{simple_lstm_forward.1} parent=1 // pred_fallthru
      _
    // Predicated region
    $region14: #{simple_lstm_forward.1} parent=1 // pred_check
      _
    $region15: #{simple_lstm_forward.1} parent=1 // pred_check_branch
      %44 = sbr.rel (0) target = $region17
    $region16: #{simple_lstm_forward.1} parent=1 // pred_region
      _
    $region17: #{simple_lstm_forward.1} parent=1 // pred_fallthru
      _
    // Predicated region
    $region18: #{simple_lstm_forward.1} parent=1 // pred_check
      _
    $region19: #{simple_lstm_forward.1} parent=1 // pred_check_branch
      %46 = sbr.rel (0) target = $region21
    $region20: #{simple_lstm_forward.1} parent=1 // pred_region
      _
    $region21: #{simple_lstm_forward.1} parent=1 // pred_fallthru
      _
    // Predicated region
    $region22: #{simple_lstm_forward.1} parent=1 // pred_check
      _
    $region23: #{simple_lstm_forward.1} parent=1 // pred_check_branch
      %48 = sbr.rel (0) target = $region25
    $region24: #{simple_lstm_forward.1} parent=1 // pred_region
      _
    $region25: #{simple_lstm_forward.1} parent=1 // pred_fallthru
      _
    // Predicated region
    $region26: #{simple_lstm_forward.1} parent=1 // pred_check
      _
    $region27: #{simple_lstm_forward.1} parent=1 // pred_check_branch
      %50 = sbr.rel (0) target = $region29
    $region28: #{simple_lstm_forward.1} parent=1 // pred_region
      %52 = dma.done [#allocation4], 640
    $region29: #{simple_lstm_forward.1} parent=1 // pred_fallthru
      _
    // Predicated region
    $region30: #{simple_lstm_forward.1} parent=1 // pred_check
      _
    $region31: #{simple_lstm_forward.1} parent=1 // pred_check_branch
      %54 = sbr.rel (0) target = $region33
    $region32: #{simple_lstm_forward.1} parent=1 // pred_region
      %56 = dma.done [#allocation6], 320
    $region33: #{simple_lstm_forward.1} parent=1 // pred_fallthru
      _
    %v57 = vld [vmem:[%s0] sm:$0x3]
    %v58 = vld [vmem:[#allocation3] sm:$0xff]
    %v59 = vld [vmem:[#allocation5] sm:$0xf]
    %v60 = vld [vmem:[%s3] sm:$0x1]
    %62 = vset.pattern.permute.xlu0 0
    %63 = vperm.xlu0 %62, %v57
    %v64 = vpop.permute.xlu0 %63
    %v66 = vperm.slane %v58, 0
    %v67 = vmul.f32 %v64, %v66
    %v69 = vperm.slane %v60, 0
    %v71 = vadd.f32 %v67, %v69
    %72 = vset.pattern.permute.xlu0 1
    %73 = vperm.xlu0 %72, %v57
    %v74 = vpop.permute.xlu0 %73
    %v76 = vmul.f32 %v74, %v66
    %v77 = vadd.f32 %v76, %v69
    %78 = vset.pattern.permute.xlu0 2
    %79 = vperm.xlu0 %78, %v57
    %v80 = vpop.permute.xlu0 %79
    %v82 = vmul.f32 %v80, %v66
    %v83 = vadd.f32 %v82, %v69
    %84 = vset.pattern.permute.xlu0 3
    %85 = vperm.xlu0 %84, %v57
    %v86 = vpop.permute.xlu0 %85
    %v88 = vmul.f32 %v86, %v66
    %v89 = vadd.f32 %v88, %v69
    %90 = vset.pattern.permute.xlu0 4
    %91 = vperm.xlu0 %90, %v57
    %v92 = vpop.permute.xlu0 %91
    %v94 = vmul.f32 %v92, %v66
    %v95 = vadd.f32 %v94, %v69
    %96 = vset.pattern.permute.xlu0 5
    %97 = vperm.xlu0 %96, %v57
    %v98 = vpop.permute.xlu0 %97
    %v100 = vmul.f32 %v98, %v66
    %v101 = vadd.f32 %v100, %v69
    %102 = vset.pattern.permute.xlu0 6
    %103 = vperm.xlu0 %102, %v57
    %v104 = vpop.permute.xlu0 %103
    %v106 = vmul.f32 %v104, %v66
    %v107 = vadd.f32 %v106, %v69
    %108 = vset.pattern.permute.xlu0 7
    %109 = vperm.xlu0 %108, %v57
    %v110 = vpop.permute.xlu0 %109
    %v112 = vmul.f32 %v110, %v66
    %v113 = vadd.f32 %v112, %v69
    %v115 = vrot.slane %v113, 6
    %116 = vrot.lane.b32.xlu0 %v115, 112
    %v117 = vpop.permute.xlu0 %116
    %vm119 = vcmask 1041408
    %v120 = vsel %vm119, %v71, %v117
    %v122 = vrot.slane %v107, 6
    %123 = vrot.lane.b32.xlu0 %v122, 112
    %v124 = vpop.permute.xlu0 %123
    %v126 = vsel %vm119, %v77, %v124
    %v128 = vrot.slane %v101, 6
    %129 = vrot.lane.b32.xlu0 %v128, 112
    %v130 = vpop.permute.xlu0 %129
    %v132 = vsel %vm119, %v83, %v130
    %v134 = vrot.slane %v95, 6
    %135 = vrot.lane.b32.xlu0 %v134, 112
    %v136 = vpop.permute.xlu0 %135
    %v138 = vsel %vm119, %v89, %v136
    %v140 = vrot.slane %v89, 6
    %141 = vrot.lane.b32.xlu0 %v140, 112
    %v142 = vpop.permute.xlu0 %141
    %v144 = vsel %vm119, %v95, %v142
    %v146 = vrot.slane %v83, 6
    %147 = vrot.lane.b32.xlu0 %v146, 112
    %v148 = vpop.permute.xlu0 %147
    %v150 = vsel %vm119, %v101, %v148
    %v152 = vrot.slane %v77, 6
    %153 = vrot.lane.b32.xlu0 %v152, 112
    %v154 = vpop.permute.xlu0 %153
    %v156 = vsel %vm119, %v107, %v154
    %v158 = vrot.slane %v71, 6
    %159 = vrot.lane.b32.xlu0 %v158, 112
    %v160 = vpop.permute.xlu0 %159
    %v162 = vsel %vm119, %v113, %v160
    %v163 = vperm.slane %v59, 0
    %165 = vrot.lane.b32.xlu0 %v163, 112
    %v166 = vpop.permute.xlu0 %165
    %v168 = vsel %vm119, %v163, %v166
    %v169 = vperm.slane %v59, 1
    %171 = vrot.lane.b32.xlu0 %v169, 112
    %v172 = vpop.permute.xlu0 %171
    %v174 = vsel %vm119, %v169, %v172
    %v175 = vperm.slane %v59, 2
    %177 = vrot.lane.b32.xlu0 %v175, 112
    %v178 = vpop.permute.xlu0 %177
    %v180 = vsel %vm119, %v175, %v178
    %v181 = vperm.slane %v59, 3
    %183 = vrot.lane.b32.xlu0 %v181, 112
    %v184 = vpop.permute.xlu0 %183
    %v186 = vsel %vm119, %v181, %v184
    %v187 = vmul.f32 %v168, 0.0
    %v188 = vmul.f32 %v174, 0.0
    %v189 = vadd.f32 %v187, %v188
    %v190 = vmul.f32 %v180, 0.0
    %v191 = vadd.f32 %v189, %v190
    %v192 = vmul.f32 %v186, 0.0
    %v193 = vadd.f32 %v191, %v192
    %v194 = vadd.f32 %v120, %v193
    %v195 = vtanh.pop %v194
    %v196 = vmul.f32 %v195, 0.5
    %v197 = vadd.f32 %v196, 0.5
    %v198 = vmul.f32 %v197, 0.0
    %200 = vrot.lane.b32.xlu0 %v195, 120
    %v201 = vpop.permute.xlu0 %200
    %v203 = vmul.f32 %v197, %v201
    %205 = vrot.lane.b32.xlu0 %v203, 4
    %v206 = vpop.permute.xlu0 %205
    %v208 = vadd.f32 %v198, %v206
    %v209 = vtanh.pop %v208
    %211 = vrot.lane.b32.xlu0 %v209, 8
    %v212 = vpop.permute.xlu0 %211
    %v214 = vmul.f32 %v197, %v212
    %216 = vset.pattern.permute.xlu0 12
    %217 = vperm.xlu0 %216, %v214
    %v218 = vpop.permute.xlu0 %217
    %v220 = vmul.f32 %v218, %v168
    %221 = vset.pattern.permute.xlu0 13
    %222 = vperm.xlu0 %221, %v214
    %v223 = vpop.permute.xlu0 %222
    %v225 = vmul.f32 %v223, %v174
    %v226 = vadd.f32 %v220, %v225
    %227 = vset.pattern.permute.xlu0 14
    %228 = vperm.xlu0 %227, %v214
    %v229 = vpop.permute.xlu0 %228
    %v231 = vmul.f32 %v229, %v180
    %v232 = vadd.f32 %v226, %v231
    %233 = vset.pattern.permute.xlu0 15
    %234 = vperm.xlu0 %233, %v214
    %v235 = vpop.permute.xlu0 %234
    %v237 = vmul.f32 %v235, %v186
    %v238 = vadd.f32 %v232, %v237
    %v239 = vadd.f32 %v126, %v238
    %v240 = vtanh.pop %v239
    %v241 = vmul.f32 %v240, 0.5
    %v242 = vadd.f32 %v241, 0.5
    %v243 = vmul.f32 %v242, %v208
    %245 = vrot.lane.b32.xlu0 %v240, 120
    %v246 = vpop.permute.xlu0 %245
    %v248 = vmul.f32 %v242, %v246
    %250 = vrot.lane.b32.xlu0 %v248, 4
    %v251 = vpop.permute.xlu0 %250
    %v253 = vadd.f32 %v243, %v251
    %v254 = vtanh.pop %v253
    %256 = vrot.lane.b32.xlu0 %v254, 8
    %v257 = vpop.permute.xlu0 %256
    %v259 = vmul.f32 %v242, %v257
    %261 = vset.pattern.permute.xlu0 12
    %262 = vperm.xlu0 %261, %v259
    %v263 = vpop.permute.xlu0 %262
    %v265 = vmul.f32 %v263, %v168
    %266 = vset.pattern.permute.xlu0 13
    %267 = vperm.xlu0 %266, %v259
    %v268 = vpop.permute.xlu0 %267
    %v270 = vmul.f32 %v268, %v174
    %v271 = vadd.f32 %v265, %v270
    %272 = vset.pattern.permute.xlu0 14
    %273 = vperm.xlu0 %272, %v259
    %v274 = vpop.permute.xlu0 %273
    %v276 = vmul.f32 %v274, %v180
    %v277 = vadd.f32 %v271, %v276
    %278 = vset.pattern.permute.xlu0 15
    %279 = vperm.xlu0 %278, %v259
    %v280 = vpop.permute.xlu0 %279
    %v282 = vmul.f32 %v280, %v186
    %v283 = vadd.f32 %v277, %v282
    %v284 = vadd.f32 %v132, %v283
    %v285 = vtanh.pop %v284
    %v286 = vmul.f32 %v285, 0.5
    %v287 = vadd.f32 %v286, 0.5
    %v288 = vmul.f32 %v287, %v253
    %290 = vrot.lane.b32.xlu0 %v285, 120
    %v291 = vpop.permute.xlu0 %290
    %v293 = vmul.f32 %v287, %v291
    %295 = vrot.lane.b32.xlu0 %v293, 4
    %v296 = vpop.permute.xlu0 %295
    %v298 = vadd.f32 %v288, %v296
    %v299 = vtanh.pop %v298
    %301 = vrot.lane.b32.xlu0 %v299, 8
    %v302 = vpop.permute.xlu0 %301
    %v304 = vmul.f32 %v287, %v302
    %306 = vset.pattern.permute.xlu0 12
    %307 = vperm.xlu0 %306, %v304
    %v308 = vpop.permute.xlu0 %307
    %v310 = vmul.f32 %v308, %v168
    %311 = vset.pattern.permute.xlu0 13
    %312 = vperm.xlu0 %311, %v304
    %v313 = vpop.permute.xlu0 %312
    %v315 = vmul.f32 %v313, %v174
    %v316 = vadd.f32 %v310, %v315
    %317 = vset.pattern.permute.xlu0 14
    %318 = vperm.xlu0 %317, %v304
    %v319 = vpop.permute.xlu0 %318
    %v321 = vmul.f32 %v319, %v180
    %v322 = vadd.f32 %v316, %v321
    %323 = vset.pattern.permute.xlu0 15
    %324 = vperm.xlu0 %323, %v304
    %v325 = vpop.permute.xlu0 %324
    %v327 = vmul.f32 %v325, %v186
    %v328 = vadd.f32 %v322, %v327
    %v329 = vadd.f32 %v138, %v328
    %v330 = vtanh.pop %v329
    %v331 = vmul.f32 %v330, 0.5
    %v332 = vadd.f32 %v331, 0.5
    %v333 = vmul.f32 %v332, %v298
    %335 = vrot.lane.b32.xlu0 %v330, 120
    %v336 = vpop.permute.xlu0 %335
    %v338 = vmul.f32 %v332, %v336
    %340 = vrot.lane.b32.xlu0 %v338, 4
    %v341 = vpop.permute.xlu0 %340
    %v343 = vadd.f32 %v333, %v341
    %v344 = vtanh.pop %v343
    %346 = vrot.lane.b32.xlu0 %v344, 8
    %v347 = vpop.permute.xlu0 %346
    %v349 = vmul.f32 %v332, %v347
    %351 = vset.pattern.permute.xlu0 12
    %352 = vperm.xlu0 %351, %v349
    %v353 = vpop.permute.xlu0 %352
    %v355 = vmul.f32 %v353, %v168
    %356 = vset.pattern.permute.xlu0 13
    %357 = vperm.xlu0 %356, %v349
    %v358 = vpop.permute.xlu0 %357
    %v360 = vmul.f32 %v358, %v174
    %v361 = vadd.f32 %v355, %v360
    %362 = vset.pattern.permute.xlu0 14
    %363 = vperm.xlu0 %362, %v349
    %v364 = vpop.permute.xlu0 %363
    %v366 = vmul.f32 %v364, %v180
    %v367 = vadd.f32 %v361, %v366
    %368 = vset.pattern.permute.xlu0 15
    %369 = vperm.xlu0 %368, %v349
    %v370 = vpop.permute.xlu0 %369
    %v372 = vmul.f32 %v370, %v186
    %v373 = vadd.f32 %v367, %v372
    %v374 = vadd.f32 %v144, %v373
    %v375 = vtanh.pop %v374
    %v376 = vmul.f32 %v375, 0.5
    %v377 = vadd.f32 %v376, 0.5
    %v378 = vmul.f32 %v377, %v343
    %380 = vrot.lane.b32.xlu0 %v375, 120
    %v381 = vpop.permute.xlu0 %380
    %v383 = vmul.f32 %v377, %v381
    %385 = vrot.lane.b32.xlu0 %v383, 4
    %v386 = vpop.permute.xlu0 %385
    %v388 = vadd.f32 %v378, %v386
    %v389 = vtanh.pop %v388
    %391 = vrot.lane.b32.xlu0 %v389, 8
    %v392 = vpop.permute.xlu0 %391
    %v394 = vmul.f32 %v377, %v392
    %396 = vset.pattern.permute.xlu0 12
    %397 = vperm.xlu0 %396, %v394
    %v398 = vpop.permute.xlu0 %397
    %v400 = vmul.f32 %v398, %v168
    %401 = vset.pattern.permute.xlu0 13
    %402 = vperm.xlu0 %401, %v394
    %v403 = vpop.permute.xlu0 %402
    %v405 = vmul.f32 %v403, %v174
    %v406 = vadd.f32 %v400, %v405
    %407 = vset.pattern.permute.xlu0 14
    %408 = vperm.xlu0 %407, %v394
    %v409 = vpop.permute.xlu0 %408
    %v411 = vmul.f32 %v409, %v180
    %v412 = vadd.f32 %v406, %v411
    %413 = vset.pattern.permute.xlu0 15
    %414 = vperm.xlu0 %413, %v394
    %v415 = vpop.permute.xlu0 %414
    %v417 = vmul.f32 %v415, %v186
    %v418 = vadd.f32 %v412, %v417
    %v419 = vadd.f32 %v150, %v418
    %v420 = vtanh.pop %v419
    %v421 = vmul.f32 %v420, 0.5
    %v422 = vadd.f32 %v421, 0.5
    %v423 = vmul.f32 %v422, %v388
    %425 = vrot.lane.b32.xlu0 %v420, 120
    %v426 = vpop.permute.xlu0 %425
    %v428 = vmul.f32 %v422, %v426
    %430 = vrot.lane.b32.xlu0 %v428, 4
    %v431 = vpop.permute.xlu0 %430
    %v433 = vadd.f32 %v423, %v431
    %v434 = vtanh.pop %v433
    %436 = vrot.lane.b32.xlu0 %v434, 8
    %v437 = vpop.permute.xlu0 %436
    %v439 = vmul.f32 %v422, %v437
    %441 = vset.pattern.permute.xlu0 12
    %442 = vperm.xlu0 %441, %v439
    %v443 = vpop.permute.xlu0 %442
    %v445 = vmul.f32 %v443, %v168
    %446 = vset.pattern.permute.xlu0 13
    %447 = vperm.xlu0 %446, %v439
    %v448 = vpop.permute.xlu0 %447
    %v450 = vmul.f32 %v448, %v174
    %v451 = vadd.f32 %v445, %v450
    %452 = vset.pattern.permute.xlu0 14
    %453 = vperm.xlu0 %452, %v439
    %v454 = vpop.permute.xlu0 %453
    %v456 = vmul.f32 %v454, %v180
    %v457 = vadd.f32 %v451, %v456
    %458 = vset.pattern.permute.xlu0 15
    %459 = vperm.xlu0 %458, %v439
    %v460 = vpop.permute.xlu0 %459
    %v462 = vmul.f32 %v460, %v186
    %v463 = vadd.f32 %v457, %v462
    %v464 = vadd.f32 %v156, %v463
    %v465 = vtanh.pop %v464
    %v466 = vmul.f32 %v465, 0.5
    %v467 = vadd.f32 %v466, 0.5
    %v468 = vmul.f32 %v467, %v433
    %470 = vrot.lane.b32.xlu0 %v465, 120
    %v471 = vpop.permute.xlu0 %470
    %v473 = vmul.f32 %v467, %v471
    %475 = vrot.lane.b32.xlu0 %v473, 4
    %v476 = vpop.permute.xlu0 %475
    %v478 = vadd.f32 %v468, %v476
    %v479 = vtanh.pop %v478
    %481 = vrot.lane.b32.xlu0 %v479, 8
    %v482 = vpop.permute.xlu0 %481
    %v484 = vmul.f32 %v467, %v482
    %486 = vset.pattern.permute.xlu0 12
    %487 = vperm.xlu0 %486, %v484
    %v488 = vpop.permute.xlu0 %487
    %v490 = vmul.f32 %v488, %v168
    %491 = vset.pattern.permute.xlu0 13
    %492 = vperm.xlu0 %491, %v484
    %v493 = vpop.permute.xlu0 %492
    %v495 = vmul.f32 %v493, %v174
    %v496 = vadd.f32 %v490, %v495
    %497 = vset.pattern.permute.xlu0 14
    %498 = vperm.xlu0 %497, %v484
    %v499 = vpop.permute.xlu0 %498
    %v501 = vmul.f32 %v499, %v180
    %v502 = vadd.f32 %v496, %v501
    %503 = vset.pattern.permute.xlu0 15
    %504 = vperm.xlu0 %503, %v484
    %v505 = vpop.permute.xlu0 %504
    %v507 = vmul.f32 %v505, %v186
    %v508 = vadd.f32 %v502, %v507
    %v509 = vadd.f32 %v162, %v508
    %v510 = vtanh.pop %v509
    %v511 = vmul.f32 %v510, 0.5
    %v512 = vadd.f32 %v511, 0.5
    %v513 = vmul.f32 %v512, %v478
    %515 = vrot.lane.b32.xlu0 %v510, 120
    %v516 = vpop.permute.xlu0 %515
    %v518 = vmul.f32 %v512, %v516
    %520 = vrot.lane.b32.xlu0 %v518, 4
    %v521 = vpop.permute.xlu0 %520
    %v523 = vadd.f32 %v513, %v521
    %v524 = vtanh.pop %v523
    %526 = vrot.lane.b32.xlu0 %v524, 8
    %v527 = vpop.permute.xlu0 %526
    %v529 = vmul.f32 %v512, %v527
    %530 = vrot.lane.b32.xlu0 %v214, 116
    %v531 = vpop.permute.xlu0 %530
    %v534 = vrot.slane %v529, 2
    %535 = vrot.lane.b32.xlu0 %v534, 120
    %v536 = vpop.permute.xlu0 %535
    %vm538 = vcmask 31744
    %v539 = vsel %vm538, %v531, %v536
    %540 = vrot.lane.b32.xlu0 %v259, 116
    %v541 = vpop.permute.xlu0 %540
    %v543 = vrot.slane %v484, 2
    %544 = vrot.lane.b32.xlu0 %v543, 120
    %v545 = vpop.permute.xlu0 %544
    %v547 = vsel %vm538, %v541, %v545
    %548 = vrot.lane.b32.xlu0 %v304, 116
    %v549 = vpop.permute.xlu0 %548
    %v551 = vrot.slane %v439, 2
    %552 = vrot.lane.b32.xlu0 %v551, 120
    %v553 = vpop.permute.xlu0 %552
    %v555 = vsel %vm538, %v549, %v553
    %556 = vrot.lane.b32.xlu0 %v349, 116
    %v557 = vpop.permute.xlu0 %556
    %v559 = vrot.slane %v394, 2
    %560 = vrot.lane.b32.xlu0 %v559, 120
    %v561 = vpop.permute.xlu0 %560
    %v563 = vsel %vm538, %v557, %v561
    %564 = vrot.lane.b32.xlu0 %v394, 116
    %v565 = vpop.permute.xlu0 %564
    %v567 = vrot.slane %v349, 2
    %568 = vrot.lane.b32.xlu0 %v567, 120
    %v569 = vpop.permute.xlu0 %568
    %v571 = vsel %vm538, %v565, %v569
    %572 = vrot.lane.b32.xlu0 %v439, 116
    %v573 = vpop.permute.xlu0 %572
    %v575 = vrot.slane %v304, 2
    %576 = vrot.lane.b32.xlu0 %v575, 120
    %v577 = vpop.permute.xlu0 %576
    %v579 = vsel %vm538, %v573, %v577
    %580 = vrot.lane.b32.xlu0 %v484, 116
    %v581 = vpop.permute.xlu0 %580
    %v583 = vrot.slane %v259, 2
    %584 = vrot.lane.b32.xlu0 %v583, 120
    %v585 = vpop.permute.xlu0 %584
    %v587 = vsel %vm538, %v581, %v585
    %588 = vrot.lane.b32.xlu0 %v529, 116
    %v589 = vpop.permute.xlu0 %588
    %v591 = vrot.slane %v214, 2
    %592 = vrot.lane.b32.xlu0 %v591, 120
    %v593 = vpop.permute.xlu0 %592
    %v595 = vsel %vm538, %v589, %v593
    %v597 = vrot.slane %v547, 6
    %v600 = vrot.slane %v555, 4
    %v603 = vrot.slane %v563, 2
    %v606 = vrot.slane %v579, 6
    %v609 = vrot.slane %v587, 4
    %v612 = vrot.slane %v595, 2
    %v614 = vsel %vm119, %v539, %v597
    %vm615 = vcmask 1043456
    %v616 = vsel %vm615, %v614, %v600
    %vm617 = vcmask 1045504
    %v618 = vsel %vm617, %v616, %v603
    %v619 = vsel %vm119, %v571, %v606
    %v620 = vsel %vm615, %v619, %v609
    %v621 = vsel %vm617, %v620, %v612
    %s622 = scalar_lea.vmem [#allocation3], 8
    %v623 = vld [vmem:[%s622] sm:$0xff]
    %s624 = scalar_lea.vmem [#allocation5], 4
    %v625 = vld [vmem:[%s624] sm:$0xf]
    %s626 = scalar_lea.vmem %s3, 1
    %v627 = vld [vmem:[%s626] sm:$0x1]
    %v629 = vperm.slane %v627, 0
    %vm631 = vcmask 64512
    %v633 = vsel %vm631, %v618, 0
    %v636 = vsel %vm631, %v621, 0
    %638 = vmatpush.msra.mxu0 0.0
    %639 = vmatpush.msra.mxu0 0.0
    %640 = vmatpush.msra.mxu0 0.0
    %641 = vmatpush.msra.mxu0 0.0
    %642 = vmatpush.msra.mxu0 0.0
    %643 = vmatpush.msra.mxu0 0.0
    %644 = vmatpush.msra.mxu0 0.0
    %645 = vmatpush.msra.mxu0 0.0
    %646 = vmatpush.msra.mxu0 0.0
    %647 = vmatpush.msra.mxu0 0.0
    %648 = vmatpush.msra.mxu0 0.0
    %649 = vmatpush.msra.mxu0 0.0
    %650 = vmatpush.msra.mxu0 0.0
    %651 = vmatpush.msra.mxu0 0.0
    %652 = vmatpush.msra.mxu0 0.0
    %653 = vmatpush.msra.mxu0 %v623
    %654 = vmatmul.f32.gmra.mxu0 %v633
    %v655 = vpop.f32.mrf.mxu0
    %v656 = vadd.f32 %v629, %v655
    %657 = vmatmul.f32.gmra.mxu0 %v636
    %v658 = vpop.f32.mrf.mxu0
    %v659 = vadd.f32 %v629, %v658
    %660 = vdwg.mxu0
    %v662 = vrot.slane %v659, 4
    %663 = vrot.lane.b32.xlu0 %v662, 112
    %v664 = vpop.permute.xlu0 %663
    %v666 = vsel %vm119, %v656, %v664
    %v668 = vrot.slane %v656, 2
    %v670 = vrot.slane %v659, 2
    %671 = vrot.lane.b32.xlu0 %v670, 112
    %v672 = vpop.permute.xlu0 %671
    %v674 = vsel %vm119, %v668, %v672
    %v675 = vrot.slane %v656, 4
    %677 = vrot.lane.b32.xlu0 %v659, 112
    %v678 = vpop.permute.xlu0 %677
    %v680 = vsel %vm119, %v675, %v678
    %v681 = vrot.slane %v656, 6
    %v683 = vrot.slane %v659, 6
    %684 = vrot.lane.b32.xlu0 %v683, 112
    %v685 = vpop.permute.xlu0 %684
    %v687 = vsel %vm119, %v681, %v685
    %688 = vrot.lane.b32.xlu0 %v675, 112
    %v689 = vpop.permute.xlu0 %688
    %v691 = vsel %vm119, %v659, %v689
    %693 = vrot.lane.b32.xlu0 %v668, 112
    %v694 = vpop.permute.xlu0 %693
    %v696 = vsel %vm119, %v670, %v694
    %698 = vrot.lane.b32.xlu0 %v656, 112
    %v699 = vpop.permute.xlu0 %698
    %v701 = vsel %vm119, %v662, %v699
    %703 = vrot.lane.b32.xlu0 %v681, 112
    %v704 = vpop.permute.xlu0 %703
    %v706 = vsel %vm119, %v683, %v704
    %v707 = vperm.slane %v625, 0
    %709 = vrot.lane.b32.xlu0 %v707, 112
    %v710 = vpop.permute.xlu0 %709
    %v712 = vsel %vm119, %v707, %v710
    %v713 = vperm.slane %v625, 1
    %715 = vrot.lane.b32.xlu0 %v713, 112
    %v716 = vpop.permute.xlu0 %715
    %v718 = vsel %vm119, %v713, %v716
    %v719 = vperm.slane %v625, 2
    %721 = vrot.lane.b32.xlu0 %v719, 112
    %v722 = vpop.permute.xlu0 %721
    %v724 = vsel %vm119, %v719, %v722
    %v725 = vperm.slane %v625, 3
    %727 = vrot.lane.b32.xlu0 %v725, 112
    %v728 = vpop.permute.xlu0 %727
    %v730 = vsel %vm119, %v725, %v728
    %v731 = vmul.f32 %v712, 0.0
    %v732 = vmul.f32 %v718, 0.0
    %v733 = vadd.f32 %v731, %v732
    %v734 = vmul.f32 %v724, 0.0
    %v735 = vadd.f32 %v733, %v734
    %v736 = vmul.f32 %v730, 0.0
    %v737 = vadd.f32 %v735, %v736
    %v738 = vadd.f32 %v666, %v737
    %v739 = vtanh.pop %v738
    %v740 = vmul.f32 %v739, 0.5
    %v741 = vadd.f32 %v740, 0.5
    %v742 = vmul.f32 %v741, 0.0
    %744 = vrot.lane.b32.xlu0 %v739, 120
    %v745 = vpop.permute.xlu0 %744
    %v747 = vmul.f32 %v741, %v745
    %749 = vrot.lane.b32.xlu0 %v747, 4
    %v750 = vpop.permute.xlu0 %749
    %v752 = vadd.f32 %v742, %v750
    %v753 = vtanh.pop %v752
    %755 = vrot.lane.b32.xlu0 %v753, 8
    %v756 = vpop.permute.xlu0 %755
    %v758 = vmul.f32 %v741, %v756
    %760 = vset.pattern.permute.xlu0 12
    %761 = vperm.xlu0 %760, %v758
    %v762 = vpop.permute.xlu0 %761
    %v764 = vmul.f32 %v762, %v712
    %765 = vset.pattern.permute.xlu0 13
    %766 = vperm.xlu0 %765, %v758
    %v767 = vpop.permute.xlu0 %766
    %v769 = vmul.f32 %v767, %v718
    %v770 = vadd.f32 %v764, %v769
    %771 = vset.pattern.permute.xlu0 14
    %772 = vperm.xlu0 %771, %v758
    %v773 = vpop.permute.xlu0 %772
    %v775 = vmul.f32 %v773, %v724
    %v776 = vadd.f32 %v770, %v775
    %777 = vset.pattern.permute.xlu0 15
    %778 = vperm.xlu0 %777, %v758
    %v779 = vpop.permute.xlu0 %778
    %v781 = vmul.f32 %v779, %v730
    %v782 = vadd.f32 %v776, %v781
    %v783 = vadd.f32 %v674, %v782
    %v784 = vtanh.pop %v783
    %v785 = vmul.f32 %v784, 0.5
    %v786 = vadd.f32 %v785, 0.5
    %v787 = vmul.f32 %v786, %v752
    %789 = vrot.lane.b32.xlu0 %v784, 120
    %v790 = vpop.permute.xlu0 %789
    %v792 = vmul.f32 %v786, %v790
    %794 = vrot.lane.b32.xlu0 %v792, 4
    %v795 = vpop.permute.xlu0 %794
    %v797 = vadd.f32 %v787, %v795
    %v798 = vtanh.pop %v797
    %800 = vrot.lane.b32.xlu0 %v798, 8
    %v801 = vpop.permute.xlu0 %800
    %v803 = vmul.f32 %v786, %v801
    %805 = vset.pattern.permute.xlu0 12
    %806 = vperm.xlu0 %805, %v803
    %v807 = vpop.permute.xlu0 %806
    %v809 = vmul.f32 %v807, %v712
    %810 = vset.pattern.permute.xlu0 13
    %811 = vperm.xlu0 %810, %v803
    %v812 = vpop.permute.xlu0 %811
    %v814 = vmul.f32 %v812, %v718
    %v815 = vadd.f32 %v809, %v814
    %816 = vset.pattern.permute.xlu0 14
    %817 = vperm.xlu0 %816, %v803
    %v818 = vpop.permute.xlu0 %817
    %v820 = vmul.f32 %v818, %v724
    %v821 = vadd.f32 %v815, %v820
    %822 = vset.pattern.permute.xlu0 15
    %823 = vperm.xlu0 %822, %v803
    %v824 = vpop.permute.xlu0 %823
    %v826 = vmul.f32 %v824, %v730
    %v827 = vadd.f32 %v821, %v826
    %v828 = vadd.f32 %v680, %v827
    %v829 = vtanh.pop %v828
    %v830 = vmul.f32 %v829, 0.5
    %v831 = vadd.f32 %v830, 0.5
    %v832 = vmul.f32 %v831, %v797
    %834 = vrot.lane.b32.xlu0 %v829, 120
    %v835 = vpop.permute.xlu0 %834
    %v837 = vmul.f32 %v831, %v835
    %839 = vrot.lane.b32.xlu0 %v837, 4
    %v840 = vpop.permute.xlu0 %839
    %v842 = vadd.f32 %v832, %v840
    %v843 = vtanh.pop %v842
    %845 = vrot.lane.b32.xlu0 %v843, 8
    %v846 = vpop.permute.xlu0 %845
    %v848 = vmul.f32 %v831, %v846
    %850 = vset.pattern.permute.xlu0 12
    %851 = vperm.xlu0 %850, %v848
    %v852 = vpop.permute.xlu0 %851
    %v854 = vmul.f32 %v852, %v712
    %855 = vset.pattern.permute.xlu0 13
    %856 = vperm.xlu0 %855, %v848
    %v857 = vpop.permute.xlu0 %856
    %v859 = vmul.f32 %v857, %v718
    %v860 = vadd.f32 %v854, %v859
    %861 = vset.pattern.permute.xlu0 14
    %862 = vperm.xlu0 %861, %v848
    %v863 = vpop.permute.xlu0 %862
    %v865 = vmul.f32 %v863, %v724
    %v866 = vadd.f32 %v860, %v865
    %867 = vset.pattern.permute.xlu0 15
    %868 = vperm.xlu0 %867, %v848
    %v869 = vpop.permute.xlu0 %868
    %v871 = vmul.f32 %v869, %v730
    %v872 = vadd.f32 %v866, %v871
    %v873 = vadd.f32 %v687, %v872
    %v874 = vtanh.pop %v873
    %v875 = vmul.f32 %v874, 0.5
    %v876 = vadd.f32 %v875, 0.5
    %v877 = vmul.f32 %v876, %v842
    %879 = vrot.lane.b32.xlu0 %v874, 120
    %v880 = vpop.permute.xlu0 %879
    %v882 = vmul.f32 %v876, %v880
    %884 = vrot.lane.b32.xlu0 %v882, 4
    %v885 = vpop.permute.xlu0 %884
    %v887 = vadd.f32 %v877, %v885
    %v888 = vtanh.pop %v887
    %890 = vrot.lane.b32.xlu0 %v888, 8
    %v891 = vpop.permute.xlu0 %890
    %v893 = vmul.f32 %v876, %v891
    %895 = vset.pattern.permute.xlu0 12
    %896 = vperm.xlu0 %895, %v893
    %v897 = vpop.permute.xlu0 %896
    %v899 = vmul.f32 %v897, %v712
    %900 = vset.pattern.permute.xlu0 13
    %901 = vperm.xlu0 %900, %v893
    %v902 = vpop.permute.xlu0 %901
    %v904 = vmul.f32 %v902, %v718
    %v905 = vadd.f32 %v899, %v904
    %906 = vset.pattern.permute.xlu0 14
    %907 = vperm.xlu0 %906, %v893
    %v908 = vpop.permute.xlu0 %907
    %v910 = vmul.f32 %v908, %v724
    %v911 = vadd.f32 %v905, %v910
    %912 = vset.pattern.permute.xlu0 15
    %913 = vperm.xlu0 %912, %v893
    %v914 = vpop.permute.xlu0 %913
    %v916 = vmul.f32 %v914, %v730
    %v917 = vadd.f32 %v911, %v916
    %v918 = vadd.f32 %v691, %v917
    %v919 = vtanh.pop %v918
    %v920 = vmul.f32 %v919, 0.5
    %v921 = vadd.f32 %v920, 0.5
    %v922 = vmul.f32 %v921, %v887
    %924 = vrot.lane.b32.xlu0 %v919, 120
    %v925 = vpop.permute.xlu0 %924
    %v927 = vmul.f32 %v921, %v925
    %929 = vrot.lane.b32.xlu0 %v927, 4
    %v930 = vpop.permute.xlu0 %929
    %v932 = vadd.f32 %v922, %v930
    %v933 = vtanh.pop %v932
    %935 = vrot.lane.b32.xlu0 %v933, 8
    %v936 = vpop.permute.xlu0 %935
    %v938 = vmul.f32 %v921, %v936
    %940 = vset.pattern.permute.xlu0 12
    %941 = vperm.xlu0 %940, %v938
    %v942 = vpop.permute.xlu0 %941
    %v944 = vmul.f32 %v942, %v712
    %945 = vset.pattern.permute.xlu0 13
    %946 = vperm.xlu0 %945, %v938
    %v947 = vpop.permute.xlu0 %946
    %v949 = vmul.f32 %v947, %v718
    %v950 = vadd.f32 %v944, %v949
    %951 = vset.pattern.permute.xlu0 14
    %952 = vperm.xlu0 %951, %v938
    %v953 = vpop.permute.xlu0 %952
    %v955 = vmul.f32 %v953, %v724
    %v956 = vadd.f32 %v950, %v955
    %957 = vset.pattern.permute.xlu0 15
    %958 = vperm.xlu0 %957, %v938
    %v959 = vpop.permute.xlu0 %958
    %v961 = vmul.f32 %v959, %v730
    %v962 = vadd.f32 %v956, %v961
    %v963 = vadd.f32 %v696, %v962
    %v964 = vtanh.pop %v963
    %v965 = vmul.f32 %v964, 0.5
    %v966 = vadd.f32 %v965, 0.5
    %v967 = vmul.f32 %v966, %v932
    %969 = vrot.lane.b32.xlu0 %v964, 120
    %v970 = vpop.permute.xlu0 %969
    %v972 = vmul.f32 %v966, %v970
    %974 = vrot.lane.b32.xlu0 %v972, 4
    %v975 = vpop.permute.xlu0 %974
    %v977 = vadd.f32 %v967, %v975
    %v978 = vtanh.pop %v977
    %980 = vrot.lane.b32.xlu0 %v978, 8
    %v981 = vpop.permute.xlu0 %980
    %v983 = vmul.f32 %v966, %v981
    %985 = vset.pattern.permute.xlu0 12
    %986 = vperm.xlu0 %985, %v983
    %v987 = vpop.permute.xlu0 %986
    %v989 = vmul.f32 %v987, %v712
    %990 = vset.pattern.permute.xlu0 13
    %991 = vperm.xlu0 %990, %v983
    %v992 = vpop.permute.xlu0 %991
    %v994 = vmul.f32 %v992, %v718
    %v995 = vadd.f32 %v989, %v994
    %996 = vset.pattern.permute.xlu0 14
    %997 = vperm.xlu0 %996, %v983
    %v998 = vpop.permute.xlu0 %997
    %v1000 = vmul.f32 %v998, %v724
    %v1001 = vadd.f32 %v995, %v1000
    %1002 = vset.pattern.permute.xlu0 15
    %1003 = vperm.xlu0 %1002, %v983
    %v1004 = vpop.permute.xlu0 %1003
    %v1006 = vmul.f32 %v1004, %v730
    %v1007 = vadd.f32 %v1001, %v1006
    %v1008 = vadd.f32 %v701, %v1007
    %v1009 = vtanh.pop %v1008
    %v1010 = vmul.f32 %v1009, 0.5
    %v1011 = vadd.f32 %v1010, 0.5
    %v1012 = vmul.f32 %v1011, %v977
    %1014 = vrot.lane.b32.xlu0 %v1009, 120
    %v1015 = vpop.permute.xlu0 %1014
    %v1017 = vmul.f32 %v1011, %v1015
    %1019 = vrot.lane.b32.xlu0 %v1017, 4
    %v1020 = vpop.permute.xlu0 %1019
    %v1022 = vadd.f32 %v1012, %v1020
    %v1023 = vtanh.pop %v1022
    %1025 = vrot.lane.b32.xlu0 %v1023, 8
    %v1026 = vpop.permute.xlu0 %1025
    %v1028 = vmul.f32 %v1011, %v1026
    %1030 = vset.pattern.permute.xlu0 12
    %1031 = vperm.xlu0 %1030, %v1028
    %v1032 = vpop.permute.xlu0 %1031
    %v1034 = vmul.f32 %v1032, %v712
    %1035 = vset.pattern.permute.xlu0 13
    %1036 = vperm.xlu0 %1035, %v1028
    %v1037 = vpop.permute.xlu0 %1036
    %v1039 = vmul.f32 %v1037, %v718
    %v1040 = vadd.f32 %v1034, %v1039
    %1041 = vset.pattern.permute.xlu0 14
    %1042 = vperm.xlu0 %1041, %v1028
    %v1043 = vpop.permute.xlu0 %1042
    %v1045 = vmul.f32 %v1043, %v724
    %v1046 = vadd.f32 %v1040, %v1045
    %1047 = vset.pattern.permute.xlu0 15
    %1048 = vperm.xlu0 %1047, %v1028
    %v1049 = vpop.permute.xlu0 %1048
    %v1051 = vmul.f32 %v1049, %v730
    %v1052 = vadd.f32 %v1046, %v1051
    %v1053 = vadd.f32 %v706, %v1052
    %v1054 = vtanh.pop %v1053
    %v1055 = vmul.f32 %v1054, 0.5
    %v1056 = vadd.f32 %v1055, 0.5
    %v1057 = vmul.f32 %v1056, %v1022
    %1059 = vrot.lane.b32.xlu0 %v1054, 120
    %v1060 = vpop.permute.xlu0 %1059
    %v1062 = vmul.f32 %v1056, %v1060
    %1064 = vrot.lane.b32.xlu0 %v1062, 4
    %v1065 = vpop.permute.xlu0 %1064
    %v1067 = vadd.f32 %v1057, %v1065
    %v1068 = vtanh.pop %v1067
    %1070 = vrot.lane.b32.xlu0 %v1068, 8
    %v1071 = vpop.permute.xlu0 %1070
    %v1073 = vmul.f32 %v1056, %v1071
    %1074 = vrot.lane.b32.xlu0 %v758, 116
    %v1075 = vpop.permute.xlu0 %1074
    %v1078 = vrot.slane %v1073, 2
    %1079 = vrot.lane.b32.xlu0 %v1078, 120
    %v1080 = vpop.permute.xlu0 %1079
    %v1082 = vsel %vm538, %v1075, %v1080
    %1083 = vrot.lane.b32.xlu0 %v803, 116
    %v1084 = vpop.permute.xlu0 %1083
    %v1086 = vrot.slane %v1028, 2
    %1087 = vrot.lane.b32.xlu0 %v1086, 120
    %v1088 = vpop.permute.xlu0 %1087
    %v1090 = vsel %vm538, %v1084, %v1088
    %1091 = vrot.lane.b32.xlu0 %v848, 116
    %v1092 = vpop.permute.xlu0 %1091
    %v1094 = vrot.slane %v983, 2
    %1095 = vrot.lane.b32.xlu0 %v1094, 120
    %v1096 = vpop.permute.xlu0 %1095
    %v1098 = vsel %vm538, %v1092, %v1096
    %1099 = vrot.lane.b32.xlu0 %v893, 116
    %v1100 = vpop.permute.xlu0 %1099
    %v1102 = vrot.slane %v938, 2
    %1103 = vrot.lane.b32.xlu0 %v1102, 120
    %v1104 = vpop.permute.xlu0 %1103
    %v1106 = vsel %vm538, %v1100, %v1104
    %1107 = vrot.lane.b32.xlu0 %v938, 116
    %v1108 = vpop.permute.xlu0 %1107
    %v1110 = vrot.slane %v893, 2
    %1111 = vrot.lane.b32.xlu0 %v1110, 120
    %v1112 = vpop.permute.xlu0 %1111
    %v1114 = vsel %vm538, %v1108, %v1112
    %1115 = vrot.lane.b32.xlu0 %v983, 116
    %v1116 = vpop.permute.xlu0 %1115
    %v1118 = vrot.slane %v848, 2
    %1119 = vrot.lane.b32.xlu0 %v1118, 120
    %v1120 = vpop.permute.xlu0 %1119
    %v1122 = vsel %vm538, %v1116, %v1120
    %1123 = vrot.lane.b32.xlu0 %v1028, 116
    %v1124 = vpop.permute.xlu0 %1123
    %v1126 = vrot.slane %v803, 2
    %1127 = vrot.lane.b32.xlu0 %v1126, 120
    %v1128 = vpop.permute.xlu0 %1127
    %v1130 = vsel %vm538, %v1124, %v1128
    %1131 = vrot.lane.b32.xlu0 %v1073, 116
    %v1132 = vpop.permute.xlu0 %1131
    %v1134 = vrot.slane %v758, 2
    %1135 = vrot.lane.b32.xlu0 %v1134, 120
    %v1136 = vpop.permute.xlu0 %1135
    %v1138 = vsel %vm538, %v1132, %v1136
    %v1140 = vrot.slane %v1090, 6
    %v1143 = vrot.slane %v1098, 4
    %v1146 = vrot.slane %v1106, 2
    %v1149 = vrot.slane %v1122, 6
    %v1152 = vrot.slane %v1130, 4
    %v1155 = vrot.slane %v1138, 2
    %v1157 = vsel %vm119, %v1082, %v1140
    %v1158 = vsel %vm615, %v1157, %v1143
    %v1159 = vsel %vm617, %v1158, %v1146
    %v1160 = vsel %vm119, %v1114, %v1149
    %v1161 = vsel %vm615, %v1160, %v1152
    %v1162 = vsel %vm617, %v1161, %v1155
    %s1163 = scalar_lea.vmem [#allocation3], 16
    %v1164 = vld [vmem:[%s1163] sm:$0xff]
    %s1165 = scalar_lea.vmem [#allocation5], 8
    %v1166 = vld [vmem:[%s1165] sm:$0xf]
    %s1167 = scalar_lea.vmem %s3, 2
    %v1168 = vld [vmem:[%s1167] sm:$0x1]
    %v1170 = vperm.slane %v1168, 0
    %v1173 = vsel %vm631, %v1159, 0
    %v1176 = vsel %vm631, %v1162, 0
    %1178 = vmatpush.msra.mxu0 0.0
    %1179 = vmatpush.msra.mxu0 0.0
    %1180 = vmatpush.msra.mxu0 0.0
    %1181 = vmatpush.msra.mxu0 0.0
    %1182 = vmatpush.msra.mxu0 0.0
    %1183 = vmatpush.msra.mxu0 0.0
    %1184 = vmatpush.msra.mxu0 0.0
    %1185 = vmatpush.msra.mxu0 0.0
    %1186 = vmatpush.msra.mxu0 0.0
    %1187 = vmatpush.msra.mxu0 0.0
    %1188 = vmatpush.msra.mxu0 0.0
    %1189 = vmatpush.msra.mxu0 0.0
    %1190 = vmatpush.msra.mxu0 0.0
    %1191 = vmatpush.msra.mxu0 0.0
    %1192 = vmatpush.msra.mxu0 0.0
    %1193 = vmatpush.msra.mxu0 %v1164
    %1194 = vmatmul.f32.gmra.mxu0 %v1173
    %v1195 = vpop.f32.mrf.mxu0
    %v1196 = vadd.f32 %v1170, %v1195
    %1197 = vmatmul.f32.gmra.mxu0 %v1176
    %v1198 = vpop.f32.mrf.mxu0
    %v1199 = vadd.f32 %v1170, %v1198
    %1200 = vdwg.mxu0
    %v1202 = vrot.slane %v1199, 4
    %1203 = vrot.lane.b32.xlu0 %v1202, 112
    %v1204 = vpop.permute.xlu0 %1203
    %v1206 = vsel %vm119, %v1196, %v1204
    %v1208 = vrot.slane %v1196, 2
    %v1210 = vrot.slane %v1199, 2
    %1211 = vrot.lane.b32.xlu0 %v1210, 112
    %v1212 = vpop.permute.xlu0 %1211
    %v1214 = vsel %vm119, %v1208, %v1212
    %v1215 = vrot.slane %v1196, 4
    %1217 = vrot.lane.b32.xlu0 %v1199, 112
    %v1218 = vpop.permute.xlu0 %1217
    %v1220 = vsel %vm119, %v1215, %v1218
    %v1221 = vrot.slane %v1196, 6
    %v1223 = vrot.slane %v1199, 6
    %1224 = vrot.lane.b32.xlu0 %v1223, 112
    %v1225 = vpop.permute.xlu0 %1224
    %v1227 = vsel %vm119, %v1221, %v1225
    %1228 = vrot.lane.b32.xlu0 %v1215, 112
    %v1229 = vpop.permute.xlu0 %1228
    %v1231 = vsel %vm119, %v1199, %v1229
    %1233 = vrot.lane.b32.xlu0 %v1208, 112
    %v1234 = vpop.permute.xlu0 %1233
    %v1236 = vsel %vm119, %v1210, %v1234
    %1238 = vrot.lane.b32.xlu0 %v1196, 112
    %v1239 = vpop.permute.xlu0 %1238
    %v1241 = vsel %vm119, %v1202, %v1239
    %1243 = vrot.lane.b32.xlu0 %v1221, 112
    %v1244 = vpop.permute.xlu0 %1243
    %v1246 = vsel %vm119, %v1223, %v1244
    %v1247 = vperm.slane %v1166, 0
    %1249 = vrot.lane.b32.xlu0 %v1247, 112
    %v1250 = vpop.permute.xlu0 %1249
    %v1252 = vsel %vm119, %v1247, %v1250
    %v1253 = vperm.slane %v1166, 1
    %1255 = vrot.lane.b32.xlu0 %v1253, 112
    %v1256 = vpop.permute.xlu0 %1255
    %v1258 = vsel %vm119, %v1253, %v1256
    %v1259 = vperm.slane %v1166, 2
    %1261 = vrot.lane.b32.xlu0 %v1259, 112
    %v1262 = vpop.permute.xlu0 %1261
    %v1264 = vsel %vm119, %v1259, %v1262
    %v1265 = vperm.slane %v1166, 3
    %1267 = vrot.lane.b32.xlu0 %v1265, 112
    %v1268 = vpop.permute.xlu0 %1267
    %v1270 = vsel %vm119, %v1265, %v1268
    %v1271 = vmul.f32 %v1252, 0.0
    %v1272 = vmul.f32 %v1258, 0.0
    %v1273 = vadd.f32 %v1271, %v1272
    %v1274 = vmul.f32 %v1264, 0.0
    %v1275 = vadd.f32 %v1273, %v1274
    %v1276 = vmul.f32 %v1270, 0.0
    %v1277 = vadd.f32 %v1275, %v1276
    %v1278 = vadd.f32 %v1206, %v1277
    %v1279 = vtanh.pop %v1278
    %v1280 = vmul.f32 %v1279, 0.5
    %v1281 = vadd.f32 %v1280, 0.5
    %v1282 = vmul.f32 %v1281, 0.0
    %1284 = vrot.lane.b32.xlu0 %v1279, 120
    %v1285 = vpop.permute.xlu0 %1284
    %v1287 = vmul.f32 %v1281, %v1285
    %1289 = vrot.lane.b32.xlu0 %v1287, 4
    %v1290 = vpop.permute.xlu0 %1289
    %v1292 = vadd.f32 %v1282, %v1290
    %v1293 = vtanh.pop %v1292
    %1295 = vrot.lane.b32.xlu0 %v1293, 8
    %v1296 = vpop.permute.xlu0 %1295
    %v1298 = vmul.f32 %v1281, %v1296
    %1300 = vset.pattern.permute.xlu0 12
    %1301 = vperm.xlu0 %1300, %v1298
    %v1302 = vpop.permute.xlu0 %1301
    %v1304 = vmul.f32 %v1302, %v1252
    %1305 = vset.pattern.permute.xlu0 13
    %1306 = vperm.xlu0 %1305, %v1298
    %v1307 = vpop.permute.xlu0 %1306
    %v1309 = vmul.f32 %v1307, %v1258
    %v1310 = vadd.f32 %v1304, %v1309
    %1311 = vset.pattern.permute.xlu0 14
    %1312 = vperm.xlu0 %1311, %v1298
    %v1313 = vpop.permute.xlu0 %1312
    %v1315 = vmul.f32 %v1313, %v1264
    %v1316 = vadd.f32 %v1310, %v1315
    %1317 = vset.pattern.permute.xlu0 15
    %1318 = vperm.xlu0 %1317, %v1298
    %v1319 = vpop.permute.xlu0 %1318
    %v1321 = vmul.f32 %v1319, %v1270
    %v1322 = vadd.f32 %v1316, %v1321
    %v1323 = vadd.f32 %v1214, %v1322
    %v1324 = vtanh.pop %v1323
    %v1325 = vmul.f32 %v1324, 0.5
    %v1326 = vadd.f32 %v1325, 0.5
    %v1327 = vmul.f32 %v1326, %v1292
    %1329 = vrot.lane.b32.xlu0 %v1324, 120
    %v1330 = vpop.permute.xlu0 %1329
    %v1332 = vmul.f32 %v1326, %v1330
    %1334 = vrot.lane.b32.xlu0 %v1332, 4
    %v1335 = vpop.permute.xlu0 %1334
    %v1337 = vadd.f32 %v1327, %v1335
    %v1338 = vtanh.pop %v1337
    %1340 = vrot.lane.b32.xlu0 %v1338, 8
    %v1341 = vpop.permute.xlu0 %1340
    %v1343 = vmul.f32 %v1326, %v1341
    %1345 = vset.pattern.permute.xlu0 12
    %1346 = vperm.xlu0 %1345, %v1343
    %v1347 = vpop.permute.xlu0 %1346
    %v1349 = vmul.f32 %v1347, %v1252
    %1350 = vset.pattern.permute.xlu0 13
    %1351 = vperm.xlu0 %1350, %v1343
    %v1352 = vpop.permute.xlu0 %1351
    %v1354 = vmul.f32 %v1352, %v1258
    %v1355 = vadd.f32 %v1349, %v1354
    %1356 = vset.pattern.permute.xlu0 14
    %1357 = vperm.xlu0 %1356, %v1343
    %v1358 = vpop.permute.xlu0 %1357
    %v1360 = vmul.f32 %v1358, %v1264
    %v1361 = vadd.f32 %v1355, %v1360
    %1362 = vset.pattern.permute.xlu0 15
    %1363 = vperm.xlu0 %1362, %v1343
    %v1364 = vpop.permute.xlu0 %1363
    %v1366 = vmul.f32 %v1364, %v1270
    %v1367 = vadd.f32 %v1361, %v1366
    %v1368 = vadd.f32 %v1220, %v1367
    %v1369 = vtanh.pop %v1368
    %v1370 = vmul.f32 %v1369, 0.5
    %v1371 = vadd.f32 %v1370, 0.5
    %v1372 = vmul.f32 %v1371, %v1337
    %1374 = vrot.lane.b32.xlu0 %v1369, 120
    %v1375 = vpop.permute.xlu0 %1374
    %v1377 = vmul.f32 %v1371, %v1375
    %1379 = vrot.lane.b32.xlu0 %v1377, 4
    %v1380 = vpop.permute.xlu0 %1379
    %v1382 = vadd.f32 %v1372, %v1380
    %v1383 = vtanh.pop %v1382
    %1385 = vrot.lane.b32.xlu0 %v1383, 8
    %v1386 = vpop.permute.xlu0 %1385
    %v1388 = vmul.f32 %v1371, %v1386
    %1390 = vset.pattern.permute.xlu0 12
    %1391 = vperm.xlu0 %1390, %v1388
    %v1392 = vpop.permute.xlu0 %1391
    %v1394 = vmul.f32 %v1392, %v1252
    %1395 = vset.pattern.permute.xlu0 13
    %1396 = vperm.xlu0 %1395, %v1388
    %v1397 = vpop.permute.xlu0 %1396
    %v1399 = vmul.f32 %v1397, %v1258
    %v1400 = vadd.f32 %v1394, %v1399
    %1401 = vset.pattern.permute.xlu0 14
    %1402 = vperm.xlu0 %1401, %v1388
    %v1403 = vpop.permute.xlu0 %1402
    %v1405 = vmul.f32 %v1403, %v1264
    %v1406 = vadd.f32 %v1400, %v1405
    %1407 = vset.pattern.permute.xlu0 15
    %1408 = vperm.xlu0 %1407, %v1388
    %v1409 = vpop.permute.xlu0 %1408
    %v1411 = vmul.f32 %v1409, %v1270
    %v1412 = vadd.f32 %v1406, %v1411
    %v1413 = vadd.f32 %v1227, %v1412
    %v1414 = vtanh.pop %v1413
    %v1415 = vmul.f32 %v1414, 0.5
    %v1416 = vadd.f32 %v1415, 0.5
    %v1417 = vmul.f32 %v1416, %v1382
    %1419 = vrot.lane.b32.xlu0 %v1414, 120
    %v1420 = vpop.permute.xlu0 %1419
    %v1422 = vmul.f32 %v1416, %v1420
    %1424 = vrot.lane.b32.xlu0 %v1422, 4
    %v1425 = vpop.permute.xlu0 %1424
    %v1427 = vadd.f32 %v1417, %v1425
    %v1428 = vtanh.pop %v1427
    %1430 = vrot.lane.b32.xlu0 %v1428, 8
    %v1431 = vpop.permute.xlu0 %1430
    %v1433 = vmul.f32 %v1416, %v1431
    %1435 = vset.pattern.permute.xlu0 12
    %1436 = vperm.xlu0 %1435, %v1433
    %v1437 = vpop.permute.xlu0 %1436
    %v1439 = vmul.f32 %v1437, %v1252
    %1440 = vset.pattern.permute.xlu0 13
    %1441 = vperm.xlu0 %1440, %v1433
    %v1442 = vpop.permute.xlu0 %1441
    %v1444 = vmul.f32 %v1442, %v1258
    %v1445 = vadd.f32 %v1439, %v1444
    %1446 = vset.pattern.permute.xlu0 14
    %1447 = vperm.xlu0 %1446, %v1433
    %v1448 = vpop.permute.xlu0 %1447
    %v1450 = vmul.f32 %v1448, %v1264
    %v1451 = vadd.f32 %v1445, %v1450
    %1452 = vset.pattern.permute.xlu0 15
    %1453 = vperm.xlu0 %1452, %v1433
    %v1454 = vpop.permute.xlu0 %1453
    %v1456 = vmul.f32 %v1454, %v1270
    %v1457 = vadd.f32 %v1451, %v1456
    %v1458 = vadd.f32 %v1231, %v1457
    %v1459 = vtanh.pop %v1458
    %v1460 = vmul.f32 %v1459, 0.5
    %v1461 = vadd.f32 %v1460, 0.5
    %v1462 = vmul.f32 %v1461, %v1427
    %1464 = vrot.lane.b32.xlu0 %v1459, 120
    %v1465 = vpop.permute.xlu0 %1464
    %v1467 = vmul.f32 %v1461, %v1465
    %1469 = vrot.lane.b32.xlu0 %v1467, 4
    %v1470 = vpop.permute.xlu0 %1469
    %v1472 = vadd.f32 %v1462, %v1470
    %v1473 = vtanh.pop %v1472
    %1475 = vrot.lane.b32.xlu0 %v1473, 8
    %v1476 = vpop.permute.xlu0 %1475
    %v1478 = vmul.f32 %v1461, %v1476
    %1480 = vset.pattern.permute.xlu0 12
    %1481 = vperm.xlu0 %1480, %v1478
    %v1482 = vpop.permute.xlu0 %1481
    %v1484 = vmul.f32 %v1482, %v1252
    %1485 = vset.pattern.permute.xlu0 13
    %1486 = vperm.xlu0 %1485, %v1478
    %v1487 = vpop.permute.xlu0 %1486
    %v1489 = vmul.f32 %v1487, %v1258
    %v1490 = vadd.f32 %v1484, %v1489
    %1491 = vset.pattern.permute.xlu0 14
    %1492 = vperm.xlu0 %1491, %v1478
    %v1493 = vpop.permute.xlu0 %1492
    %v1495 = vmul.f32 %v1493, %v1264
    %v1496 = vadd.f32 %v1490, %v1495
    %1497 = vset.pattern.permute.xlu0 15
    %1498 = vperm.xlu0 %1497, %v1478
    %v1499 = vpop.permute.xlu0 %1498
    %v1501 = vmul.f32 %v1499, %v1270
    %v1502 = vadd.f32 %v1496, %v1501
    %v1503 = vadd.f32 %v1236, %v1502
    %v1504 = vtanh.pop %v1503
    %v1505 = vmul.f32 %v1504, 0.5
    %v1506 = vadd.f32 %v1505, 0.5
    %v1507 = vmul.f32 %v1506, %v1472
    %1509 = vrot.lane.b32.xlu0 %v1504, 120
    %v1510 = vpop.permute.xlu0 %1509
    %v1512 = vmul.f32 %v1506, %v1510
    %1514 = vrot.lane.b32.xlu0 %v1512, 4
    %v1515 = vpop.permute.xlu0 %1514
    %v1517 = vadd.f32 %v1507, %v1515
    %v1518 = vtanh.pop %v1517
    %1520 = vrot.lane.b32.xlu0 %v1518, 8
    %v1521 = vpop.permute.xlu0 %1520
    %v1523 = vmul.f32 %v1506, %v1521
    %1525 = vset.pattern.permute.xlu0 12
    %1526 = vperm.xlu0 %1525, %v1523
    %v1527 = vpop.permute.xlu0 %1526
    %v1529 = vmul.f32 %v1527, %v1252
    %1530 = vset.pattern.permute.xlu0 13
    %1531 = vperm.xlu0 %1530, %v1523
    %v1532 = vpop.permute.xlu0 %1531
    %v1534 = vmul.f32 %v1532, %v1258
    %v1535 = vadd.f32 %v1529, %v1534
    %1536 = vset.pattern.permute.xlu0 14
    %1537 = vperm.xlu0 %1536, %v1523
    %v1538 = vpop.permute.xlu0 %1537
    %v1540 = vmul.f32 %v1538, %v1264
    %v1541 = vadd.f32 %v1535, %v1540
    %1542 = vset.pattern.permute.xlu0 15
    %1543 = vperm.xlu0 %1542, %v1523
    %v1544 = vpop.permute.xlu0 %1543
    %v1546 = vmul.f32 %v1544, %v1270
    %v1547 = vadd.f32 %v1541, %v1546
    %v1548 = vadd.f32 %v1241, %v1547
    %v1549 = vtanh.pop %v1548
    %v1550 = vmul.f32 %v1549, 0.5
    %v1551 = vadd.f32 %v1550, 0.5
    %v1552 = vmul.f32 %v1551, %v1517
    %1554 = vrot.lane.b32.xlu0 %v1549, 120
    %v1555 = vpop.permute.xlu0 %1554
    %v1557 = vmul.f32 %v1551, %v1555
    %1559 = vrot.lane.b32.xlu0 %v1557, 4
    %v1560 = vpop.permute.xlu0 %1559
    %v1562 = vadd.f32 %v1552, %v1560
    %v1563 = vtanh.pop %v1562
    %1565 = vrot.lane.b32.xlu0 %v1563, 8
    %v1566 = vpop.permute.xlu0 %1565
    %v1568 = vmul.f32 %v1551, %v1566
    %1570 = vset.pattern.permute.xlu0 12
    %1571 = vperm.xlu0 %1570, %v1568
    %v1572 = vpop.permute.xlu0 %1571
    %v1574 = vmul.f32 %v1572, %v1252
    %1575 = vset.pattern.permute.xlu0 13
    %1576 = vperm.xlu0 %1575, %v1568
    %v1577 = vpop.permute.xlu0 %1576
    %v1579 = vmul.f32 %v1577, %v1258
    %v1580 = vadd.f32 %v1574, %v1579
    %1581 = vset.pattern.permute.xlu0 14
    %1582 = vperm.xlu0 %1581, %v1568
    %v1583 = vpop.permute.xlu0 %1582
    %v1585 = vmul.f32 %v1583, %v1264
    %v1586 = vadd.f32 %v1580, %v1585
    %1587 = vset.pattern.permute.xlu0 15
    %1588 = vperm.xlu0 %1587, %v1568
    %v1589 = vpop.permute.xlu0 %1588
    %v1591 = vmul.f32 %v1589, %v1270
    %v1592 = vadd.f32 %v1586, %v1591
    %v1593 = vadd.f32 %v1246, %v1592
    %v1594 = vtanh.pop %v1593
    %v1595 = vmul.f32 %v1594, 0.5
    %v1596 = vadd.f32 %v1595, 0.5
    %v1597 = vmul.f32 %v1596, %v1562
    %1599 = vrot.lane.b32.xlu0 %v1594, 120
    %v1600 = vpop.permute.xlu0 %1599
    %v1602 = vmul.f32 %v1596, %v1600
    %1604 = vrot.lane.b32.xlu0 %v1602, 4
    %v1605 = vpop.permute.xlu0 %1604
    %v1607 = vadd.f32 %v1597, %v1605
    %v1608 = vtanh.pop %v1607
    %1610 = vrot.lane.b32.xlu0 %v1608, 8
    %v1611 = vpop.permute.xlu0 %1610
    %v1613 = vmul.f32 %v1596, %v1611
    %1614 = vrot.lane.b32.xlu0 %v1298, 116
    %v1615 = vpop.permute.xlu0 %1614
    %v1618 = vrot.slane %v1613, 2
    %1619 = vrot.lane.b32.xlu0 %v1618, 120
    %v1620 = vpop.permute.xlu0 %1619
    %v1622 = vsel %vm538, %v1615, %v1620
    %1623 = vrot.lane.b32.xlu0 %v1343, 116
    %v1624 = vpop.permute.xlu0 %1623
    %v1626 = vrot.slane %v1568, 2
    %1627 = vrot.lane.b32.xlu0 %v1626, 120
    %v1628 = vpop.permute.xlu0 %1627
    %v1630 = vsel %vm538, %v1624, %v1628
    %1631 = vrot.lane.b32.xlu0 %v1388, 116
    %v1632 = vpop.permute.xlu0 %1631
    %v1634 = vrot.slane %v1523, 2
    %1635 = vrot.lane.b32.xlu0 %v1634, 120
    %v1636 = vpop.permute.xlu0 %1635
    %v1638 = vsel %vm538, %v1632, %v1636
    %1639 = vrot.lane.b32.xlu0 %v1433, 116
    %v1640 = vpop.permute.xlu0 %1639
    %v1642 = vrot.slane %v1478, 2
    %1643 = vrot.lane.b32.xlu0 %v1642, 120
    %v1644 = vpop.permute.xlu0 %1643
    %v1646 = vsel %vm538, %v1640, %v1644
    %1647 = vrot.lane.b32.xlu0 %v1478, 116
    %v1648 = vpop.permute.xlu0 %1647
    %v1650 = vrot.slane %v1433, 2
    %1651 = vrot.lane.b32.xlu0 %v1650, 120
    %v1652 = vpop.permute.xlu0 %1651
    %v1654 = vsel %vm538, %v1648, %v1652
    %1655 = vrot.lane.b32.xlu0 %v1523, 116
    %v1656 = vpop.permute.xlu0 %1655
    %v1658 = vrot.slane %v1388, 2
    %1659 = vrot.lane.b32.xlu0 %v1658, 120
    %v1660 = vpop.permute.xlu0 %1659
    %v1662 = vsel %vm538, %v1656, %v1660
    %1663 = vrot.lane.b32.xlu0 %v1568, 116
    %v1664 = vpop.permute.xlu0 %1663
    %v1666 = vrot.slane %v1343, 2
    %1667 = vrot.lane.b32.xlu0 %v1666, 120
    %v1668 = vpop.permute.xlu0 %1667
    %v1670 = vsel %vm538, %v1664, %v1668
    %1671 = vrot.lane.b32.xlu0 %v1613, 116
    %v1672 = vpop.permute.xlu0 %1671
    %v1674 = vrot.slane %v1298, 2
    %1675 = vrot.lane.b32.xlu0 %v1674, 120
    %v1676 = vpop.permute.xlu0 %1675
    %v1678 = vsel %vm538, %v1672, %v1676
    %v1680 = vrot.slane %v1630, 6
    %v1683 = vrot.slane %v1638, 4
    %v1686 = vrot.slane %v1646, 2
    %v1689 = vrot.slane %v1662, 6
    %v1692 = vrot.slane %v1670, 4
    %v1695 = vrot.slane %v1678, 2
    %v1697 = vsel %vm119, %v1622, %v1680
    %v1698 = vsel %vm615, %v1697, %v1683
    %v1699 = vsel %vm617, %v1698, %v1686
    %v1700 = vsel %vm119, %v1654, %v1689
    %v1701 = vsel %vm615, %v1700, %v1692
    %v1702 = vsel %vm617, %v1701, %v1695
    %s1703 = scalar_lea.vmem [#allocation3], 24
    %v1704 = vld [vmem:[%s1703] sm:$0xff]
    %s1705 = scalar_lea.vmem [#allocation5], 12
    %v1706 = vld [vmem:[%s1705] sm:$0xf]
    %s1707 = scalar_lea.vmem %s3, 3
    %v1708 = vld [vmem:[%s1707] sm:$0x1]
    %v1710 = vperm.slane %v1708, 0
    %v1713 = vsel %vm631, %v1699, 0
    %v1716 = vsel %vm631, %v1702, 0
    %1718 = vmatpush.msra.mxu0 0.0
    %1719 = vmatpush.msra.mxu0 0.0
    %1720 = vmatpush.msra.mxu0 0.0
    %1721 = vmatpush.msra.mxu0 0.0
    %1722 = vmatpush.msra.mxu0 0.0
    %1723 = vmatpush.msra.mxu0 0.0
    %1724 = vmatpush.msra.mxu0 0.0
    %1725 = vmatpush.msra.mxu0 0.0
    %1726 = vmatpush.msra.mxu0 0.0
    %1727 = vmatpush.msra.mxu0 0.0
    %1728 = vmatpush.msra.mxu0 0.0
    %1729 = vmatpush.msra.mxu0 0.0
    %1730 = vmatpush.msra.mxu0 0.0
    %1731 = vmatpush.msra.mxu0 0.0
    %1732 = vmatpush.msra.mxu0 0.0
    %1733 = vmatpush.msra.mxu0 %v1704
    %1734 = vmatmul.f32.gmra.mxu0 %v1713
    %v1735 = vpop.f32.mrf.mxu0
    %v1736 = vadd.f32 %v1710, %v1735
    %1737 = vmatmul.f32.gmra.mxu0 %v1716
    %v1738 = vpop.f32.mrf.mxu0
    %v1739 = vadd.f32 %v1710, %v1738
    %1740 = vdwg.mxu0
    %v1742 = vrot.slane %v1739, 4
    %1743 = vrot.lane.b32.xlu0 %v1742, 112
    %v1744 = vpop.permute.xlu0 %1743
    %v1746 = vsel %vm119, %v1736, %v1744
    %v1748 = vrot.slane %v1736, 2
    %v1750 = vrot.slane %v1739, 2
    %1751 = vrot.lane.b32.xlu0 %v1750, 112
    %v1752 = vpop.permute.xlu0 %1751
    %v1754 = vsel %vm119, %v1748, %v1752
    %v1755 = vrot.slane %v1736, 4
    %1757 = vrot.lane.b32.xlu0 %v1739, 112
    %v1758 = vpop.permute.xlu0 %1757
    %v1760 = vsel %vm119, %v1755, %v1758
    %v1761 = vrot.slane %v1736, 6
    %v1763 = vrot.slane %v1739, 6
    %1764 = vrot.lane.b32.xlu0 %v1763, 112
    %v1765 = vpop.permute.xlu0 %1764
    %v1767 = vsel %vm119, %v1761, %v1765
    %1768 = vrot.lane.b32.xlu0 %v1755, 112
    %v1769 = vpop.permute.xlu0 %1768
    %v1771 = vsel %vm119, %v1739, %v1769
    %1773 = vrot.lane.b32.xlu0 %v1748, 112
    %v1774 = vpop.permute.xlu0 %1773
    %v1776 = vsel %vm119, %v1750, %v1774
    %1778 = vrot.lane.b32.xlu0 %v1736, 112
    %v1779 = vpop.permute.xlu0 %1778
    %v1781 = vsel %vm119, %v1742, %v1779
    %1783 = vrot.lane.b32.xlu0 %v1761, 112
    %v1784 = vpop.permute.xlu0 %1783
    %v1786 = vsel %vm119, %v1763, %v1784
    %v1787 = vperm.slane %v1706, 0
    %1789 = vrot.lane.b32.xlu0 %v1787, 112
    %v1790 = vpop.permute.xlu0 %1789
    %v1792 = vsel %vm119, %v1787, %v1790
    %v1793 = vperm.slane %v1706, 1
    %1795 = vrot.lane.b32.xlu0 %v1793, 112
    %v1796 = vpop.permute.xlu0 %1795
    %v1798 = vsel %vm119, %v1793, %v1796
    %v1799 = vperm.slane %v1706, 2
    %1801 = vrot.lane.b32.xlu0 %v1799, 112
    %v1802 = vpop.permute.xlu0 %1801
    %v1804 = vsel %vm119, %v1799, %v1802
    %v1805 = vperm.slane %v1706, 3
    %1807 = vrot.lane.b32.xlu0 %v1805, 112
    %v1808 = vpop.permute.xlu0 %1807
    %v1810 = vsel %vm119, %v1805, %v1808
    %v1811 = vmul.f32 %v1792, 0.0
    %v1812 = vmul.f32 %v1798, 0.0
    %v1813 = vadd.f32 %v1811, %v1812
    %v1814 = vmul.f32 %v1804, 0.0
    %v1815 = vadd.f32 %v1813, %v1814
    %v1816 = vmul.f32 %v1810, 0.0
    %v1817 = vadd.f32 %v1815, %v1816
    %v1818 = vadd.f32 %v1746, %v1817
    %v1819 = vtanh.pop %v1818
    %v1820 = vmul.f32 %v1819, 0.5
    %v1821 = vadd.f32 %v1820, 0.5
    %v1822 = vmul.f32 %v1821, 0.0
    %1824 = vrot.lane.b32.xlu0 %v1819, 120
    %v1825 = vpop.permute.xlu0 %1824
    %v1827 = vmul.f32 %v1821, %v1825
    %1829 = vrot.lane.b32.xlu0 %v1827, 4
    %v1830 = vpop.permute.xlu0 %1829
    %v1832 = vadd.f32 %v1822, %v1830
    %v1833 = vtanh.pop %v1832
    %1835 = vrot.lane.b32.xlu0 %v1833, 8
    %v1836 = vpop.permute.xlu0 %1835
    %v1838 = vmul.f32 %v1821, %v1836
    %1840 = vset.pattern.permute.xlu0 12
    %1841 = vperm.xlu0 %1840, %v1838
    %v1842 = vpop.permute.xlu0 %1841
    %v1844 = vmul.f32 %v1842, %v1792
    %1845 = vset.pattern.permute.xlu0 13
    %1846 = vperm.xlu0 %1845, %v1838
    %v1847 = vpop.permute.xlu0 %1846
    %v1849 = vmul.f32 %v1847, %v1798
    %v1850 = vadd.f32 %v1844, %v1849
    %1851 = vset.pattern.permute.xlu0 14
    %1852 = vperm.xlu0 %1851, %v1838
    %v1853 = vpop.permute.xlu0 %1852
    %v1855 = vmul.f32 %v1853, %v1804
    %v1856 = vadd.f32 %v1850, %v1855
    %1857 = vset.pattern.permute.xlu0 15
    %1858 = vperm.xlu0 %1857, %v1838
    %v1859 = vpop.permute.xlu0 %1858
    %v1861 = vmul.f32 %v1859, %v1810
    %v1862 = vadd.f32 %v1856, %v1861
    %v1863 = vadd.f32 %v1754, %v1862
    %v1864 = vtanh.pop %v1863
    %v1865 = vmul.f32 %v1864, 0.5
    %v1866 = vadd.f32 %v1865, 0.5
    %v1867 = vmul.f32 %v1866, %v1832
    %1869 = vrot.lane.b32.xlu0 %v1864, 120
    %v1870 = vpop.permute.xlu0 %1869
    %v1872 = vmul.f32 %v1866, %v1870
    %1874 = vrot.lane.b32.xlu0 %v1872, 4
    %v1875 = vpop.permute.xlu0 %1874
    %v1877 = vadd.f32 %v1867, %v1875
    %v1878 = vtanh.pop %v1877
    %1880 = vrot.lane.b32.xlu0 %v1878, 8
    %v1881 = vpop.permute.xlu0 %1880
    %v1883 = vmul.f32 %v1866, %v1881
    %1885 = vset.pattern.permute.xlu0 12
    %1886 = vperm.xlu0 %1885, %v1883
    %v1887 = vpop.permute.xlu0 %1886
    %v1889 = vmul.f32 %v1887, %v1792
    %1890 = vset.pattern.permute.xlu0 13
    %1891 = vperm.xlu0 %1890, %v1883
    %v1892 = vpop.permute.xlu0 %1891
    %v1894 = vmul.f32 %v1892, %v1798
    %v1895 = vadd.f32 %v1889, %v1894
    %1896 = vset.pattern.permute.xlu0 14
    %1897 = vperm.xlu0 %1896, %v1883
    %v1898 = vpop.permute.xlu0 %1897
    %v1900 = vmul.f32 %v1898, %v1804
    %v1901 = vadd.f32 %v1895, %v1900
    %1902 = vset.pattern.permute.xlu0 15
    %1903 = vperm.xlu0 %1902, %v1883
    %v1904 = vpop.permute.xlu0 %1903
    %v1906 = vmul.f32 %v1904, %v1810
    %v1907 = vadd.f32 %v1901, %v1906
    %v1908 = vadd.f32 %v1760, %v1907
    %v1909 = vtanh.pop %v1908
    %v1910 = vmul.f32 %v1909, 0.5
    %v1911 = vadd.f32 %v1910, 0.5
    %v1912 = vmul.f32 %v1911, %v1877
    %1914 = vrot.lane.b32.xlu0 %v1909, 120
    %v1915 = vpop.permute.xlu0 %1914
    %v1917 = vmul.f32 %v1911, %v1915
    %1919 = vrot.lane.b32.xlu0 %v1917, 4
    %v1920 = vpop.permute.xlu0 %1919
    %v1922 = vadd.f32 %v1912, %v1920
    %v1923 = vtanh.pop %v1922
    %1925 = vrot.lane.b32.xlu0 %v1923, 8
    %v1926 = vpop.permute.xlu0 %1925
    %v1928 = vmul.f32 %v1911, %v1926
    %1930 = vset.pattern.permute.xlu0 12
    %1931 = vperm.xlu0 %1930, %v1928
    %v1932 = vpop.permute.xlu0 %1931
    %v1934 = vmul.f32 %v1932, %v1792
    %1935 = vset.pattern.permute.xlu0 13
    %1936 = vperm.xlu0 %1935, %v1928
    %v1937 = vpop.permute.xlu0 %1936
    %v1939 = vmul.f32 %v1937, %v1798
    %v1940 = vadd.f32 %v1934, %v1939
    %1941 = vset.pattern.permute.xlu0 14
    %1942 = vperm.xlu0 %1941, %v1928
    %v1943 = vpop.permute.xlu0 %1942
    %v1945 = vmul.f32 %v1943, %v1804
    %v1946 = vadd.f32 %v1940, %v1945
    %1947 = vset.pattern.permute.xlu0 15
    %1948 = vperm.xlu0 %1947, %v1928
    %v1949 = vpop.permute.xlu0 %1948
    %v1951 = vmul.f32 %v1949, %v1810
    %v1952 = vadd.f32 %v1946, %v1951
    %v1953 = vadd.f32 %v1767, %v1952
    %v1954 = vtanh.pop %v1953
    %v1955 = vmul.f32 %v1954, 0.5
    %v1956 = vadd.f32 %v1955, 0.5
    %v1957 = vmul.f32 %v1956, %v1922
    %1959 = vrot.lane.b32.xlu0 %v1954, 120
    %v1960 = vpop.permute.xlu0 %1959
    %v1962 = vmul.f32 %v1956, %v1960
    %1964 = vrot.lane.b32.xlu0 %v1962, 4
    %v1965 = vpop.permute.xlu0 %1964
    %v1967 = vadd.f32 %v1957, %v1965
    %v1968 = vtanh.pop %v1967
    %1970 = vrot.lane.b32.xlu0 %v1968, 8
    %v1971 = vpop.permute.xlu0 %1970
    %v1973 = vmul.f32 %v1956, %v1971
    %1975 = vset.pattern.permute.xlu0 12
    %1976 = vperm.xlu0 %1975, %v1973
    %v1977 = vpop.permute.xlu0 %1976
    %v1979 = vmul.f32 %v1977, %v1792
    %1980 = vset.pattern.permute.xlu0 13
    %1981 = vperm.xlu0 %1980, %v1973
    %v1982 = vpop.permute.xlu0 %1981
    %v1984 = vmul.f32 %v1982, %v1798
    %v1985 = vadd.f32 %v1979, %v1984
    %1986 = vset.pattern.permute.xlu0 14
    %1987 = vperm.xlu0 %1986, %v1973
    %v1988 = vpop.permute.xlu0 %1987
    %v1990 = vmul.f32 %v1988, %v1804
    %v1991 = vadd.f32 %v1985, %v1990
    %1992 = vset.pattern.permute.xlu0 15
    %1993 = vperm.xlu0 %1992, %v1973
    %v1994 = vpop.permute.xlu0 %1993
    %v1996 = vmul.f32 %v1994, %v1810
    %v1997 = vadd.f32 %v1991, %v1996
    %v1998 = vadd.f32 %v1771, %v1997
    %v1999 = vtanh.pop %v1998
    %v2000 = vmul.f32 %v1999, 0.5
    %v2001 = vadd.f32 %v2000, 0.5
    %v2002 = vmul.f32 %v2001, %v1967
    %2004 = vrot.lane.b32.xlu0 %v1999, 120
    %v2005 = vpop.permute.xlu0 %2004
    %v2007 = vmul.f32 %v2001, %v2005
    %2009 = vrot.lane.b32.xlu0 %v2007, 4
    %v2010 = vpop.permute.xlu0 %2009
    %v2012 = vadd.f32 %v2002, %v2010
    %v2013 = vtanh.pop %v2012
    %2015 = vrot.lane.b32.xlu0 %v2013, 8
    %v2016 = vpop.permute.xlu0 %2015
    %v2018 = vmul.f32 %v2001, %v2016
    %2020 = vset.pattern.permute.xlu0 12
    %2021 = vperm.xlu0 %2020, %v2018
    %v2022 = vpop.permute.xlu0 %2021
    %v2024 = vmul.f32 %v2022, %v1792
    %2025 = vset.pattern.permute.xlu0 13
    %2026 = vperm.xlu0 %2025, %v2018
    %v2027 = vpop.permute.xlu0 %2026
    %v2029 = vmul.f32 %v2027, %v1798
    %v2030 = vadd.f32 %v2024, %v2029
    %2031 = vset.pattern.permute.xlu0 14
    %2032 = vperm.xlu0 %2031, %v2018
    %v2033 = vpop.permute.xlu0 %2032
    %v2035 = vmul.f32 %v2033, %v1804
    %v2036 = vadd.f32 %v2030, %v2035
    %2037 = vset.pattern.permute.xlu0 15
    %2038 = vperm.xlu0 %2037, %v2018
    %v2039 = vpop.permute.xlu0 %2038
    %v2041 = vmul.f32 %v2039, %v1810
    %v2042 = vadd.f32 %v2036, %v2041
    %v2043 = vadd.f32 %v1776, %v2042
    %v2044 = vtanh.pop %v2043
    %v2045 = vmul.f32 %v2044, 0.5
    %v2046 = vadd.f32 %v2045, 0.5
    %v2047 = vmul.f32 %v2046, %v2012
    %2049 = vrot.lane.b32.xlu0 %v2044, 120
    %v2050 = vpop.permute.xlu0 %2049
    %v2052 = vmul.f32 %v2046, %v2050
    %2054 = vrot.lane.b32.xlu0 %v2052, 4
    %v2055 = vpop.permute.xlu0 %2054
    %v2057 = vadd.f32 %v2047, %v2055
    %v2058 = vtanh.pop %v2057
    %2060 = vrot.lane.b32.xlu0 %v2058, 8
    %v2061 = vpop.permute.xlu0 %2060
    %v2063 = vmul.f32 %v2046, %v2061
    %2065 = vset.pattern.permute.xlu0 12
    %2066 = vperm.xlu0 %2065, %v2063
    %v2067 = vpop.permute.xlu0 %2066
    %v2069 = vmul.f32 %v2067, %v1792
    %2070 = vset.pattern.permute.xlu0 13
    %2071 = vperm.xlu0 %2070, %v2063
    %v2072 = vpop.permute.xlu0 %2071
    %v2074 = vmul.f32 %v2072, %v1798
    %v2075 = vadd.f32 %v2069, %v2074
    %2076 = vset.pattern.permute.xlu0 14
    %2077 = vperm.xlu0 %2076, %v2063
    %v2078 = vpop.permute.xlu0 %2077
    %v2080 = vmul.f32 %v2078, %v1804
    %v2081 = vadd.f32 %v2075, %v2080
    %2082 = vset.pattern.permute.xlu0 15
    %2083 = vperm.xlu0 %2082, %v2063
    %v2084 = vpop.permute.xlu0 %2083
    %v2086 = vmul.f32 %v2084, %v1810
    %v2087 = vadd.f32 %v2081, %v2086
    %v2088 = vadd.f32 %v1781, %v2087
    %v2089 = vtanh.pop %v2088
    %v2090 = vmul.f32 %v2089, 0.5
    %v2091 = vadd.f32 %v2090, 0.5
    %v2092 = vmul.f32 %v2091, %v2057
    %2094 = vrot.lane.b32.xlu0 %v2089, 120
    %v2095 = vpop.permute.xlu0 %2094
    %v2097 = vmul.f32 %v2091, %v2095
    %2099 = vrot.lane.b32.xlu0 %v2097, 4
    %v2100 = vpop.permute.xlu0 %2099
    %v2102 = vadd.f32 %v2092, %v2100
    %v2103 = vtanh.pop %v2102
    %2105 = vrot.lane.b32.xlu0 %v2103, 8
    %v2106 = vpop.permute.xlu0 %2105
    %v2108 = vmul.f32 %v2091, %v2106
    %2110 = vset.pattern.permute.xlu0 12
    %2111 = vperm.xlu0 %2110, %v2108
    %v2112 = vpop.permute.xlu0 %2111
    %v2114 = vmul.f32 %v2112, %v1792
    %2115 = vset.pattern.permute.xlu0 13
    %2116 = vperm.xlu0 %2115, %v2108
    %v2117 = vpop.permute.xlu0 %2116
    %v2119 = vmul.f32 %v2117, %v1798
    %v2120 = vadd.f32 %v2114, %v2119
    %2121 = vset.pattern.permute.xlu0 14
    %2122 = vperm.xlu0 %2121, %v2108
    %v2123 = vpop.permute.xlu0 %2122
    %v2125 = vmul.f32 %v2123, %v1804
    %v2126 = vadd.f32 %v2120, %v2125
    %2127 = vset.pattern.permute.xlu0 15
    %2128 = vperm.xlu0 %2127, %v2108
    %v2129 = vpop.permute.xlu0 %2128
    %v2131 = vmul.f32 %v2129, %v1810
    %v2132 = vadd.f32 %v2126, %v2131
    %v2133 = vadd.f32 %v1786, %v2132
    %v2134 = vtanh.pop %v2133
    %v2135 = vmul.f32 %v2134, 0.5
    %v2136 = vadd.f32 %v2135, 0.5
    %v2137 = vmul.f32 %v2136, %v2102
    %2139 = vrot.lane.b32.xlu0 %v2134, 120
    %v2140 = vpop.permute.xlu0 %2139
    %v2142 = vmul.f32 %v2136, %v2140
    %2144 = vrot.lane.b32.xlu0 %v2142, 4
    %v2145 = vpop.permute.xlu0 %2144
    %v2147 = vadd.f32 %v2137, %v2145
    %v2148 = vtanh.pop %v2147
    %2150 = vrot.lane.b32.xlu0 %v2148, 8
    %v2151 = vpop.permute.xlu0 %2150
    %v2153 = vmul.f32 %v2136, %v2151
    %2154 = vrot.lane.b32.xlu0 %v1838, 116
    %v2155 = vpop.permute.xlu0 %2154
    %v2158 = vrot.slane %v2153, 2
    %2159 = vrot.lane.b32.xlu0 %v2158, 120
    %v2160 = vpop.permute.xlu0 %2159
    %v2162 = vsel %vm538, %v2155, %v2160
    %2163 = vrot.lane.b32.xlu0 %v1883, 116
    %v2164 = vpop.permute.xlu0 %2163
    %v2166 = vrot.slane %v2108, 2
    %2167 = vrot.lane.b32.xlu0 %v2166, 120
    %v2168 = vpop.permute.xlu0 %2167
    %v2170 = vsel %vm538, %v2164, %v2168
    %2171 = vrot.lane.b32.xlu0 %v1928, 116
    %v2172 = vpop.permute.xlu0 %2171
    %v2174 = vrot.slane %v2063, 2
    %2175 = vrot.lane.b32.xlu0 %v2174, 120
    %v2176 = vpop.permute.xlu0 %2175
    %v2178 = vsel %vm538, %v2172, %v2176
    %2179 = vrot.lane.b32.xlu0 %v1973, 116
    %v2180 = vpop.permute.xlu0 %2179
    %v2182 = vrot.slane %v2018, 2
    %2183 = vrot.lane.b32.xlu0 %v2182, 120
    %v2184 = vpop.permute.xlu0 %2183
    %v2186 = vsel %vm538, %v2180, %v2184
    %2187 = vrot.lane.b32.xlu0 %v2018, 116
    %v2188 = vpop.permute.xlu0 %2187
    %v2190 = vrot.slane %v1973, 2
    %2191 = vrot.lane.b32.xlu0 %v2190, 120
    %v2192 = vpop.permute.xlu0 %2191
    %v2194 = vsel %vm538, %v2188, %v2192
    %2195 = vrot.lane.b32.xlu0 %v2063, 116
    %v2196 = vpop.permute.xlu0 %2195
    %v2198 = vrot.slane %v1928, 2
    %2199 = vrot.lane.b32.xlu0 %v2198, 120
    %v2200 = vpop.permute.xlu0 %2199
    %v2202 = vsel %vm538, %v2196, %v2200
    %2203 = vrot.lane.b32.xlu0 %v2108, 116
    %v2204 = vpop.permute.xlu0 %2203
    %v2206 = vrot.slane %v1883, 2
    %2207 = vrot.lane.b32.xlu0 %v2206, 120
    %v2208 = vpop.permute.xlu0 %2207
    %v2210 = vsel %vm538, %v2204, %v2208
    %2211 = vrot.lane.b32.xlu0 %v2153, 116
    %v2212 = vpop.permute.xlu0 %2211
    %v2214 = vrot.slane %v1838, 2
    %2215 = vrot.lane.b32.xlu0 %v2214, 120
    %v2216 = vpop.permute.xlu0 %2215
    %v2218 = vsel %vm538, %v2212, %v2216
    %v2220 = vrot.slane %v2170, 6
    %v2223 = vrot.slane %v2178, 4
    %v2226 = vrot.slane %v2186, 2
    %v2229 = vrot.slane %v2202, 6
    %v2232 = vrot.slane %v2210, 4
    %v2235 = vrot.slane %v2218, 2
    %v2237 = vsel %vm119, %v2162, %v2220
    %v2238 = vsel %vm615, %v2237, %v2223
    %v2239 = vsel %vm617, %v2238, %v2226
    %v2240 = vsel %vm119, %v2194, %v2229
    %v2241 = vsel %vm615, %v2240, %v2232
    %v2242 = vsel %vm617, %v2241, %v2235
    %s2243 = scalar_lea.vmem [#allocation3], 32
    %v2244 = vld [vmem:[%s2243] sm:$0xff]
    %s2245 = scalar_lea.vmem [#allocation5], 16
    %v2246 = vld [vmem:[%s2245] sm:$0xf]
    %s2247 = scalar_lea.vmem %s3, 4
    %v2248 = vld [vmem:[%s2247] sm:$0x1]
    %v2250 = vperm.slane %v2248, 0
    %v2253 = vsel %vm631, %v2239, 0
    %v2256 = vsel %vm631, %v2242, 0
    %2258 = vmatpush.msra.mxu0 0.0
    %2259 = vmatpush.msra.mxu0 0.0
    %2260 = vmatpush.msra.mxu0 0.0
    %2261 = vmatpush.msra.mxu0 0.0
    %2262 = vmatpush.msra.mxu0 0.0
    %2263 = vmatpush.msra.mxu0 0.0
    %2264 = vmatpush.msra.mxu0 0.0
    %2265 = vmatpush.msra.mxu0 0.0
    %2266 = vmatpush.msra.mxu0 0.0
    %2267 = vmatpush.msra.mxu0 0.0
    %2268 = vmatpush.msra.mxu0 0.0
    %2269 = vmatpush.msra.mxu0 0.0
    %2270 = vmatpush.msra.mxu0 0.0
    %2271 = vmatpush.msra.mxu0 0.0
    %2272 = vmatpush.msra.mxu0 0.0
    %2273 = vmatpush.msra.mxu0 %v2244
    %2274 = vmatmul.f32.gmra.mxu0 %v2253
    %v2275 = vpop.f32.mrf.mxu0
    %v2276 = vadd.f32 %v2250, %v2275
    %2277 = vmatmul.f32.gmra.mxu0 %v2256
    %v2278 = vpop.f32.mrf.mxu0
    %v2279 = vadd.f32 %v2250, %v2278
    %2280 = vdwg.mxu0
    %v2282 = vrot.slane %v2279, 4
    %2283 = vrot.lane.b32.xlu0 %v2282, 112
    %v2284 = vpop.permute.xlu0 %2283
    %v2286 = vsel %vm119, %v2276, %v2284
    %v2288 = vrot.slane %v2276, 2
    %v2290 = vrot.slane %v2279, 2
    %2291 = vrot.lane.b32.xlu0 %v2290, 112
    %v2292 = vpop.permute.xlu0 %2291
    %v2294 = vsel %vm119, %v2288, %v2292
    %v2295 = vrot.slane %v2276, 4
    %2297 = vrot.lane.b32.xlu0 %v2279, 112
    %v2298 = vpop.permute.xlu0 %2297
    %v2300 = vsel %vm119, %v2295, %v2298
    %v2301 = vrot.slane %v2276, 6
    %v2303 = vrot.slane %v2279, 6
    %2304 = vrot.lane.b32.xlu0 %v2303, 112
    %v2305 = vpop.permute.xlu0 %2304
    %v2307 = vsel %vm119, %v2301, %v2305
    %2308 = vrot.lane.b32.xlu0 %v2295, 112
    %v2309 = vpop.permute.xlu0 %2308
    %v2311 = vsel %vm119, %v2279, %v2309
    %2313 = vrot.lane.b32.xlu0 %v2288, 112
    %v2314 = vpop.permute.xlu0 %2313
    %v2316 = vsel %vm119, %v2290, %v2314
    %2318 = vrot.lane.b32.xlu0 %v2276, 112
    %v2319 = vpop.permute.xlu0 %2318
    %v2321 = vsel %vm119, %v2282, %v2319
    %2323 = vrot.lane.b32.xlu0 %v2301, 112
    %v2324 = vpop.permute.xlu0 %2323
    %v2326 = vsel %vm119, %v2303, %v2324
    %v2327 = vperm.slane %v2246, 0
    %2329 = vrot.lane.b32.xlu0 %v2327, 112
    %v2330 = vpop.permute.xlu0 %2329
    %v2332 = vsel %vm119, %v2327, %v2330
    %v2333 = vperm.slane %v2246, 1
    %2335 = vrot.lane.b32.xlu0 %v2333, 112
    %v2336 = vpop.permute.xlu0 %2335
    %v2338 = vsel %vm119, %v2333, %v2336
    %v2339 = vperm.slane %v2246, 2
    %2341 = vrot.lane.b32.xlu0 %v2339, 112
    %v2342 = vpop.permute.xlu0 %2341
    %v2344 = vsel %vm119, %v2339, %v2342
    %v2345 = vperm.slane %v2246, 3
    %2347 = vrot.lane.b32.xlu0 %v2345, 112
    %v2348 = vpop.permute.xlu0 %2347
    %v2350 = vsel %vm119, %v2345, %v2348
    %v2351 = vmul.f32 %v2332, 0.0
    %v2352 = vmul.f32 %v2338, 0.0
    %v2353 = vadd.f32 %v2351, %v2352
    %v2354 = vmul.f32 %v2344, 0.0
    %v2355 = vadd.f32 %v2353, %v2354
    %v2356 = vmul.f32 %v2350, 0.0
    %v2357 = vadd.f32 %v2355, %v2356
    %v2358 = vadd.f32 %v2286, %v2357
    %v2359 = vtanh.pop %v2358
    %v2360 = vmul.f32 %v2359, 0.5
    %v2361 = vadd.f32 %v2360, 0.5
    %v2362 = vmul.f32 %v2361, 0.0
    %2364 = vrot.lane.b32.xlu0 %v2359, 120
    %v2365 = vpop.permute.xlu0 %2364
    %v2367 = vmul.f32 %v2361, %v2365
    %2369 = vrot.lane.b32.xlu0 %v2367, 4
    %v2370 = vpop.permute.xlu0 %2369
    %v2372 = vadd.f32 %v2362, %v2370
    %v2373 = vtanh.pop %v2372
    %2375 = vrot.lane.b32.xlu0 %v2373, 8
    %v2376 = vpop.permute.xlu0 %2375
    %v2378 = vmul.f32 %v2361, %v2376
    %2380 = vset.pattern.permute.xlu0 12
    %2381 = vperm.xlu0 %2380, %v2378
    %v2382 = vpop.permute.xlu0 %2381
    %v2384 = vmul.f32 %v2382, %v2332
    %2385 = vset.pattern.permute.xlu0 13
    %2386 = vperm.xlu0 %2385, %v2378
    %v2387 = vpop.permute.xlu0 %2386
    %v2389 = vmul.f32 %v2387, %v2338
    %v2390 = vadd.f32 %v2384, %v2389
    %2391 = vset.pattern.permute.xlu0 14
    %2392 = vperm.xlu0 %2391, %v2378
    %v2393 = vpop.permute.xlu0 %2392
    %v2395 = vmul.f32 %v2393, %v2344
    %v2396 = vadd.f32 %v2390, %v2395
    %2397 = vset.pattern.permute.xlu0 15
    %2398 = vperm.xlu0 %2397, %v2378
    %v2399 = vpop.permute.xlu0 %2398
    %v2401 = vmul.f32 %v2399, %v2350
    %v2402 = vadd.f32 %v2396, %v2401
    %v2403 = vadd.f32 %v2294, %v2402
    %v2404 = vtanh.pop %v2403
    %v2405 = vmul.f32 %v2404, 0.5
    %v2406 = vadd.f32 %v2405, 0.5
    %v2407 = vmul.f32 %v2406, %v2372
    %2409 = vrot.lane.b32.xlu0 %v2404, 120
    %v2410 = vpop.permute.xlu0 %2409
    %v2412 = vmul.f32 %v2406, %v2410
    %2414 = vrot.lane.b32.xlu0 %v2412, 4
    %v2415 = vpop.permute.xlu0 %2414
    %v2417 = vadd.f32 %v2407, %v2415
    %v2418 = vtanh.pop %v2417
    %2420 = vrot.lane.b32.xlu0 %v2418, 8
    %v2421 = vpop.permute.xlu0 %2420
    %v2423 = vmul.f32 %v2406, %v2421
    %2425 = vset.pattern.permute.xlu0 12
    %2426 = vperm.xlu0 %2425, %v2423
    %v2427 = vpop.permute.xlu0 %2426
    %v2429 = vmul.f32 %v2427, %v2332
    %2430 = vset.pattern.permute.xlu0 13
    %2431 = vperm.xlu0 %2430, %v2423
    %v2432 = vpop.permute.xlu0 %2431
    %v2434 = vmul.f32 %v2432, %v2338
    %v2435 = vadd.f32 %v2429, %v2434
    %2436 = vset.pattern.permute.xlu0 14
    %2437 = vperm.xlu0 %2436, %v2423
    %v2438 = vpop.permute.xlu0 %2437
    %v2440 = vmul.f32 %v2438, %v2344
    %v2441 = vadd.f32 %v2435, %v2440
    %2442 = vset.pattern.permute.xlu0 15
    %2443 = vperm.xlu0 %2442, %v2423
    %v2444 = vpop.permute.xlu0 %2443
    %v2446 = vmul.f32 %v2444, %v2350
    %v2447 = vadd.f32 %v2441, %v2446
    %v2448 = vadd.f32 %v2300, %v2447
    %v2449 = vtanh.pop %v2448
    %v2450 = vmul.f32 %v2449, 0.5
    %v2451 = vadd.f32 %v2450, 0.5
    %v2452 = vmul.f32 %v2451, %v2417
    %2454 = vrot.lane.b32.xlu0 %v2449, 120
    %v2455 = vpop.permute.xlu0 %2454
    %v2457 = vmul.f32 %v2451, %v2455
    %2459 = vrot.lane.b32.xlu0 %v2457, 4
    %v2460 = vpop.permute.xlu0 %2459
    %v2462 = vadd.f32 %v2452, %v2460
    %v2463 = vtanh.pop %v2462
    %2465 = vrot.lane.b32.xlu0 %v2463, 8
    %v2466 = vpop.permute.xlu0 %2465
    %v2468 = vmul.f32 %v2451, %v2466
    %2470 = vset.pattern.permute.xlu0 12
    %2471 = vperm.xlu0 %2470, %v2468
    %v2472 = vpop.permute.xlu0 %2471
    %v2474 = vmul.f32 %v2472, %v2332
    %2475 = vset.pattern.permute.xlu0 13
    %2476 = vperm.xlu0 %2475, %v2468
    %v2477 = vpop.permute.xlu0 %2476
    %v2479 = vmul.f32 %v2477, %v2338
    %v2480 = vadd.f32 %v2474, %v2479
    %2481 = vset.pattern.permute.xlu0 14
    %2482 = vperm.xlu0 %2481, %v2468
    %v2483 = vpop.permute.xlu0 %2482
    %v2485 = vmul.f32 %v2483, %v2344
    %v2486 = vadd.f32 %v2480, %v2485
    %2487 = vset.pattern.permute.xlu0 15
    %2488 = vperm.xlu0 %2487, %v2468
    %v2489 = vpop.permute.xlu0 %2488
    %v2491 = vmul.f32 %v2489, %v2350
    %v2492 = vadd.f32 %v2486, %v2491
    %v2493 = vadd.f32 %v2307, %v2492
    %v2494 = vtanh.pop %v2493
    %v2495 = vmul.f32 %v2494, 0.5
    %v2496 = vadd.f32 %v2495, 0.5
    %v2497 = vmul.f32 %v2496, %v2462
    %2499 = vrot.lane.b32.xlu0 %v2494, 120
    %v2500 = vpop.permute.xlu0 %2499
    %v2502 = vmul.f32 %v2496, %v2500
    %2504 = vrot.lane.b32.xlu0 %v2502, 4
    %v2505 = vpop.permute.xlu0 %2504
    %v2507 = vadd.f32 %v2497, %v2505
    %v2508 = vtanh.pop %v2507
    %2510 = vrot.lane.b32.xlu0 %v2508, 8
    %v2511 = vpop.permute.xlu0 %2510
    %v2513 = vmul.f32 %v2496, %v2511
    %2515 = vset.pattern.permute.xlu0 12
    %2516 = vperm.xlu0 %2515, %v2513
    %v2517 = vpop.permute.xlu0 %2516
    %v2519 = vmul.f32 %v2517, %v2332
    %2520 = vset.pattern.permute.xlu0 13
    %2521 = vperm.xlu0 %2520, %v2513
    %v2522 = vpop.permute.xlu0 %2521
    %v2524 = vmul.f32 %v2522, %v2338
    %v2525 = vadd.f32 %v2519, %v2524
    %2526 = vset.pattern.permute.xlu0 14
    %2527 = vperm.xlu0 %2526, %v2513
    %v2528 = vpop.permute.xlu0 %2527
    %v2530 = vmul.f32 %v2528, %v2344
    %v2531 = vadd.f32 %v2525, %v2530
    %2532 = vset.pattern.permute.xlu0 15
    %2533 = vperm.xlu0 %2532, %v2513
    %v2534 = vpop.permute.xlu0 %2533
    %v2536 = vmul.f32 %v2534, %v2350
    %v2537 = vadd.f32 %v2531, %v2536
    %v2538 = vadd.f32 %v2311, %v2537
    %v2539 = vtanh.pop %v2538
    %v2540 = vmul.f32 %v2539, 0.5
    %v2541 = vadd.f32 %v2540, 0.5
    %v2542 = vmul.f32 %v2541, %v2507
    %2544 = vrot.lane.b32.xlu0 %v2539, 120
    %v2545 = vpop.permute.xlu0 %2544
    %v2547 = vmul.f32 %v2541, %v2545
    %2549 = vrot.lane.b32.xlu0 %v2547, 4
    %v2550 = vpop.permute.xlu0 %2549
    %v2552 = vadd.f32 %v2542, %v2550
    %v2553 = vtanh.pop %v2552
    %2555 = vrot.lane.b32.xlu0 %v2553, 8
    %v2556 = vpop.permute.xlu0 %2555
    %v2558 = vmul.f32 %v2541, %v2556
    %2560 = vset.pattern.permute.xlu0 12
    %2561 = vperm.xlu0 %2560, %v2558
    %v2562 = vpop.permute.xlu0 %2561
    %v2564 = vmul.f32 %v2562, %v2332
    %2565 = vset.pattern.permute.xlu0 13
    %2566 = vperm.xlu0 %2565, %v2558
    %v2567 = vpop.permute.xlu0 %2566
    %v2569 = vmul.f32 %v2567, %v2338
    %v2570 = vadd.f32 %v2564, %v2569
    %2571 = vset.pattern.permute.xlu0 14
    %2572 = vperm.xlu0 %2571, %v2558
    %v2573 = vpop.permute.xlu0 %2572
    %v2575 = vmul.f32 %v2573, %v2344
    %v2576 = vadd.f32 %v2570, %v2575
    %2577 = vset.pattern.permute.xlu0 15
    %2578 = vperm.xlu0 %2577, %v2558
    %v2579 = vpop.permute.xlu0 %2578
    %v2581 = vmul.f32 %v2579, %v2350
    %v2582 = vadd.f32 %v2576, %v2581
    %v2583 = vadd.f32 %v2316, %v2582
    %v2584 = vtanh.pop %v2583
    %v2585 = vmul.f32 %v2584, 0.5
    %v2586 = vadd.f32 %v2585, 0.5
    %v2587 = vmul.f32 %v2586, %v2552
    %2589 = vrot.lane.b32.xlu0 %v2584, 120
    %v2590 = vpop.permute.xlu0 %2589
    %v2592 = vmul.f32 %v2586, %v2590
    %2594 = vrot.lane.b32.xlu0 %v2592, 4
    %v2595 = vpop.permute.xlu0 %2594
    %v2597 = vadd.f32 %v2587, %v2595
    %v2598 = vtanh.pop %v2597
    %2600 = vrot.lane.b32.xlu0 %v2598, 8
    %v2601 = vpop.permute.xlu0 %2600
    %v2603 = vmul.f32 %v2586, %v2601
    %2605 = vset.pattern.permute.xlu0 12
    %2606 = vperm.xlu0 %2605, %v2603
    %v2607 = vpop.permute.xlu0 %2606
    %v2609 = vmul.f32 %v2607, %v2332
    %2610 = vset.pattern.permute.xlu0 13
    %2611 = vperm.xlu0 %2610, %v2603
    %v2612 = vpop.permute.xlu0 %2611
    %v2614 = vmul.f32 %v2612, %v2338
    %v2615 = vadd.f32 %v2609, %v2614
    %2616 = vset.pattern.permute.xlu0 14
    %2617 = vperm.xlu0 %2616, %v2603
    %v2618 = vpop.permute.xlu0 %2617
    %v2620 = vmul.f32 %v2618, %v2344
    %v2621 = vadd.f32 %v2615, %v2620
    %2622 = vset.pattern.permute.xlu0 15
    %2623 = vperm.xlu0 %2622, %v2603
    %v2624 = vpop.permute.xlu0 %2623
    %v2626 = vmul.f32 %v2624, %v2350
    %v2627 = vadd.f32 %v2621, %v2626
    %v2628 = vadd.f32 %v2321, %v2627
    %v2629 = vtanh.pop %v2628
    %v2630 = vmul.f32 %v2629, 0.5
    %v2631 = vadd.f32 %v2630, 0.5
    %v2632 = vmul.f32 %v2631, %v2597
    %2634 = vrot.lane.b32.xlu0 %v2629, 120
    %v2635 = vpop.permute.xlu0 %2634
    %v2637 = vmul.f32 %v2631, %v2635
    %2639 = vrot.lane.b32.xlu0 %v2637, 4
    %v2640 = vpop.permute.xlu0 %2639
    %v2642 = vadd.f32 %v2632, %v2640
    %v2643 = vtanh.pop %v2642
    %2645 = vrot.lane.b32.xlu0 %v2643, 8
    %v2646 = vpop.permute.xlu0 %2645
    %v2648 = vmul.f32 %v2631, %v2646
    %2650 = vset.pattern.permute.xlu0 12
    %2651 = vperm.xlu0 %2650, %v2648
    %v2652 = vpop.permute.xlu0 %2651
    %v2654 = vmul.f32 %v2652, %v2332
    %2655 = vset.pattern.permute.xlu0 13
    %2656 = vperm.xlu0 %2655, %v2648
    %v2657 = vpop.permute.xlu0 %2656
    %v2659 = vmul.f32 %v2657, %v2338
    %v2660 = vadd.f32 %v2654, %v2659
    %2661 = vset.pattern.permute.xlu0 14
    %2662 = vperm.xlu0 %2661, %v2648
    %v2663 = vpop.permute.xlu0 %2662
    %v2665 = vmul.f32 %v2663, %v2344
    %v2666 = vadd.f32 %v2660, %v2665
    %2667 = vset.pattern.permute.xlu0 15
    %2668 = vperm.xlu0 %2667, %v2648
    %v2669 = vpop.permute.xlu0 %2668
    %v2671 = vmul.f32 %v2669, %v2350
    %v2672 = vadd.f32 %v2666, %v2671
    %v2673 = vadd.f32 %v2326, %v2672
    %v2674 = vtanh.pop %v2673
    %v2675 = vmul.f32 %v2674, 0.5
    %v2676 = vadd.f32 %v2675, 0.5
    %v2677 = vmul.f32 %v2676, %v2642
    %2679 = vrot.lane.b32.xlu0 %v2674, 120
    %v2680 = vpop.permute.xlu0 %2679
    %v2682 = vmul.f32 %v2676, %v2680
    %2684 = vrot.lane.b32.xlu0 %v2682, 4
    %v2685 = vpop.permute.xlu0 %2684
    %v2687 = vadd.f32 %v2677, %v2685
    %v2688 = vtanh.pop %v2687
    %2690 = vrot.lane.b32.xlu0 %v2688, 8
    %v2691 = vpop.permute.xlu0 %2690
    %v2693 = vmul.f32 %v2676, %v2691
    %2695 = vrot.lane.b32.xlu0 %v2693, 116
    %v2696 = vpop.permute.xlu0 %2695
    %v2698 = vrot.slane %v2378, 2
    %2699 = vrot.lane.b32.xlu0 %v2698, 120
    %v2700 = vpop.permute.xlu0 %2699
    %v2702 = vsel %vm538, %v2696, %v2700
    %v2703 = vld [vmem:[%s4] sm:$0xff]
    %v2704 = vld [vmem:[#allocation2] sm:$0x1]
    %v2706 = vperm.slane %v2704, 0
    %v2709 = vsel %vm631, %v2702, 0
    %2711 = vmatpush.msra.mxu0 0.0
    %2712 = vmatpush.msra.mxu0 0.0
    %2713 = vmatpush.msra.mxu0 0.0
    %2714 = vmatpush.msra.mxu0 0.0
    %2715 = vmatpush.msra.mxu0 0.0
    %2716 = vmatpush.msra.mxu0 0.0
    %2717 = vmatpush.msra.mxu0 0.0
    %2718 = vmatpush.msra.mxu0 0.0
    %2719 = vmatpush.msra.mxu0 0.0
    %2720 = vmatpush.msra.mxu0 0.0
    %2721 = vmatpush.msra.mxu0 0.0
    %2722 = vmatpush.msra.mxu0 0.0
    %2723 = vmatpush.msra.mxu0 0.0
    %2724 = vmatpush.msra.mxu0 0.0
    %2725 = vmatpush.msra.mxu0 0.0
    %2726 = vmatpush.msra.mxu0 %v2703
    %2727 = vmatmul.f32.gmra.mxu0 %v2709
    %v2728 = vpop.f32.mrf.mxu0
    %v2729 = vadd.f32 %v2706, %v2728
    %2730 = vdwg.mxu0
    %vm2731 = vcmask 1024
    %2732 = vst.msk [vmem:[%s6] sm:$0x3] %vm2731, %v2729
    // Predicated region
    $region34: #{simple_lstm_forward.1} parent=1 // pred_check
      _
    $region35: #{simple_lstm_forward.1} parent=1 // pred_check_branch
      %2734 = sbr.rel (0) target = $region37
    $region36: #{simple_lstm_forward.1} parent=1 // pred_region
      _
    $region37: #{simple_lstm_forward.1} parent=1 // pred_fallthru
      _
    // Predicated region
    $region38: #{simple_lstm_forward.1} parent=1 // pred_check
      _
    $region39: #{simple_lstm_forward.1} parent=1 // pred_check_branch
      %2736 = sbr.rel (0) target = $region41
    $region40: #{simple_lstm_forward.1} parent=1 // pred_region
      _
    $region41: #{simple_lstm_forward.1} parent=1 // pred_fallthru
      _
    %2737 = vsyncpa [#allocation4], 1
    %2738 = vsyncpa [#allocation6], 1

</llo_original>
